<compile_context>
chip_gen: v7x
topology: tpu7x:2x2x1
jax: 0.10.0
libtpu: 0.0.40
codegen_flags: <defaults>
</compile_context>

<pallas_src>
import jax
import jax.numpy as jnp
from jax.experimental import pallas as pl
from jax.experimental.pallas import tpu as pltpu


def _silu(x):
    return x * jax.nn.sigmoid(x)


def _round_up(x, m):
    return (x + m - 1) // m * m


# --------------------- pass 1: per-edge messages (one edge sweep) ---------------------
def _edge_msg_kernel(s_cat_ref, v_cat_ref, aux_ref,
                     w_s_ref, b_s_ref, w_v_ref, b_v_ref,
                     wsl_s_ref, wsl_v_ref, bsl_ref,
                     wvl_v_ref, wvl_s_ref, bvl_ref,
                     msgs_ref):
    f32 = jnp.float32
    bf16 = jnp.bfloat16
    c = wsl_s_ref.shape[1]                               # out_channels

    pd = (aux_ref[:, 0:1], aux_ref[:, 1:2], aux_ref[:, 2:3])   # (E_t, 1) each, f32
    norm = aux_ref[:, 3:4]                                      # (E_t, 1), f32

    # fused scalar-input linears:  [Scalar_Conv.s_to_s | Vector_Conv.s_to_v]
    s_pre = (jnp.dot(s_cat_ref[...], w_s_ref[...], preferred_element_type=f32)
             + b_s_ref[...])                                    # (E_t, 2C)
    s_to_s = _silu(s_pre[:, :c])                                # (E_t, C)
    s_to_v = s_pre[:, c:]                                       # (E_t, C)

    # fused vector-input linears: [Scalar_Conv.v_to_s | Vector_Conv.v_to_v],
    # one matmul per spatial component (no in-kernel concat/reshape copies)
    v_pre = [jnp.dot(v_cat_ref[k], w_v_ref[...], preferred_element_type=f32)
             + b_v_ref[...] for k in range(3)]                  # 3 x (E_t, 2C)

    # Scalar_Conv message
    v_to_s = _silu(v_pre[0][:, :c] * pd[0]
                   + v_pre[1][:, :c] * pd[1]
                   + v_pre[2][:, :c] * pd[2])                   # (E_t, C)
    msg_s = (jnp.dot(s_to_s.astype(bf16), wsl_s_ref[...], preferred_element_type=f32)
             + jnp.dot(v_to_s.astype(bf16), wsl_v_ref[...], preferred_element_type=f32)
             + bsl_ref[...])                                    # (E_t, C)

    # Vector_Conv messages (per spatial component)
    parts = [msg_s]
    for k in range(3):
        s2v = jnp.tanh(s_to_v * pd[k])                          # (E_t, C), f32
        mv = (jnp.dot(v_pre[k][:, c:].astype(bf16), wvl_v_ref[...],
                      preferred_element_type=f32)
              + jnp.dot(s2v.astype(bf16), wvl_s_ref[...],
                        preferred_element_type=f32)
              + bvl_ref[...])                                   # (E_t, C)
        parts.append(mv)

    # lane-dense message slab; per-edge norm folded in f32 before the bf16 cast
    # (padded edges have norm == 0 -> exactly zero messages)
    msgs = jnp.concatenate(parts, axis=-1) * norm               # (E_t, 4C)
    msgs_ref[...] = msgs.astype(bf16)


# ------------- pass 2: sparse scatter-add aggregation + activation/residual -------------
def _agg_kernel(estart_ref, ecount_ref, col_ref, msgs_ref, res_ref,
                out_ref, acc_ref):
    f32 = jnp.float32
    n_idx = pl.program_id(0)
    e_idx = pl.program_id(1)
    n_tile = acc_ref.shape[0]
    e_tile = msgs_ref.shape[0]
    c = acc_ref.shape[1] // 4

    @pl.when(e_idx == 0)
    def _init():
        acc_ref[...] = jnp.zeros_like(acc_ref)

    # only edge tiles intersecting this node tile's (sorted) edge range do work
    @pl.when(e_idx < ecount_ref[n_idx])
    def _accumulate():
        node_ids = n_idx * n_tile + jax.lax.broadcasted_iota(
            jnp.int32, (n_tile, e_tile), 0)
        s_tile = (node_ids == col_ref[...]).astype(jnp.bfloat16)   # (N_t, E_t) 0/1
        acc_ref[...] += jnp.dot(s_tile, msgs_ref[...],
                                preferred_element_type=f32)

    @pl.when(e_idx == pl.num_programs(1) - 1)
    def _finalize():
        acc = acc_ref[...]
        lane = jax.lax.broadcasted_iota(jnp.int32, acc.shape, 1)
        act = jnp.where(lane < c, _silu(acc), jnp.tanh(acc))       # silu | tanh x3
        out_ref[...] = act + res_ref[...]                          # fused residual slab


def molnet_layer(scalar, vector, position, edge_index, edge_attr, params,
                 *, n_tile=512, e_tile=512):
    # TODO(synk): only the B=False branch of MolNet_Layer is implemented;
    # edge_attr is unused in that branch (matches the reference module default).
    del edge_attr
    N, cin = scalar.shape
    cout = params["wss"].shape[1]
    assert cin == cout, "MolNet_Layer residual requires in_channels == out_channels"
    c = cout
    f32, bf16 = jnp.float32, jnp.bfloat16

    # --- glue: add self loops, sort edges by destination, symmetric normalization ---
    row = edge_index[0].astype(jnp.int32)
    col = edge_index[1].astype(jnp.int32)
    loop = jnp.arange(N, dtype=jnp.int32)
    row = jnp.concatenate([row, loop])
    col = jnp.concatenate([col, loop])
    E = int(row.shape[0])

    order = jnp.argsort(col, stable=True)       # contiguous edge range per node tile
    row = row[order]
    col = col[order]

    deg = jnp.zeros((N,), f32).at[col].add(1.0)
    dis = jnp.where(deg > 0, deg ** -0.5, 0.0)
    norm = dis[row] * dis[col]

    # per-edge gathers, pre-concatenated [x_i | x_j] (i = col target, j = row source)
    s_cat = jnp.concatenate([scalar[col], scalar[row]], axis=1).astype(bf16)   # (E, 2Cin)
    v_cat = jnp.transpose(
        jnp.concatenate([vector[col], vector[row]], axis=-1), (1, 0, 2)
    ).astype(bf16)                                                             # (3, E, 2Cin)
    pd = position[col] - position[row]                                         # (E, 3)
    aux = jnp.concatenate([pd, norm[:, None]], axis=1).astype(f32)             # (E, 4)

    # --- tiling / padding (tiles are multiples of (8, 128)) ---
    n_tile = min(n_tile, _round_up(N, 8))
    e_tile = min(e_tile, _round_up(E, 128))
    n_pad = _round_up(N, n_tile)
    e_pad = _round_up(E, e_tile)
    n_tiles = n_pad // n_tile
    e_tiles_total = e_pad // e_tile

    def pad_to(x, axis, size, value=0):
        pads = [(0, 0)] * x.ndim
        pads[axis] = (0, size - x.shape[axis])
        return jnp.pad(x, pads, constant_values=value)

    s_cat = pad_to(s_cat, 0, e_pad)
    v_cat = pad_to(v_cat, 1, e_pad)
    aux = pad_to(aux, 0, e_pad)                         # padded norm == 0
    col2d = pad_to(col[None, :], 1, e_pad, value=-1)    # -1 never matches a node id
    res = pad_to(jnp.concatenate([scalar, vector.reshape(N, 3 * c)], axis=1)
                 .astype(f32), 0, n_pad)                # (N_pad, 4C) residual slab

    # --- fused / bf16 weights (linears over concatenated inputs, lane-concat outputs) ---
    w_s = jnp.concatenate([params["wss"], params["wsv"]], axis=1).astype(bf16)  # (2Cin, 2C)
    b_s = jnp.concatenate([params["bss"], params["bsv"]], axis=1).astype(f32)   # (1, 2C)
    w_v = jnp.concatenate([params["wvs"], params["wvv"]], axis=1).astype(bf16)
    b_v = jnp.concatenate([params["bvs"], params["bvv"]], axis=1).astype(f32)
    wsl_s = params["wsl"][:c].astype(bf16)
    wsl_v = params["wsl"][c:].astype(bf16)
    bsl = params["bsl"].astype(f32)
    wvl_v = params["wvl"][:c].astype(bf16)
    wvl_s = params["wvl"][c:].astype(bf16)
    bvl = params["bvl"].astype(f32)
    weights = (w_s, b_s, w_v, b_v, wsl_s, wsl_v, bsl, wvl_v, wvl_s, bvl)

    # ---------------- pass 1: per-edge messages (single sweep over edges) ----------------
    edge_map = lambda e: (e, 0)
    msgs = pl.pallas_call(
        _edge_msg_kernel,
        out_shape=jax.ShapeDtypeStruct((e_pad, 4 * c), bf16),
        grid=(e_tiles_total,),
        in_specs=[pl.BlockSpec((e_tile, 2 * cin), edge_map),              # [s_i | s_j]
                  pl.BlockSpec((3, e_tile, 2 * cin), lambda e: (0, e, 0)),  # [v_i | v_j]
                  pl.BlockSpec((e_tile, 4), edge_map)]                    # [pd_xyz | norm]
                 + [pl.BlockSpec(w.shape, lambda e: (0, 0)) for w in weights],
        out_specs=pl.BlockSpec((e_tile, 4 * c), edge_map),
        compiler_params=pltpu.CompilerParams(
            dimension_semantics=("parallel",),
            vmem_limit_bytes=48 * 1024 * 1024),
    )(s_cat, v_cat, aux, *weights)

    # ---------------- pass 2: sparse aggregation (N tiles x owned edge tiles) ----------------
    # per-N-tile contiguous edge-tile ranges (edges are sorted by col)
    bounds = jnp.arange(n_tiles + 1, dtype=jnp.int32) * n_tile
    edge_bounds = jnp.searchsorted(col, bounds).astype(jnp.int32)
    lo, hi = edge_bounds[:-1], edge_bounds[1:]
    estart = (lo // e_tile).astype(jnp.int32)
    eend = ((hi + e_tile - 1) // e_tile).astype(jnp.int32)
    ecount = jnp.where(hi > lo, eend - estart, 0).astype(jnp.int32)
    try:
        max_e_steps = max(int(ecount.max()), 1)
    except (jax.errors.ConcretizationTypeError, jax.errors.TracerIntegerConversionError):
        # TODO(synk): dense fallback when the wrapper itself is jitted (grid must be static)
        max_e_steps = e_tiles_total

    last_tile = e_tiles_total - 1

    def col_map(n, e, estart_ref, ecount_ref):
        return (0, jnp.minimum(estart_ref[n] + e, last_tile))

    def msgs_map(n, e, estart_ref, ecount_ref):
        return (jnp.minimum(estart_ref[n] + e, last_tile), 0)

    def node_map(n, e, estart_ref, ecount_ref):
        return (n, 0)

    out = pl.pallas_call(
        _agg_kernel,
        out_shape=jax.ShapeDtypeStruct((n_pad, 4 * c), f32),
        grid_spec=pltpu.PrefetchScalarGridSpec(
            num_scalar_prefetch=2,
            grid=(n_tiles, max_e_steps),
            in_specs=[pl.BlockSpec((1, e_tile), col_map),        # destination ids
                      pl.BlockSpec((e_tile, 4 * c), msgs_map),   # bf16 message slab
                      pl.BlockSpec((n_tile, 4 * c), node_map)],  # residual slab
            out_specs=pl.BlockSpec((n_tile, 4 * c), node_map),
            scratch_shapes=[pltpu.VMEM((n_tile, 4 * c), f32)]),
        compiler_params=pltpu.CompilerParams(
            dimension_semantics=("parallel", "arbitrary"),
            vmem_limit_bytes=48 * 1024 * 1024),
    )(estart, ecount, col2d, msgs, res)

    out_s = out[:N, :c]                                          # (N, C)
    out_v = out[:N, c:].reshape(N, 3, c)                         # (N, 3, C)
    return out_s, out_v


# ---------------- pure-JAX reference (mirrors the PyTorch MolNet_Layer) ----------------
def reference(scalar, vector, position, edge_index, p):
    N, cin = scalar.shape
    cout = p["wss"].shape[1]
    row, col = edge_index[0], edge_index[1]
    loop = jnp.arange(N, dtype=row.dtype)
    row = jnp.concatenate([row, loop])
    col = jnp.concatenate([col, loop])

    deg = jnp.zeros((N,), jnp.float32).at[col].add(1.0)
    dis = jnp.where(deg > 0, deg ** -0.5, 0.0)
    norm = dis[row] * dis[col]

    si, sj = scalar[col], scalar[row]
    vi, vj = vector[col], vector[row]
    pd = position[col] - position[row]

    s_cat = jnp.concatenate([si, sj], axis=1)
    v_cat = jnp.concatenate([vi, vj], axis=-1)

    # Scalar_Conv
    s_to_s = jax.nn.silu(s_cat @ p["wss"] + p["bss"][0])
    v_to_s = v_cat @ p["wvs"] + p["bvs"][0]
    v_to_s = jax.nn.silu(jnp.sum(v_to_s * pd[:, :, None], axis=1))
    msg_s = norm[:, None] * (jnp.concatenate([s_to_s, v_to_s], axis=1) @ p["wsl"]
                             + p["bsl"][0])
    agg_s = jnp.zeros((N, cout), jnp.float32).at[col].add(msg_s)

    # Vector_Conv
    s_to_v = s_cat @ p["wsv"] + p["bsv"][0]
    s_to_v3 = jnp.tanh(s_to_v[:, None, :] * pd[:, :, None])
    v_to_v = v_cat @ p["wvv"] + p["bvv"][0]
    msg_v = norm[:, None, None] * (
        jnp.concatenate([v_to_v, s_to_v3], axis=-1) @ p["wvl"] + p["bvl"][0])
    agg_v = jnp.zeros((N, 3, cout), jnp.float32).at[col].add(msg_v)

    # MolNet_Layer: activation + residual
    out_s = jax.nn.silu(agg_s) + scalar
    out_v = jnp.tanh(agg_v) + vector
    return out_s, out_v


if __name__ == "__main__":
    key = jax.random.PRNGKey(0)
    N, C, E0 = 80, 16, 300          # in_channels == out_channels (residual)
    ks = jax.random.split(key, 16)

    scalar = jax.random.normal(ks[0], (N, C), jnp.float32)
    vector = jax.random.normal(ks[1], (N, 3, C), jnp.float32)
    position = jax.random.normal(ks[2], (N, 3), jnp.float32)
    row = jax.random.randint(ks[3], (E0,), 0, N, jnp.int32)
    col = jax.random.randint(ks[4], (E0,), 0, N, jnp.int32)
    edge_index = jnp.stack([row, col])
    edge_attr = jnp.ones((E0,), jnp.float32)     # unused (B=False branch)

    def make_linear(k, fan_in, fan_out):
        kw, kb = jax.random.split(k)
        w = jax.random.normal(kw, (fan_in, fan_out), jnp.float32) * 0.2  # (in, out)
        b = jax.random.normal(kb, (1, fan_out), jnp.float32) * 0.1
        return w, b

    names = ["ss", "vs", "sl", "sv", "vv", "vl"]
    fans = [(2 * C, C)] * 6
    params = {}
    for i, (nme, (fi, fo)) in enumerate(zip(names, fans)):
        w, b = make_linear(ks[5 + i], fi, fo)
        params["w" + nme] = w
        params["b" + nme] = b

    # small tiles so the test exercises multi-step (parallel N x sparse E) grids
    out_s, out_v = molnet_layer(scalar, vector, position, edge_index, edge_attr,
                                params, n_tile=32, e_tile=128)
    jax.block_until_ready((out_s, out_v))

    ref_s, ref_v = reference(scalar, vector, position, edge_index, params)
    assert out_s.shape == (N, C) and out_v.shape == (N, 3, C)
    assert jnp.allclose(out_s, ref_s, atol=5e-2, rtol=5e-2), \
        float(jnp.max(jnp.abs(out_s - ref_s)))
    assert jnp.allclose(out_v, ref_v, atol=5e-2, rtol=5e-2), \
        float(jnp.max(jnp.abs(out_v - ref_v)))
    print("KERNEL_OK")
</pallas_src>

<mosaic_0001>
module attributes {stable_mosaic.version = 11 : i64} {
  func.func @_edge_msg_kernel(%arg0: i32, %arg1: memref<128x32xbf16, #tpu.memory_space<vmem>>, %arg2: memref<3x128x32xbf16, #tpu.memory_space<vmem>>, %arg3: memref<128x4xf32, #tpu.memory_space<vmem>>, %arg4: memref<32x32xbf16, #tpu.memory_space<vmem>>, %arg5: memref<1x32xf32, #tpu.memory_space<vmem>>, %arg6: memref<32x32xbf16, #tpu.memory_space<vmem>>, %arg7: memref<1x32xf32, #tpu.memory_space<vmem>>, %arg8: memref<16x16xbf16, #tpu.memory_space<vmem>>, %arg9: memref<16x16xbf16, #tpu.memory_space<vmem>>, %arg10: memref<1x16xf32, #tpu.memory_space<vmem>>, %arg11: memref<16x16xbf16, #tpu.memory_space<vmem>>, %arg12: memref<16x16xbf16, #tpu.memory_space<vmem>>, %arg13: memref<1x16xf32, #tpu.memory_space<vmem>>, %arg14: memref<128x64xbf16, #tpu.memory_space<vmem>>) attributes {dimension_semantics = [#tpu.dimension_semantics<parallel>], iteration_bounds = array<i64: 3>, scalar_prefetch = 0 : i64, scratch_operands = 0 : i64, tpu.core_type = #tpu.core_type<tc>, window_params = [{transform_indices = @transform_0, window_bounds = array<i64: 128, 32>}, {transform_indices = @transform_1, window_bounds = array<i64: 3, 128, 32>}, {transform_indices = @transform_2, window_bounds = array<i64: 128, 4>}, {pipeline_mode = #tpu.pipeline_mode<synchronous>, transform_indices = @transform_3, window_bounds = array<i64: 32, 32>}, {pipeline_mode = #tpu.pipeline_mode<synchronous>, transform_indices = @transform_4, window_bounds = array<i64: 1, 32>}, {pipeline_mode = #tpu.pipeline_mode<synchronous>, transform_indices = @transform_5, window_bounds = array<i64: 32, 32>}, {pipeline_mode = #tpu.pipeline_mode<synchronous>, transform_indices = @transform_6, window_bounds = array<i64: 1, 32>}, {pipeline_mode = #tpu.pipeline_mode<synchronous>, transform_indices = @transform_7, window_bounds = array<i64: 16, 16>}, {pipeline_mode = #tpu.pipeline_mode<synchronous>, transform_indices = @transform_8, window_bounds = array<i64: 16, 16>}, {pipeline_mode = #tpu.pipeline_mode<synchronous>, transform_indices = @transform_9, window_bounds = array<i64: 1, 16>}, {pipeline_mode = #tpu.pipeline_mode<synchronous>, transform_indices = @transform_10, window_bounds = array<i64: 16, 16>}, {pipeline_mode = #tpu.pipeline_mode<synchronous>, transform_indices = @transform_11, window_bounds = array<i64: 16, 16>}, {pipeline_mode = #tpu.pipeline_mode<synchronous>, transform_indices = @transform_12, window_bounds = array<i64: 1, 16>}, {transform_indices = @transform_13, window_bounds = array<i64: 128, 64>}]} {
    %c0 = arith.constant 0 : index
    %c0_0 = arith.constant 0 : index
    %0 = vector.load %arg3[%c0, %c0_0] : memref<128x4xf32, #tpu.memory_space<vmem>>, vector<128x1xf32>
    %c0_1 = arith.constant 0 : index
    %c1 = arith.constant 1 : index
    %1 = vector.load %arg3[%c0_1, %c1] : memref<128x4xf32, #tpu.memory_space<vmem>>, vector<128x1xf32>
    %c0_2 = arith.constant 0 : index
    %c2 = arith.constant 2 : index
    %2 = vector.load %arg3[%c0_2, %c2] : memref<128x4xf32, #tpu.memory_space<vmem>>, vector<128x1xf32>
    %c0_3 = arith.constant 0 : index
    %c3 = arith.constant 3 : index
    %3 = vector.load %arg3[%c0_3, %c3] : memref<128x4xf32, #tpu.memory_space<vmem>>, vector<128x1xf32>
    %c0_4 = arith.constant 0 : index
    %c0_5 = arith.constant 0 : index
    %4 = vector.load %arg1[%c0_4, %c0_5] : memref<128x32xbf16, #tpu.memory_space<vmem>>, vector<128x32xbf16>
    %c0_6 = arith.constant 0 : index
    %c0_7 = arith.constant 0 : index
    %5 = vector.load %arg4[%c0_6, %c0_7] : memref<32x32xbf16, #tpu.memory_space<vmem>>, vector<32x32xbf16>
    %cst = arith.constant dense<0.000000e+00> : vector<128x32xf32>
    %6 = tpu.matmul %4, %5, %cst {dimension_numbers = #tpu.dot_dimension_numbers<[1], [0], [0], [1], [0, 0, 1, 1], [], []>} : vector<128x32xbf16>, vector<32x32xbf16>, vector<128x32xf32> -> vector<128x32xf32>
    %c0_8 = arith.constant 0 : index
    %c0_9 = arith.constant 0 : index
    %7 = vector.load %arg5[%c0_8, %c0_9] : memref<1x32xf32, #tpu.memory_space<vmem>>, vector<1x32xf32>
    %8 = vector.broadcast %7 : vector<1x32xf32> to vector<128x32xf32>
    %9 = arith.addf %6, %8 : vector<128x32xf32>
    %10 = vector.extract_strided_slice %9 {offsets = [0, 0], sizes = [128, 16], strides = [1, 1]} : vector<128x32xf32> to vector<128x16xf32>
    %11 = arith.negf %10 : vector<128x16xf32>
    %12 = math.exp %11 : vector<128x16xf32>
    %cst_10 = arith.constant 1.000000e+00 : f32
    %13 = vector.broadcast %cst_10 : f32 to vector<128x16xf32>
    %14 = arith.addf %13, %12 : vector<128x16xf32>
    %15 = arith.divf %13, %14 : vector<128x16xf32>
    %16 = arith.mulf %10, %15 : vector<128x16xf32>
    %17 = vector.extract_strided_slice %9 {offsets = [0, 16], sizes = [128, 16], strides = [1, 1]} : vector<128x32xf32> to vector<128x16xf32>
    %c0_11 = arith.constant 0 : index
    %c0_12 = arith.constant 0 : index
    %c0_13 = arith.constant 0 : index
    %18 = vector.load %arg2[%c0_11, %c0_12, %c0_13] : memref<3x128x32xbf16, #tpu.memory_space<vmem>>, vector<1x128x32xbf16>
    %19 = vector.shape_cast %18 : vector<1x128x32xbf16> to vector<128x32xbf16>
    %c0_14 = arith.constant 0 : index
    %c0_15 = arith.constant 0 : index
    %20 = vector.load %arg6[%c0_14, %c0_15] : memref<32x32xbf16, #tpu.memory_space<vmem>>, vector<32x32xbf16>
    %cst_16 = arith.constant dense<0.000000e+00> : vector<128x32xf32>
    %21 = tpu.matmul %19, %20, %cst_16 {dimension_numbers = #tpu.dot_dimension_numbers<[1], [0], [0], [1], [0, 0, 1, 1], [], []>} : vector<128x32xbf16>, vector<32x32xbf16>, vector<128x32xf32> -> vector<128x32xf32>
    %c0_17 = arith.constant 0 : index
    %c0_18 = arith.constant 0 : index
    %22 = vector.load %arg7[%c0_17, %c0_18] : memref<1x32xf32, #tpu.memory_space<vmem>>, vector<1x32xf32>
    %23 = vector.broadcast %22 : vector<1x32xf32> to vector<128x32xf32>
    %24 = arith.addf %21, %23 : vector<128x32xf32>
    %c1_19 = arith.constant 1 : index
    %c0_20 = arith.constant 0 : index
    %c0_21 = arith.constant 0 : index
    %25 = vector.load %arg2[%c1_19, %c0_20, %c0_21] : memref<3x128x32xbf16, #tpu.memory_space<vmem>>, vector<1x128x32xbf16>
    %26 = vector.shape_cast %25 : vector<1x128x32xbf16> to vector<128x32xbf16>
    %c0_22 = arith.constant 0 : index
    %c0_23 = arith.constant 0 : index
    %27 = vector.load %arg6[%c0_22, %c0_23] : memref<32x32xbf16, #tpu.memory_space<vmem>>, vector<32x32xbf16>
    %cst_24 = arith.constant dense<0.000000e+00> : vector<128x32xf32>
    %28 = tpu.matmul %26, %27, %cst_24 {dimension_numbers = #tpu.dot_dimension_numbers<[1], [0], [0], [1], [0, 0, 1, 1], [], []>} : vector<128x32xbf16>, vector<32x32xbf16>, vector<128x32xf32> -> vector<128x32xf32>
    %c0_25 = arith.constant 0 : index
    %c0_26 = arith.constant 0 : index
    %29 = vector.load %arg7[%c0_25, %c0_26] : memref<1x32xf32, #tpu.memory_space<vmem>>, vector<1x32xf32>
    %30 = vector.broadcast %29 : vector<1x32xf32> to vector<128x32xf32>
    %31 = arith.addf %28, %30 : vector<128x32xf32>
    %c2_27 = arith.constant 2 : index
    %c0_28 = arith.constant 0 : index
    %c0_29 = arith.constant 0 : index
    %32 = vector.load %arg2[%c2_27, %c0_28, %c0_29] : memref<3x128x32xbf16, #tpu.memory_space<vmem>>, vector<1x128x32xbf16>
    %33 = vector.shape_cast %32 : vector<1x128x32xbf16> to vector<128x32xbf16>
    %c0_30 = arith.constant 0 : index
    %c0_31 = arith.constant 0 : index
    %34 = vector.load %arg6[%c0_30, %c0_31] : memref<32x32xbf16, #tpu.memory_space<vmem>>, vector<32x32xbf16>
    %cst_32 = arith.constant dense<0.000000e+00> : vector<128x32xf32>
    %35 = tpu.matmul %33, %34, %cst_32 {dimension_numbers = #tpu.dot_dimension_numbers<[1], [0], [0], [1], [0, 0, 1, 1], [], []>} : vector<128x32xbf16>, vector<32x32xbf16>, vector<128x32xf32> -> vector<128x32xf32>
    %c0_33 = arith.constant 0 : index
    %c0_34 = arith.constant 0 : index
    %36 = vector.load %arg7[%c0_33, %c0_34] : memref<1x32xf32, #tpu.memory_space<vmem>>, vector<1x32xf32>
    %37 = vector.broadcast %36 : vector<1x32xf32> to vector<128x32xf32>
    %38 = arith.addf %35, %37 : vector<128x32xf32>
    %39 = vector.extract_strided_slice %24 {offsets = [0, 0], sizes = [128, 16], strides = [1, 1]} : vector<128x32xf32> to vector<128x16xf32>
    %40 = vector.broadcast %0 : vector<128x1xf32> to vector<128x16xf32>
    %41 = arith.mulf %39, %40 : vector<128x16xf32>
    %42 = vector.extract_strided_slice %31 {offsets = [0, 0], sizes = [128, 16], strides = [1, 1]} : vector<128x32xf32> to vector<128x16xf32>
    %43 = vector.broadcast %1 : vector<128x1xf32> to vector<128x16xf32>
    %44 = arith.mulf %42, %43 : vector<128x16xf32>
    %45 = arith.addf %41, %44 : vector<128x16xf32>
    %46 = vector.extract_strided_slice %38 {offsets = [0, 0], sizes = [128, 16], strides = [1, 1]} : vector<128x32xf32> to vector<128x16xf32>
    %47 = vector.broadcast %2 : vector<128x1xf32> to vector<128x16xf32>
    %48 = arith.mulf %46, %47 : vector<128x16xf32>
    %49 = arith.addf %45, %48 : vector<128x16xf32>
    %50 = arith.negf %49 : vector<128x16xf32>
    %51 = math.exp %50 : vector<128x16xf32>
    %cst_35 = arith.constant 1.000000e+00 : f32
    %52 = vector.broadcast %cst_35 : f32 to vector<128x16xf32>
    %53 = arith.addf %52, %51 : vector<128x16xf32>
    %54 = arith.divf %52, %53 : vector<128x16xf32>
    %55 = arith.mulf %49, %54 : vector<128x16xf32>
    %56 = arith.truncf %16 : vector<128x16xf32> to vector<128x16xbf16>
    %c0_36 = arith.constant 0 : index
    %c0_37 = arith.constant 0 : index
    %57 = vector.load %arg8[%c0_36, %c0_37] : memref<16x16xbf16, #tpu.memory_space<vmem>>, vector<16x16xbf16>
    %cst_38 = arith.constant dense<0.000000e+00> : vector<128x16xf32>
    %58 = tpu.matmul %56, %57, %cst_38 {dimension_numbers = #tpu.dot_dimension_numbers<[1], [0], [0], [1], [0, 0, 1, 1], [], []>} : vector<128x16xbf16>, vector<16x16xbf16>, vector<128x16xf32> -> vector<128x16xf32>
    %59 = arith.truncf %55 : vector<128x16xf32> to vector<128x16xbf16>
    %c0_39 = arith.constant 0 : index
    %c0_40 = arith.constant 0 : index
    %60 = vector.load %arg9[%c0_39, %c0_40] : memref<16x16xbf16, #tpu.memory_space<vmem>>, vector<16x16xbf16>
    %cst_41 = arith.constant dense<0.000000e+00> : vector<128x16xf32>
    %61 = tpu.matmul %59, %60, %cst_41 {dimension_numbers = #tpu.dot_dimension_numbers<[1], [0], [0], [1], [0, 0, 1, 1], [], []>} : vector<128x16xbf16>, vector<16x16xbf16>, vector<128x16xf32> -> vector<128x16xf32>
    %62 = arith.addf %58, %61 : vector<128x16xf32>
    %c0_42 = arith.constant 0 : index
    %c0_43 = arith.constant 0 : index
    %63 = vector.load %arg10[%c0_42, %c0_43] : memref<1x16xf32, #tpu.memory_space<vmem>>, vector<1x16xf32>
    %64 = vector.broadcast %63 : vector<1x16xf32> to vector<128x16xf32>
    %65 = arith.addf %62, %64 : vector<128x16xf32>
    %66 = vector.broadcast %0 : vector<128x1xf32> to vector<128x16xf32>
    %67 = arith.mulf %17, %66 : vector<128x16xf32>
    %68 = math.tanh %67 : vector<128x16xf32>
    %69 = vector.extract_strided_slice %24 {offsets = [0, 16], sizes = [128, 16], strides = [1, 1]} : vector<128x32xf32> to vector<128x16xf32>
    %70 = arith.truncf %69 : vector<128x16xf32> to vector<128x16xbf16>
    %c0_44 = arith.constant 0 : index
    %c0_45 = arith.constant 0 : index
    %71 = vector.load %arg11[%c0_44, %c0_45] : memref<16x16xbf16, #tpu.memory_space<vmem>>, vector<16x16xbf16>
    %cst_46 = arith.constant dense<0.000000e+00> : vector<128x16xf32>
    %72 = tpu.matmul %70, %71, %cst_46 {dimension_numbers = #tpu.dot_dimension_numbers<[1], [0], [0], [1], [0, 0, 1, 1], [], []>} : vector<128x16xbf16>, vector<16x16xbf16>, vector<128x16xf32> -> vector<128x16xf32>
    %73 = arith.truncf %68 : vector<128x16xf32> to vector<128x16xbf16>
    %c0_47 = arith.constant 0 : index
    %c0_48 = arith.constant 0 : index
    %74 = vector.load %arg12[%c0_47, %c0_48] : memref<16x16xbf16, #tpu.memory_space<vmem>>, vector<16x16xbf16>
    %cst_49 = arith.constant dense<0.000000e+00> : vector<128x16xf32>
    %75 = tpu.matmul %73, %74, %cst_49 {dimension_numbers = #tpu.dot_dimension_numbers<[1], [0], [0], [1], [0, 0, 1, 1], [], []>} : vector<128x16xbf16>, vector<16x16xbf16>, vector<128x16xf32> -> vector<128x16xf32>
    %76 = arith.addf %72, %75 : vector<128x16xf32>
    %c0_50 = arith.constant 0 : index
    %c0_51 = arith.constant 0 : index
    %77 = vector.load %arg13[%c0_50, %c0_51] : memref<1x16xf32, #tpu.memory_space<vmem>>, vector<1x16xf32>
    %78 = vector.broadcast %77 : vector<1x16xf32> to vector<128x16xf32>
    %79 = arith.addf %76, %78 : vector<128x16xf32>
    %80 = vector.broadcast %1 : vector<128x1xf32> to vector<128x16xf32>
    %81 = arith.mulf %17, %80 : vector<128x16xf32>
    %82 = math.tanh %81 : vector<128x16xf32>
    %83 = vector.extract_strided_slice %31 {offsets = [0, 16], sizes = [128, 16], strides = [1, 1]} : vector<128x32xf32> to vector<128x16xf32>
    %84 = arith.truncf %83 : vector<128x16xf32> to vector<128x16xbf16>
    %c0_52 = arith.constant 0 : index
    %c0_53 = arith.constant 0 : index
    %85 = vector.load %arg11[%c0_52, %c0_53] : memref<16x16xbf16, #tpu.memory_space<vmem>>, vector<16x16xbf16>
    %cst_54 = arith.constant dense<0.000000e+00> : vector<128x16xf32>
    %86 = tpu.matmul %84, %85, %cst_54 {dimension_numbers = #tpu.dot_dimension_numbers<[1], [0], [0], [1], [0, 0, 1, 1], [], []>} : vector<128x16xbf16>, vector<16x16xbf16>, vector<128x16xf32> -> vector<128x16xf32>
    %87 = arith.truncf %82 : vector<128x16xf32> to vector<128x16xbf16>
    %c0_55 = arith.constant 0 : index
    %c0_56 = arith.constant 0 : index
    %88 = vector.load %arg12[%c0_55, %c0_56] : memref<16x16xbf16, #tpu.memory_space<vmem>>, vector<16x16xbf16>
    %cst_57 = arith.constant dense<0.000000e+00> : vector<128x16xf32>
    %89 = tpu.matmul %87, %88, %cst_57 {dimension_numbers = #tpu.dot_dimension_numbers<[1], [0], [0], [1], [0, 0, 1, 1], [], []>} : vector<128x16xbf16>, vector<16x16xbf16>, vector<128x16xf32> -> vector<128x16xf32>
    %90 = arith.addf %86, %89 : vector<128x16xf32>
    %c0_58 = arith.constant 0 : index
    %c0_59 = arith.constant 0 : index
    %91 = vector.load %arg13[%c0_58, %c0_59] : memref<1x16xf32, #tpu.memory_space<vmem>>, vector<1x16xf32>
    %92 = vector.broadcast %91 : vector<1x16xf32> to vector<128x16xf32>
    %93 = arith.addf %90, %92 : vector<128x16xf32>
    %94 = vector.broadcast %2 : vector<128x1xf32> to vector<128x16xf32>
    %95 = arith.mulf %17, %94 : vector<128x16xf32>
    %96 = math.tanh %95 : vector<128x16xf32>
    %97 = vector.extract_strided_slice %38 {offsets = [0, 16], sizes = [128, 16], strides = [1, 1]} : vector<128x32xf32> to vector<128x16xf32>
    %98 = arith.truncf %97 : vector<128x16xf32> to vector<128x16xbf16>
    %c0_60 = arith.constant 0 : index
    %c0_61 = arith.constant 0 : index
    %99 = vector.load %arg11[%c0_60, %c0_61] : memref<16x16xbf16, #tpu.memory_space<vmem>>, vector<16x16xbf16>
    %cst_62 = arith.constant dense<0.000000e+00> : vector<128x16xf32>
    %100 = tpu.matmul %98, %99, %cst_62 {dimension_numbers = #tpu.dot_dimension_numbers<[1], [0], [0], [1], [0, 0, 1, 1], [], []>} : vector<128x16xbf16>, vector<16x16xbf16>, vector<128x16xf32> -> vector<128x16xf32>
    %101 = arith.truncf %96 : vector<128x16xf32> to vector<128x16xbf16>
    %c0_63 = arith.constant 0 : index
    %c0_64 = arith.constant 0 : index
    %102 = vector.load %arg12[%c0_63, %c0_64] : memref<16x16xbf16, #tpu.memory_space<vmem>>, vector<16x16xbf16>
    %cst_65 = arith.constant dense<0.000000e+00> : vector<128x16xf32>
    %103 = tpu.matmul %101, %102, %cst_65 {dimension_numbers = #tpu.dot_dimension_numbers<[1], [0], [0], [1], [0, 0, 1, 1], [], []>} : vector<128x16xbf16>, vector<16x16xbf16>, vector<128x16xf32> -> vector<128x16xf32>
    %104 = arith.addf %100, %103 : vector<128x16xf32>
    %c0_66 = arith.constant 0 : index
    %c0_67 = arith.constant 0 : index
    %105 = vector.load %arg13[%c0_66, %c0_67] : memref<1x16xf32, #tpu.memory_space<vmem>>, vector<1x16xf32>
    %106 = vector.broadcast %105 : vector<1x16xf32> to vector<128x16xf32>
    %107 = arith.addf %104, %106 : vector<128x16xf32>
    %108 = tpu.concatenate %65, %79, %93, %107 in 1 : vector<128x16xf32>, vector<128x16xf32>, vector<128x16xf32>, vector<128x16xf32> -> vector<128x64xf32>
    %109 = vector.broadcast %3 : vector<128x1xf32> to vector<128x64xf32>
    %110 = arith.mulf %108, %109 : vector<128x64xf32>
    %111 = arith.truncf %110 : vector<128x64xf32> to vector<128x64xbf16>
    %c0_68 = arith.constant 0 : index
    %c0_69 = arith.constant 0 : index
    %112 = vector.load %arg14[%c0_68, %c0_69] : memref<128x64xbf16, #tpu.memory_space<vmem>>, vector<128x64xbf16>
    tpu.vector_store %arg14[%c0_68, %c0_69], %111 {strides = array<i32>} : memref<128x64xbf16, #tpu.memory_space<vmem>>, vector<128x64xbf16>,
    return
  }
  func.func @transform_0(%arg0: i32) -> (i32, i32) {
    %c0_i32 = arith.constant 0 : i32
    %c0_i32_0 = arith.constant 0 : i32
    return %arg0, %c0_i32 : i32, i32
  }
  func.func @transform_1(%arg0: i32) -> (i32, i32, i32) {
    %c0_i32 = arith.constant 0 : i32
    %c0_i32_0 = arith.constant 0 : i32
    %c0_i32_1 = arith.constant 0 : i32
    return %c0_i32, %arg0, %c0_i32_0 : i32, i32, i32
  }
  func.func @transform_2(%arg0: i32) -> (i32, i32) {
    %c0_i32 = arith.constant 0 : i32
    %c0_i32_0 = arith.constant 0 : i32
    return %arg0, %c0_i32 : i32, i32
  }
  func.func @transform_3(%arg0: i32) -> (i32, i32) {
    %c0_i32 = arith.constant 0 : i32
    %c0_i32_0 = arith.constant 0 : i32
    %c0_i32_1 = arith.constant 0 : i32
    return %c0_i32, %c0_i32_0 : i32, i32
  }
  func.func @transform_4(%arg0: i32) -> (i32, i32) {
    %c0_i32 = arith.constant 0 : i32
    %c0_i32_0 = arith.constant 0 : i32
    %c0_i32_1 = arith.constant 0 : i32
    return %c0_i32, %c0_i32_0 : i32, i32
  }
  func.func @transform_5(%arg0: i32) -> (i32, i32) {
    %c0_i32 = arith.constant 0 : i32
    %c0_i32_0 = arith.constant 0 : i32
    %c0_i32_1 = arith.constant 0 : i32
    return %c0_i32, %c0_i32_0 : i32, i32
  }
  func.func @transform_6(%arg0: i32) -> (i32, i32) {
    %c0_i32 = arith.constant 0 : i32
    %c0_i32_0 = arith.constant 0 : i32
    %c0_i32_1 = arith.constant 0 : i32
    return %c0_i32, %c0_i32_0 : i32, i32
  }
  func.func @transform_7(%arg0: i32) -> (i32, i32) {
    %c0_i32 = arith.constant 0 : i32
    %c0_i32_0 = arith.constant 0 : i32
    %c0_i32_1 = arith.constant 0 : i32
    return %c0_i32, %c0_i32_0 : i32, i32
  }
  func.func @transform_8(%arg0: i32) -> (i32, i32) {
    %c0_i32 = arith.constant 0 : i32
    %c0_i32_0 = arith.constant 0 : i32
    %c0_i32_1 = arith.constant 0 : i32
    return %c0_i32, %c0_i32_0 : i32, i32
  }
  func.func @transform_9(%arg0: i32) -> (i32, i32) {
    %c0_i32 = arith.constant 0 : i32
    %c0_i32_0 = arith.constant 0 : i32
    %c0_i32_1 = arith.constant 0 : i32
    return %c0_i32, %c0_i32_0 : i32, i32
  }
  func.func @transform_10(%arg0: i32) -> (i32, i32) {
    %c0_i32 = arith.constant 0 : i32
    %c0_i32_0 = arith.constant 0 : i32
    %c0_i32_1 = arith.constant 0 : i32
    return %c0_i32, %c0_i32_0 : i32, i32
  }
  func.func @transform_11(%arg0: i32) -> (i32, i32) {
    %c0_i32 = arith.constant 0 : i32
    %c0_i32_0 = arith.constant 0 : i32
    %c0_i32_1 = arith.constant 0 : i32
    return %c0_i32, %c0_i32_0 : i32, i32
  }
  func.func @transform_12(%arg0: i32) -> (i32, i32) {
    %c0_i32 = arith.constant 0 : i32
    %c0_i32_0 = arith.constant 0 : i32
    %c0_i32_1 = arith.constant 0 : i32
    return %c0_i32, %c0_i32_0 : i32, i32
  }
  func.func @transform_13(%arg0: i32) -> (i32, i32) {
    %c0_i32 = arith.constant 0 : i32
    %c0_i32_0 = arith.constant 0 : i32
    return %arg0, %c0_i32 : i32, i32
  }
}

</mosaic_0001>

<llo_original>
// kernel: tpu_custom_call.1
$region0: #{tpu_custom_call.1}
  #allocation0 [shape = 'u32[]', space=smem, size = 0x4, offset = 0x4, fixed_abs, tag = 'smem constant byte address 0x4 - core index']
  #allocation1 [shape = 'u32[144,128]{1,0:T(1,128)}', space=vmem, size = 0x12000, scoped, tag = 'internal scratch']
  %s0 = inlined_call_operand.vmem [shape: bf16[384,32], index: 0, kind: input, shape index: {}]
  %s1 = inlined_call_operand.vmem [shape: bf16[3,384,32], index: 1, kind: input, shape index: {}]
  %s2 = inlined_call_operand.vmem [shape: f32[384,4], index: 2, kind: input, shape index: {}]
  %s3 = inlined_call_operand.vmem [shape: bf16[32,32], index: 3, kind: input, shape index: {}]
  %s4 = inlined_call_operand.vmem [shape: f32[1,32], index: 4, kind: input, shape index: {}]
  %s5 = inlined_call_operand.vmem [shape: bf16[32,32], index: 5, kind: input, shape index: {}]
  %s6 = inlined_call_operand.vmem [shape: f32[1,32], index: 6, kind: input, shape index: {}]
  %s7 = inlined_call_operand.vmem [shape: bf16[16,16], index: 7, kind: input, shape index: {}]
  %s8 = inlined_call_operand.vmem [shape: bf16[16,16], index: 8, kind: input, shape index: {}]
  %s9 = inlined_call_operand.vmem [shape: f32[1,16], index: 9, kind: input, shape index: {}]
  %s10 = inlined_call_operand.vmem [shape: bf16[16,16], index: 10, kind: input, shape index: {}]
  %s11 = inlined_call_operand.vmem [shape: bf16[16,16], index: 11, kind: input, shape index: {}]
  %s12 = inlined_call_operand.vmem [shape: f32[1,16], index: 12, kind: input, shape index: {}]
  %s13 = inlined_call_operand.vmem [shape: bf16[384,64], index: 13, kind: output, shape index: {}]
  %s14 = sld [smem:[#allocation0]]
  $region126: #{tpu_custom_call.1} parent=0
    _
  %s16 = ssub.s32 1, %s14
  %s17 = scalar_select 0, %s16, %s14
  $region1: #{tpu_custom_call.1} parent=0
    #allocation2 [shape = 'u8[196608]{0}', space=vmem, size = 0x30000, scoped, tag = 'input window, operand 1']
    loop: start=0, step=1, limit=5
    $region2: #{tpu_custom_call.1} parent=1 // loop_pre_header
      _
    $region3: #{tpu_custom_call.1} parent=1 // loop_header
      %s19 = sphi 0, %s23
      %p20 = scmp.ge.s32.totalorder %s19, 5
      %s29 = sphi 0, %s31
      %s32 = sphi 0, %s29
      %s33 = sphi 0, %s32
      %s49 = sphi 0, %s33
      %s55 = sphi 0, %s57
      %s58 = sphi 0, %s55
      %s59 = sphi 0, %s58
      %s75 = sphi 0, %s59
      %s81 = sphi 0, %s83
      %s84 = sphi 0, %s81
      %s85 = sphi 0, %s84
      %s101 = sphi 0, %s85
      %s105 = sphi 0, %s105
      %s107 = sphi 0, %s105
      %s108 = sphi 0, %s107
      %s122 = sphi 0, %s108
      %s126 = sphi 0, %s126
      %s128 = sphi 0, %s126
      %s129 = sphi 0, %s128
      %s143 = sphi 0, %s129
      %s147 = sphi 0, %s147
      %s149 = sphi 0, %s147
      %s150 = sphi 0, %s149
      %s164 = sphi 0, %s150
      %s168 = sphi 0, %s168
      %s170 = sphi 0, %s168
      %s171 = sphi 0, %s170
      %s185 = sphi 0, %s171
      %s189 = sphi 0, %s189
      %s191 = sphi 0, %s189
      %s192 = sphi 0, %s191
      %s206 = sphi 0, %s192
      %s210 = sphi 0, %s210
      %s212 = sphi 0, %s210
      %s213 = sphi 0, %s212
      %s227 = sphi 0, %s213
      %s231 = sphi 0, %s231
      %s233 = sphi 0, %s231
      %s234 = sphi 0, %s233
      %s248 = sphi 0, %s234
      %s252 = sphi 0, %s252
      %s254 = sphi 0, %s252
      %s255 = sphi 0, %s254
      %s269 = sphi 0, %s255
      %s273 = sphi 0, %s273
      %s275 = sphi 0, %s273
      %s276 = sphi 0, %s275
      %s290 = sphi 0, %s276
      %s294 = sphi 0, %s294
      %s296 = sphi 0, %s294
      %s297 = sphi 0, %s296
      %s311 = sphi 0, %s297
      %s317 = sphi 0, %s319
      %s320 = sphi 0, %s317
      %s321 = sphi 0, %s320
      %s337 = sphi 0, %s321
    $region4: #{tpu_custom_call.1} parent=1 // loop_header_branch
      %22 = sbr.rel (%p20) target = $region8
    $region5: #{tpu_custom_call.1} parent=1 // loop_body
      %s24 = ssub.s32 %s19, 1
      %s25 = ssub.s32 %s19, 2
      %s26 = sadd.s32 %s19, 1
      %s27 = ssub.s32 %s19, %s26
      %p28 = scmp.eq.s32.totalorder %s27, 0
      %s30 = sadd.s32 %s29, 1
      %s31 = scalar_select %p28, %s29, %s30
      %p34 = pneg %p28
      %p35 = scmp.eq.s32.totalorder %s19, 2
      %p36 = por %p34, %p35
      %p37 = scmp.ne.s32.totalorder %s29, %s32
      %p38 = scmp.eq.s32.totalorder %s19, 0
      %p39 = por %p37, %p38
      %p40 = scmp.ne.s32.totalorder %s29, %s32
      %p41 = scmp.eq.s32.totalorder %s24, 2
      %p42 = por %p40, %p41
      %p43 = scmp.ne.s32.totalorder %s32, %s33
      %p44 = scmp.eq.s32.totalorder %s24, 0
      %p45 = por %p43, %p44
      %p46 = scmp.ne.s32.totalorder %s32, %s33
      %p47 = scmp.eq.s32.totalorder %s25, 2
      %p48 = por %p46, %p47
      %p50 = scmp.ne.s32.totalorder %s33, %s49
      %p51 = scmp.eq.s32.totalorder %s25, 0
      %p52 = por %p50, %p51
      %s53 = ssub.s32 %s19, %s26
      %p54 = scmp.eq.s32.totalorder %s53, 0
      %s56 = sadd.s32 %s55, 1
      %s57 = scalar_select %p54, %s55, %s56
      %p60 = pneg %p54
      %p61 = scmp.eq.s32.totalorder %s19, 2
      %p62 = por %p60, %p61
      %p63 = scmp.ne.s32.totalorder %s55, %s58
      %p64 = scmp.eq.s32.totalorder %s19, 0
      %p65 = por %p63, %p64
      %p66 = scmp.ne.s32.totalorder %s55, %s58
      %p67 = scmp.eq.s32.totalorder %s24, 2
      %p68 = por %p66, %p67
      %p69 = scmp.ne.s32.totalorder %s58, %s59
      %p70 = scmp.eq.s32.totalorder %s24, 0
      %p71 = por %p69, %p70
      %p72 = scmp.ne.s32.totalorder %s58, %s59
      %p73 = scmp.eq.s32.totalorder %s25, 2
      %p74 = por %p72, %p73
      %p76 = scmp.ne.s32.totalorder %s59, %s75
      %p77 = scmp.eq.s32.totalorder %s25, 0
      %p78 = por %p76, %p77
      %s79 = ssub.s32 %s19, %s26
      %p80 = scmp.eq.s32.totalorder %s79, 0
      %s82 = sadd.s32 %s81, 1
      %s83 = scalar_select %p80, %s81, %s82
      %p86 = pneg %p80
      %p87 = scmp.eq.s32.totalorder %s19, 2
      %p88 = por %p86, %p87
      %p89 = scmp.ne.s32.totalorder %s81, %s84
      %p90 = scmp.eq.s32.totalorder %s19, 0
      %p91 = por %p89, %p90
      %p92 = scmp.ne.s32.totalorder %s81, %s84
      %p93 = scmp.eq.s32.totalorder %s24, 2
      %p94 = por %p92, %p93
      %p95 = scmp.ne.s32.totalorder %s84, %s85
      %p96 = scmp.eq.s32.totalorder %s24, 0
      %p97 = por %p95, %p96
      %p98 = scmp.ne.s32.totalorder %s84, %s85
      %p99 = scmp.eq.s32.totalorder %s25, 2
      %p100 = por %p98, %p99
      %p102 = scmp.ne.s32.totalorder %s85, %s101
      %p103 = scmp.eq.s32.totalorder %s25, 0
      %p104 = por %p102, %p103
      %s106 = sadd.s32 %s105, 1
      %p109 = scmp.eq.s32.totalorder %s19, 2
      %p110 = scmp.ne.s32.totalorder %s105, %s107
      %p111 = scmp.eq.s32.totalorder %s19, 0
      %p112 = por %p110, %p111
      %p113 = scmp.ne.s32.totalorder %s105, %s107
      %p114 = scmp.eq.s32.totalorder %s24, 2
      %p115 = por %p113, %p114
      %p116 = scmp.ne.s32.totalorder %s107, %s108
      %p117 = scmp.eq.s32.totalorder %s24, 0
      %p118 = por %p116, %p117
      %p119 = scmp.ne.s32.totalorder %s107, %s108
      %p120 = scmp.eq.s32.totalorder %s25, 2
      %p121 = por %p119, %p120
      %p123 = scmp.ne.s32.totalorder %s108, %s122
      %p124 = scmp.eq.s32.totalorder %s25, 0
      %p125 = por %p123, %p124
      %s127 = sadd.s32 %s126, 1
      %p130 = scmp.eq.s32.totalorder %s19, 2
      %p131 = scmp.ne.s32.totalorder %s126, %s128
      %p132 = scmp.eq.s32.totalorder %s19, 0
      %p133 = por %p131, %p132
      %p134 = scmp.ne.s32.totalorder %s126, %s128
      %p135 = scmp.eq.s32.totalorder %s24, 2
      %p136 = por %p134, %p135
      %p137 = scmp.ne.s32.totalorder %s128, %s129
      %p138 = scmp.eq.s32.totalorder %s24, 0
      %p139 = por %p137, %p138
      %p140 = scmp.ne.s32.totalorder %s128, %s129
      %p141 = scmp.eq.s32.totalorder %s25, 2
      %p142 = por %p140, %p141
      %p144 = scmp.ne.s32.totalorder %s129, %s143
      %p145 = scmp.eq.s32.totalorder %s25, 0
      %p146 = por %p144, %p145
      %s148 = sadd.s32 %s147, 1
      %p151 = scmp.eq.s32.totalorder %s19, 2
      %p152 = scmp.ne.s32.totalorder %s147, %s149
      %p153 = scmp.eq.s32.totalorder %s19, 0
      %p154 = por %p152, %p153
      %p155 = scmp.ne.s32.totalorder %s147, %s149
      %p156 = scmp.eq.s32.totalorder %s24, 2
      %p157 = por %p155, %p156
      %p158 = scmp.ne.s32.totalorder %s149, %s150
      %p159 = scmp.eq.s32.totalorder %s24, 0
      %p160 = por %p158, %p159
      %p161 = scmp.ne.s32.totalorder %s149, %s150
      %p162 = scmp.eq.s32.totalorder %s25, 2
      %p163 = por %p161, %p162
      %p165 = scmp.ne.s32.totalorder %s150, %s164
      %p166 = scmp.eq.s32.totalorder %s25, 0
      %p167 = por %p165, %p166
      %s169 = sadd.s32 %s168, 1
      %p172 = scmp.eq.s32.totalorder %s19, 2
      %p173 = scmp.ne.s32.totalorder %s168, %s170
      %p174 = scmp.eq.s32.totalorder %s19, 0
      %p175 = por %p173, %p174
      %p176 = scmp.ne.s32.totalorder %s168, %s170
      %p177 = scmp.eq.s32.totalorder %s24, 2
      %p178 = por %p176, %p177
      %p179 = scmp.ne.s32.totalorder %s170, %s171
      %p180 = scmp.eq.s32.totalorder %s24, 0
      %p181 = por %p179, %p180
      %p182 = scmp.ne.s32.totalorder %s170, %s171
      %p183 = scmp.eq.s32.totalorder %s25, 2
      %p184 = por %p182, %p183
      %p186 = scmp.ne.s32.totalorder %s171, %s185
      %p187 = scmp.eq.s32.totalorder %s25, 0
      %p188 = por %p186, %p187
      %s190 = sadd.s32 %s189, 1
      %p193 = scmp.eq.s32.totalorder %s19, 2
      %p194 = scmp.ne.s32.totalorder %s189, %s191
      %p195 = scmp.eq.s32.totalorder %s19, 0
      %p196 = por %p194, %p195
      %p197 = scmp.ne.s32.totalorder %s189, %s191
      %p198 = scmp.eq.s32.totalorder %s24, 2
      %p199 = por %p197, %p198
      %p200 = scmp.ne.s32.totalorder %s191, %s192
      %p201 = scmp.eq.s32.totalorder %s24, 0
      %p202 = por %p200, %p201
      %p203 = scmp.ne.s32.totalorder %s191, %s192
      %p204 = scmp.eq.s32.totalorder %s25, 2
      %p205 = por %p203, %p204
      %p207 = scmp.ne.s32.totalorder %s192, %s206
      %p208 = scmp.eq.s32.totalorder %s25, 0
      %p209 = por %p207, %p208
      %s211 = sadd.s32 %s210, 1
      %p214 = scmp.eq.s32.totalorder %s19, 2
      %p215 = scmp.ne.s32.totalorder %s210, %s212
      %p216 = scmp.eq.s32.totalorder %s19, 0
      %p217 = por %p215, %p216
      %p218 = scmp.ne.s32.totalorder %s210, %s212
      %p219 = scmp.eq.s32.totalorder %s24, 2
      %p220 = por %p218, %p219
      %p221 = scmp.ne.s32.totalorder %s212, %s213
      %p222 = scmp.eq.s32.totalorder %s24, 0
      %p223 = por %p221, %p222
      %p224 = scmp.ne.s32.totalorder %s212, %s213
      %p225 = scmp.eq.s32.totalorder %s25, 2
      %p226 = por %p224, %p225
      %p228 = scmp.ne.s32.totalorder %s213, %s227
      %p229 = scmp.eq.s32.totalorder %s25, 0
      %p230 = por %p228, %p229
      %s232 = sadd.s32 %s231, 1
      %p235 = scmp.eq.s32.totalorder %s19, 2
      %p236 = scmp.ne.s32.totalorder %s231, %s233
      %p237 = scmp.eq.s32.totalorder %s19, 0
      %p238 = por %p236, %p237
      %p239 = scmp.ne.s32.totalorder %s231, %s233
      %p240 = scmp.eq.s32.totalorder %s24, 2
      %p241 = por %p239, %p240
      %p242 = scmp.ne.s32.totalorder %s233, %s234
      %p243 = scmp.eq.s32.totalorder %s24, 0
      %p244 = por %p242, %p243
      %p245 = scmp.ne.s32.totalorder %s233, %s234
      %p246 = scmp.eq.s32.totalorder %s25, 2
      %p247 = por %p245, %p246
      %p249 = scmp.ne.s32.totalorder %s234, %s248
      %p250 = scmp.eq.s32.totalorder %s25, 0
      %p251 = por %p249, %p250
      %s253 = sadd.s32 %s252, 1
      %p256 = scmp.eq.s32.totalorder %s19, 2
      %p257 = scmp.ne.s32.totalorder %s252, %s254
      %p258 = scmp.eq.s32.totalorder %s19, 0
      %p259 = por %p257, %p258
      %p260 = scmp.ne.s32.totalorder %s252, %s254
      %p261 = scmp.eq.s32.totalorder %s24, 2
      %p262 = por %p260, %p261
      %p263 = scmp.ne.s32.totalorder %s254, %s255
      %p264 = scmp.eq.s32.totalorder %s24, 0
      %p265 = por %p263, %p264
      %p266 = scmp.ne.s32.totalorder %s254, %s255
      %p267 = scmp.eq.s32.totalorder %s25, 2
      %p268 = por %p266, %p267
      %p270 = scmp.ne.s32.totalorder %s255, %s269
      %p271 = scmp.eq.s32.totalorder %s25, 0
      %p272 = por %p270, %p271
      %s274 = sadd.s32 %s273, 1
      %p277 = scmp.eq.s32.totalorder %s19, 2
      %p278 = scmp.ne.s32.totalorder %s273, %s275
      %p279 = scmp.eq.s32.totalorder %s19, 0
      %p280 = por %p278, %p279
      %p281 = scmp.ne.s32.totalorder %s273, %s275
      %p282 = scmp.eq.s32.totalorder %s24, 2
      %p283 = por %p281, %p282
      %p284 = scmp.ne.s32.totalorder %s275, %s276
      %p285 = scmp.eq.s32.totalorder %s24, 0
      %p286 = por %p284, %p285
      %p287 = scmp.ne.s32.totalorder %s275, %s276
      %p288 = scmp.eq.s32.totalorder %s25, 2
      %p289 = por %p287, %p288
      %p291 = scmp.ne.s32.totalorder %s276, %s290
      %p292 = scmp.eq.s32.totalorder %s25, 0
      %p293 = por %p291, %p292
      %s295 = sadd.s32 %s294, 1
      %p298 = scmp.eq.s32.totalorder %s19, 2
      %p299 = scmp.ne.s32.totalorder %s294, %s296
      %p300 = scmp.eq.s32.totalorder %s19, 0
      %p301 = por %p299, %p300
      %p302 = scmp.ne.s32.totalorder %s294, %s296
      %p303 = scmp.eq.s32.totalorder %s24, 2
      %p304 = por %p302, %p303
      %p305 = scmp.ne.s32.totalorder %s296, %s297
      %p306 = scmp.eq.s32.totalorder %s24, 0
      %p307 = por %p305, %p306
      %p308 = scmp.ne.s32.totalorder %s296, %s297
      %p309 = scmp.eq.s32.totalorder %s25, 2
      %p310 = por %p308, %p309
      %p312 = scmp.ne.s32.totalorder %s297, %s311
      %p313 = scmp.eq.s32.totalorder %s25, 0
      %p314 = por %p312, %p313
      %s315 = ssub.s32 %s19, %s26
      %p316 = scmp.eq.s32.totalorder %s315, 0
      %s318 = sadd.s32 %s317, 1
      %s319 = scalar_select %p316, %s317, %s318
      %p322 = pneg %p316
      %p323 = scmp.eq.s32.totalorder %s19, 2
      %p324 = por %p322, %p323
      %p325 = scmp.ne.s32.totalorder %s317, %s320
      %p326 = scmp.eq.s32.totalorder %s19, 0
      %p327 = por %p325, %p326
      %p328 = scmp.ne.s32.totalorder %s317, %s320
      %p329 = scmp.eq.s32.totalorder %s24, 2
      %p330 = por %p328, %p329
      %p331 = scmp.ne.s32.totalorder %s320, %s321
      %p332 = scmp.eq.s32.totalorder %s24, 0
      %p333 = por %p331, %p332
      %p334 = scmp.ne.s32.totalorder %s320, %s321
      %p335 = scmp.eq.s32.totalorder %s25, 2
      %p336 = por %p334, %p335
      %p338 = scmp.ne.s32.totalorder %s321, %s337
      %p339 = scmp.eq.s32.totalorder %s25, 0
      %p340 = por %p338, %p339
      %p341 = scmp.le.s32.totalorder 1, %s19
      %p342 = scmp.lt.s32.totalorder %s19, 4
      %p343 = pnand %p341, %p342
      %p344 = pneg %p343
      // Predicated region
      $region9: #{tpu_custom_call.1} parent=5 // pred_check
        _
      $region10: #{tpu_custom_call.1} parent=5 // pred_check_branch
        %346 = sbr.rel (%p343) target = $region12
      $region11: #{tpu_custom_call.1} parent=5 // pred_region
        %s347 = ssub.s32 %s19, 1
        // Predicated region
        $region13: #{tpu_custom_call.1} parent=11 // pred_check
          %p348 = pneg %p118
        $region14: #{tpu_custom_call.1} parent=11 // pred_check_branch
          %350 = sbr.rel (%p348) target = $region16
        $region15: #{tpu_custom_call.1} parent=11 // pred_region
          _
        $region16: #{tpu_custom_call.1} parent=11 // pred_fallthru
          _
        // Predicated region
        $region17: #{tpu_custom_call.1} parent=11 // pred_check
          %p351 = pneg %p139
        $region18: #{tpu_custom_call.1} parent=11 // pred_check_branch
          %353 = sbr.rel (%p351) target = $region20
        $region19: #{tpu_custom_call.1} parent=11 // pred_region
          _
        $region20: #{tpu_custom_call.1} parent=11 // pred_fallthru
          _
        // Predicated region
        $region21: #{tpu_custom_call.1} parent=11 // pred_check
          %p354 = pneg %p160
        $region22: #{tpu_custom_call.1} parent=11 // pred_check_branch
          %356 = sbr.rel (%p354) target = $region24
        $region23: #{tpu_custom_call.1} parent=11 // pred_region
          _
        $region24: #{tpu_custom_call.1} parent=11 // pred_fallthru
          _
        // Predicated region
        $region25: #{tpu_custom_call.1} parent=11 // pred_check
          %p357 = pneg %p181
        $region26: #{tpu_custom_call.1} parent=11 // pred_check_branch
          %359 = sbr.rel (%p357) target = $region28
        $region27: #{tpu_custom_call.1} parent=11 // pred_region
          _
        $region28: #{tpu_custom_call.1} parent=11 // pred_fallthru
          _
        // Predicated region
        $region29: #{tpu_custom_call.1} parent=11 // pred_check
          %p360 = pneg %p202
        $region30: #{tpu_custom_call.1} parent=11 // pred_check_branch
          %362 = sbr.rel (%p360) target = $region32
        $region31: #{tpu_custom_call.1} parent=11 // pred_region
          _
        $region32: #{tpu_custom_call.1} parent=11 // pred_fallthru
          _
        // Predicated region
        $region33: #{tpu_custom_call.1} parent=11 // pred_check
          %p363 = pneg %p223
        $region34: #{tpu_custom_call.1} parent=11 // pred_check_branch
          %365 = sbr.rel (%p363) target = $region36
        $region35: #{tpu_custom_call.1} parent=11 // pred_region
          _
        $region36: #{tpu_custom_call.1} parent=11 // pred_fallthru
          _
        // Predicated region
        $region37: #{tpu_custom_call.1} parent=11 // pred_check
          %p366 = pneg %p244
        $region38: #{tpu_custom_call.1} parent=11 // pred_check_branch
          %368 = sbr.rel (%p366) target = $region40
        $region39: #{tpu_custom_call.1} parent=11 // pred_region
          _
        $region40: #{tpu_custom_call.1} parent=11 // pred_fallthru
          _
        // Predicated region
        $region41: #{tpu_custom_call.1} parent=11 // pred_check
          %p369 = pneg %p265
        $region42: #{tpu_custom_call.1} parent=11 // pred_check_branch
          %371 = sbr.rel (%p369) target = $region44
        $region43: #{tpu_custom_call.1} parent=11 // pred_region
          _
        $region44: #{tpu_custom_call.1} parent=11 // pred_fallthru
          _
        // Predicated region
        $region45: #{tpu_custom_call.1} parent=11 // pred_check
          %p372 = pneg %p286
        $region46: #{tpu_custom_call.1} parent=11 // pred_check_branch
          %374 = sbr.rel (%p372) target = $region48
        $region47: #{tpu_custom_call.1} parent=11 // pred_region
          _
        $region48: #{tpu_custom_call.1} parent=11 // pred_fallthru
          _
        // Predicated region
        $region49: #{tpu_custom_call.1} parent=11 // pred_check
          %p375 = pneg %p307
        $region50: #{tpu_custom_call.1} parent=11 // pred_check_branch
          %377 = sbr.rel (%p375) target = $region52
        $region51: #{tpu_custom_call.1} parent=11 // pred_region
          _
        $region52: #{tpu_custom_call.1} parent=11 // pred_fallthru
          _
      $region12: #{tpu_custom_call.1} parent=5 // pred_fallthru
        _
      %p378 = scmp.lt.s32.totalorder %s19, 3
      // Predicated region
      $region53: #{tpu_custom_call.1} parent=5 // pred_check
        %p379 = pneg %p378
      $region54: #{tpu_custom_call.1} parent=5 // pred_check_branch
        %381 = sbr.rel (%p379) target = $region56
      $region55: #{tpu_custom_call.1} parent=5 // pred_region
        // Predicated region
        $region57: #{tpu_custom_call.1} parent=55 // pred_check
          %p382 = pneg %p39
        $region58: #{tpu_custom_call.1} parent=55 // pred_check_branch
          %384 = sbr.rel (%p382) target = $region60
        $region59: #{tpu_custom_call.1} parent=55 // pred_region
          %s385 = smul.u32 16, %s19
          %p386 = scmp.lt.s32.totalorder %s385, 47
          %s387 = scalar_select %p386, %s385, 47
          %s388 = smul.addr %s387, 4
          %s389 = scalar_lea.vmem %s0, %s388
          %s390 = smul.u32 16, %s19
        $region60: #{tpu_custom_call.1} parent=55 // pred_fallthru
          _
        // Predicated region
        $region61: #{tpu_custom_call.1} parent=55 // pred_check
          %p391 = pneg %p65
        $region62: #{tpu_custom_call.1} parent=55 // pred_check_branch
          %393 = sbr.rel (%p391) target = $region64
        $region63: #{tpu_custom_call.1} parent=55 // pred_region
          %s394 = sand.u32 %s55, 1
          %s395 = sand.u32 %s55, 1
          %s396 = smul.addr %s395, 192
          %s397 = scalar_lea.vmem [#allocation2], %s396
          %s398 = smul.u32 16, %s19
          %s399 = smul.addr %s398, 4
          %s400 = scalar_lea.vmem %s1, %s399
          // Predicated region
          $region65: #{tpu_custom_call.1} parent=63 // pred_check
            _
          $region66: #{tpu_custom_call.1} parent=63 // pred_check_branch
            %402 = sbr.rel (0) target = $region68
          $region67: #{tpu_custom_call.1} parent=63 // pred_region
            // Predicated region
            $region69: #{tpu_custom_call.1} parent=67 // pred_check
              _
            $region70: #{tpu_custom_call.1} parent=67 // pred_check_branch
              %404 = sbr.rel target = $region72
            $region71: #{tpu_custom_call.1} parent=67 // pred_region
              // Predicated region
              $region84: #{tpu_custom_call.1} parent=71 // pred_check
                _
              $region85: #{tpu_custom_call.1} parent=71 // pred_check_branch
                %513 = sbr.rel (0) target = $region87
              $region86: #{tpu_custom_call.1} parent=71 // pred_region
                loop: start=0, step=1, limit=1
                $region88: #{tpu_custom_call.1} parent=86 // loop_pre_header
                  _
                $region89: #{tpu_custom_call.1} parent=86 // loop_header
                  %s515 = sphi 0, %s519
                  %p516 = scmp.ge.s32.totalorder %s515, 1
                  %s520 = sphi %s400, %s400
                  %s521 = sphi %s397, %s397
                $region90: #{tpu_custom_call.1} parent=86 // loop_header_branch
                  %518 = sbr.rel (%p516) target = $region94
                $region91: #{tpu_custom_call.1} parent=86 // loop_body
                  _
                $region92: #{tpu_custom_call.1} parent=86 // loop_footer
                  %s519 = sadd.s32 1, %s515
                $region93: #{tpu_custom_call.1} parent=86 // loop_footer_branch
                  %514 = sbr.rel target = $region89
                $region94: #{tpu_custom_call.1} parent=86 // loop_exit
                  _
                loop: start=0, step=1, limit=1
                $region95: #{tpu_custom_call.1} parent=86 // loop_pre_header
                  _
                $region96: #{tpu_custom_call.1} parent=86 // loop_header
                  %s524 = sphi 0, %s528
                  %p525 = scmp.ge.s32.totalorder %s524, 1
                  %s529 = sphi %s400, %s400
                  %s530 = sphi %s397, %s397
                $region97: #{tpu_custom_call.1} parent=86 // loop_header_branch
                  %527 = sbr.rel (%p525) target = $region101
                $region98: #{tpu_custom_call.1} parent=86 // loop_body
                  %v531 = vld [vmem:[%s529] sm:$0xf]
                  %532 = vst [vmem:[%s530] sm:$0xf] %v531
                  %v533 = vld [vmem:[%s529 + $0x4] sm:$0xf]
                  %534 = vst [vmem:[%s530 + $0x4] sm:$0xf] %v533
                  %v535 = vld [vmem:[%s529 + $0x8] sm:$0xf]
                  %536 = vst [vmem:[%s530 + $0x8] sm:$0xf] %v535
                  %v537 = vld [vmem:[%s529 + $0xc] sm:$0xf]
                  %538 = vst [vmem:[%s530 + $0xc] sm:$0xf] %v537
                  %v539 = vld [vmem:[%s529 + $0x10] sm:$0xf]
                  %540 = vst [vmem:[%s530 + $0x10] sm:$0xf] %v539
                  %v541 = vld [vmem:[%s529 + $0x14] sm:$0xf]
                  %542 = vst [vmem:[%s530 + $0x14] sm:$0xf] %v541
                  %v543 = vld [vmem:[%s529 + $0x18] sm:$0xf]
                  %544 = vst [vmem:[%s530 + $0x18] sm:$0xf] %v543
                  %v545 = vld [vmem:[%s529 + $0x1c] sm:$0xf]
                  %546 = vst [vmem:[%s530 + $0x1c] sm:$0xf] %v545
                  %v547 = vld [vmem:[%s529 + $0x20] sm:$0xf]
                  %548 = vst [vmem:[%s530 + $0x20] sm:$0xf] %v547
                  %v549 = vld [vmem:[%s529 + $0x24] sm:$0xf]
                  %550 = vst [vmem:[%s530 + $0x24] sm:$0xf] %v549
                  %v551 = vld [vmem:[%s529 + $0x28] sm:$0xf]
                  %552 = vst [vmem:[%s530 + $0x28] sm:$0xf] %v551
                  %v553 = vld [vmem:[%s529 + $0x2c] sm:$0xf]
                  %554 = vst [vmem:[%s530 + $0x2c] sm:$0xf] %v553
                  %v555 = vld [vmem:[%s529 + $0x30] sm:$0xf]
                  %556 = vst [vmem:[%s530 + $0x30] sm:$0xf] %v555
                  %v557 = vld [vmem:[%s529 + $0x34] sm:$0xf]
                  %558 = vst [vmem:[%s530 + $0x34] sm:$0xf] %v557
                  %v559 = vld [vmem:[%s529 + $0x38] sm:$0xf]
                  %560 = vst [vmem:[%s530 + $0x38] sm:$0xf] %v559
                  %v561 = vld [vmem:[%s529 + $0x3c] sm:$0xf]
                  %562 = vst [vmem:[%s530 + $0x3c] sm:$0xf] %v561
                  %v563 = vld [vmem:[%s529 + $0xc0] sm:$0xf]
                  %564 = vst [vmem:[%s530 + $0x40] sm:$0xf] %v563
                  %v565 = vld [vmem:[%s529 + $0xc4] sm:$0xf]
                  %566 = vst [vmem:[%s530 + $0x44] sm:$0xf] %v565
                  %v567 = vld [vmem:[%s529 + $0xc8] sm:$0xf]
                  %568 = vst [vmem:[%s530 + $0x48] sm:$0xf] %v567
                  %v569 = vld [vmem:[%s529 + $0xcc] sm:$0xf]
                  %570 = vst [vmem:[%s530 + $0x4c] sm:$0xf] %v569
                  %v571 = vld [vmem:[%s529 + $0xd0] sm:$0xf]
                  %572 = vst [vmem:[%s530 + $0x50] sm:$0xf] %v571
                  %v573 = vld [vmem:[%s529 + $0xd4] sm:$0xf]
                  %574 = vst [vmem:[%s530 + $0x54] sm:$0xf] %v573
                  %v575 = vld [vmem:[%s529 + $0xd8] sm:$0xf]
                  %576 = vst [vmem:[%s530 + $0x58] sm:$0xf] %v575
                  %v577 = vld [vmem:[%s529 + $0xdc] sm:$0xf]
                  %578 = vst [vmem:[%s530 + $0x5c] sm:$0xf] %v577
                  %v579 = vld [vmem:[%s529 + $0xe0] sm:$0xf]
                  %580 = vst [vmem:[%s530 + $0x60] sm:$0xf] %v579
                  %v581 = vld [vmem:[%s529 + $0xe4] sm:$0xf]
                  %582 = vst [vmem:[%s530 + $0x64] sm:$0xf] %v581
                  %v583 = vld [vmem:[%s529 + $0xe8] sm:$0xf]
                  %584 = vst [vmem:[%s530 + $0x68] sm:$0xf] %v583
                  %v585 = vld [vmem:[%s529 + $0xec] sm:$0xf]
                  %586 = vst [vmem:[%s530 + $0x6c] sm:$0xf] %v585
                  %v587 = vld [vmem:[%s529 + $0xf0] sm:$0xf]
                  %588 = vst [vmem:[%s530 + $0x70] sm:$0xf] %v587
                  %v589 = vld [vmem:[%s529 + $0xf4] sm:$0xf]
                  %590 = vst [vmem:[%s530 + $0x74] sm:$0xf] %v589
                  %v591 = vld [vmem:[%s529 + $0xf8] sm:$0xf]
                  %592 = vst [vmem:[%s530 + $0x78] sm:$0xf] %v591
                  %v593 = vld [vmem:[%s529 + $0xfc] sm:$0xf]
                  %594 = vst [vmem:[%s530 + $0x7c] sm:$0xf] %v593
                  %v595 = vld [vmem:[%s529 + $0x180] sm:$0xf]
                  %596 = vst [vmem:[%s530 + $0x80] sm:$0xf] %v595
                  %v597 = vld [vmem:[%s529 + $0x184] sm:$0xf]
                  %598 = vst [vmem:[%s530 + $0x84] sm:$0xf] %v597
                  %v599 = vld [vmem:[%s529 + $0x188] sm:$0xf]
                  %600 = vst [vmem:[%s530 + $0x88] sm:$0xf] %v599
                  %v601 = vld [vmem:[%s529 + $0x18c] sm:$0xf]
                  %602 = vst [vmem:[%s530 + $0x8c] sm:$0xf] %v601
                  %v603 = vld [vmem:[%s529 + $0x190] sm:$0xf]
                  %604 = vst [vmem:[%s530 + $0x90] sm:$0xf] %v603
                  %v605 = vld [vmem:[%s529 + $0x194] sm:$0xf]
                  %606 = vst [vmem:[%s530 + $0x94] sm:$0xf] %v605
                  %v607 = vld [vmem:[%s529 + $0x198] sm:$0xf]
                  %608 = vst [vmem:[%s530 + $0x98] sm:$0xf] %v607
                  %v609 = vld [vmem:[%s529 + $0x19c] sm:$0xf]
                  %610 = vst [vmem:[%s530 + $0x9c] sm:$0xf] %v609
                  %v611 = vld [vmem:[%s529 + $0x1a0] sm:$0xf]
                  %612 = vst [vmem:[%s530 + $0xa0] sm:$0xf] %v611
                  %v613 = vld [vmem:[%s529 + $0x1a4] sm:$0xf]
                  %614 = vst [vmem:[%s530 + $0xa4] sm:$0xf] %v613
                  %v615 = vld [vmem:[%s529 + $0x1a8] sm:$0xf]
                  %616 = vst [vmem:[%s530 + $0xa8] sm:$0xf] %v615
                  %v617 = vld [vmem:[%s529 + $0x1ac] sm:$0xf]
                  %618 = vst [vmem:[%s530 + $0xac] sm:$0xf] %v617
                  %v619 = vld [vmem:[%s529 + $0x1b0] sm:$0xf]
                  %620 = vst [vmem:[%s530 + $0xb0] sm:$0xf] %v619
                  %v621 = vld [vmem:[%s529 + $0x1b4] sm:$0xf]
                  %622 = vst [vmem:[%s530 + $0xb4] sm:$0xf] %v621
                  %v623 = vld [vmem:[%s529 + $0x1b8] sm:$0xf]
                  %624 = vst [vmem:[%s530 + $0xb8] sm:$0xf] %v623
                  %v625 = vld [vmem:[%s529 + $0x1bc] sm:$0xf]
                  %626 = vst [vmem:[%s530 + $0xbc] sm:$0xf] %v625
                $region99: #{tpu_custom_call.1} parent=86 // loop_footer
                  %s528 = sadd.s32 1, %s524
                $region100: #{tpu_custom_call.1} parent=86 // loop_footer_branch
                  %523 = sbr.rel target = $region96
                $region101: #{tpu_custom_call.1} parent=86 // loop_exit
                  _
              $region87: #{tpu_custom_call.1} parent=71 // pred_fallthru
                _
            $region72: #{tpu_custom_call.1} parent=67 // pred_fallthru
              _
            // Predicated region
            $region73: #{tpu_custom_call.1} parent=67 // pred_check
              _
            $region74: #{tpu_custom_call.1} parent=67 // pred_check_branch
              %406 = sbr.rel (0) target = $region76
            $region75: #{tpu_custom_call.1} parent=67 // pred_region
              loop: start=0, step=1, limit=1
              $region77: #{tpu_custom_call.1} parent=75 // loop_pre_header
                _
              $region78: #{tpu_custom_call.1} parent=75 // loop_header
                %s409 = sphi 0, %s413
                %p410 = scmp.ge.s32.totalorder %s409, 1
                %s414 = sphi %s400, %s400
                %s415 = sphi %s397, %s397
              $region79: #{tpu_custom_call.1} parent=75 // loop_header_branch
                %412 = sbr.rel (%p410) target = $region83
              $region80: #{tpu_custom_call.1} parent=75 // loop_body
                %v416 = vld [vmem:[%s414] sm:$0xf]
                %417 = vst [vmem:[%s415] sm:$0xf] %v416
                %v418 = vld [vmem:[%s414 + $0x4] sm:$0xf]
                %419 = vst [vmem:[%s415 + $0x4] sm:$0xf] %v418
                %v420 = vld [vmem:[%s414 + $0x8] sm:$0xf]
                %421 = vst [vmem:[%s415 + $0x8] sm:$0xf] %v420
                %v422 = vld [vmem:[%s414 + $0xc] sm:$0xf]
                %423 = vst [vmem:[%s415 + $0xc] sm:$0xf] %v422
                %v424 = vld [vmem:[%s414 + $0x10] sm:$0xf]
                %425 = vst [vmem:[%s415 + $0x10] sm:$0xf] %v424
                %v426 = vld [vmem:[%s414 + $0x14] sm:$0xf]
                %427 = vst [vmem:[%s415 + $0x14] sm:$0xf] %v426
                %v428 = vld [vmem:[%s414 + $0x18] sm:$0xf]
                %429 = vst [vmem:[%s415 + $0x18] sm:$0xf] %v428
                %v430 = vld [vmem:[%s414 + $0x1c] sm:$0xf]
                %431 = vst [vmem:[%s415 + $0x1c] sm:$0xf] %v430
                %v432 = vld [vmem:[%s414 + $0x20] sm:$0xf]
                %433 = vst [vmem:[%s415 + $0x20] sm:$0xf] %v432
                %v434 = vld [vmem:[%s414 + $0x24] sm:$0xf]
                %435 = vst [vmem:[%s415 + $0x24] sm:$0xf] %v434
                %v436 = vld [vmem:[%s414 + $0x28] sm:$0xf]
                %437 = vst [vmem:[%s415 + $0x28] sm:$0xf] %v436
                %v438 = vld [vmem:[%s414 + $0x2c] sm:$0xf]
                %439 = vst [vmem:[%s415 + $0x2c] sm:$0xf] %v438
                %v440 = vld [vmem:[%s414 + $0x30] sm:$0xf]
                %441 = vst [vmem:[%s415 + $0x30] sm:$0xf] %v440
                %v442 = vld [vmem:[%s414 + $0x34] sm:$0xf]
                %443 = vst [vmem:[%s415 + $0x34] sm:$0xf] %v442
                %v444 = vld [vmem:[%s414 + $0x38] sm:$0xf]
                %445 = vst [vmem:[%s415 + $0x38] sm:$0xf] %v444
                %v446 = vld [vmem:[%s414 + $0x3c] sm:$0xf]
                %447 = vst [vmem:[%s415 + $0x3c] sm:$0xf] %v446
                %v448 = vld [vmem:[%s414 + $0xc0] sm:$0xf]
                %449 = vst [vmem:[%s415 + $0x40] sm:$0xf] %v448
                %v450 = vld [vmem:[%s414 + $0xc4] sm:$0xf]
                %451 = vst [vmem:[%s415 + $0x44] sm:$0xf] %v450
                %v452 = vld [vmem:[%s414 + $0xc8] sm:$0xf]
                %453 = vst [vmem:[%s415 + $0x48] sm:$0xf] %v452
                %v454 = vld [vmem:[%s414 + $0xcc] sm:$0xf]
                %455 = vst [vmem:[%s415 + $0x4c] sm:$0xf] %v454
                %v456 = vld [vmem:[%s414 + $0xd0] sm:$0xf]
                %457 = vst [vmem:[%s415 + $0x50] sm:$0xf] %v456
                %v458 = vld [vmem:[%s414 + $0xd4] sm:$0xf]
                %459 = vst [vmem:[%s415 + $0x54] sm:$0xf] %v458
                %v460 = vld [vmem:[%s414 + $0xd8] sm:$0xf]
                %461 = vst [vmem:[%s415 + $0x58] sm:$0xf] %v460
                %v462 = vld [vmem:[%s414 + $0xdc] sm:$0xf]
                %463 = vst [vmem:[%s415 + $0x5c] sm:$0xf] %v462
                %v464 = vld [vmem:[%s414 + $0xe0] sm:$0xf]
                %465 = vst [vmem:[%s415 + $0x60] sm:$0xf] %v464
                %v466 = vld [vmem:[%s414 + $0xe4] sm:$0xf]
                %467 = vst [vmem:[%s415 + $0x64] sm:$0xf] %v466
                %v468 = vld [vmem:[%s414 + $0xe8] sm:$0xf]
                %469 = vst [vmem:[%s415 + $0x68] sm:$0xf] %v468
                %v470 = vld [vmem:[%s414 + $0xec] sm:$0xf]
                %471 = vst [vmem:[%s415 + $0x6c] sm:$0xf] %v470
                %v472 = vld [vmem:[%s414 + $0xf0] sm:$0xf]
                %473 = vst [vmem:[%s415 + $0x70] sm:$0xf] %v472
                %v474 = vld [vmem:[%s414 + $0xf4] sm:$0xf]
                %475 = vst [vmem:[%s415 + $0x74] sm:$0xf] %v474
                %v476 = vld [vmem:[%s414 + $0xf8] sm:$0xf]
                %477 = vst [vmem:[%s415 + $0x78] sm:$0xf] %v476
                %v478 = vld [vmem:[%s414 + $0xfc] sm:$0xf]
                %479 = vst [vmem:[%s415 + $0x7c] sm:$0xf] %v478
                %v480 = vld [vmem:[%s414 + $0x180] sm:$0xf]
                %481 = vst [vmem:[%s415 + $0x80] sm:$0xf] %v480
                %v482 = vld [vmem:[%s414 + $0x184] sm:$0xf]
                %483 = vst [vmem:[%s415 + $0x84] sm:$0xf] %v482
                %v484 = vld [vmem:[%s414 + $0x188] sm:$0xf]
                %485 = vst [vmem:[%s415 + $0x88] sm:$0xf] %v484
                %v486 = vld [vmem:[%s414 + $0x18c] sm:$0xf]
                %487 = vst [vmem:[%s415 + $0x8c] sm:$0xf] %v486
                %v488 = vld [vmem:[%s414 + $0x190] sm:$0xf]
                %489 = vst [vmem:[%s415 + $0x90] sm:$0xf] %v488
                %v490 = vld [vmem:[%s414 + $0x194] sm:$0xf]
                %491 = vst [vmem:[%s415 + $0x94] sm:$0xf] %v490
                %v492 = vld [vmem:[%s414 + $0x198] sm:$0xf]
                %493 = vst [vmem:[%s415 + $0x98] sm:$0xf] %v492
                %v494 = vld [vmem:[%s414 + $0x19c] sm:$0xf]
                %495 = vst [vmem:[%s415 + $0x9c] sm:$0xf] %v494
                %v496 = vld [vmem:[%s414 + $0x1a0] sm:$0xf]
                %497 = vst [vmem:[%s415 + $0xa0] sm:$0xf] %v496
                %v498 = vld [vmem:[%s414 + $0x1a4] sm:$0xf]
                %499 = vst [vmem:[%s415 + $0xa4] sm:$0xf] %v498
                %v500 = vld [vmem:[%s414 + $0x1a8] sm:$0xf]
                %501 = vst [vmem:[%s415 + $0xa8] sm:$0xf] %v500
                %v502 = vld [vmem:[%s414 + $0x1ac] sm:$0xf]
                %503 = vst [vmem:[%s415 + $0xac] sm:$0xf] %v502
                %v504 = vld [vmem:[%s414 + $0x1b0] sm:$0xf]
                %505 = vst [vmem:[%s415 + $0xb0] sm:$0xf] %v504
                %v506 = vld [vmem:[%s414 + $0x1b4] sm:$0xf]
                %507 = vst [vmem:[%s415 + $0xb4] sm:$0xf] %v506
                %v508 = vld [vmem:[%s414 + $0x1b8] sm:$0xf]
                %509 = vst [vmem:[%s415 + $0xb8] sm:$0xf] %v508
                %v510 = vld [vmem:[%s414 + $0x1bc] sm:$0xf]
                %511 = vst [vmem:[%s415 + $0xbc] sm:$0xf] %v510
              $region81: #{tpu_custom_call.1} parent=75 // loop_footer
                %s413 = sadd.s32 1, %s409
              $region82: #{tpu_custom_call.1} parent=75 // loop_footer_branch
                %408 = sbr.rel target = $region78
              $region83: #{tpu_custom_call.1} parent=75 // loop_exit
                _
            $region76: #{tpu_custom_call.1} parent=67 // pred_fallthru
              _
          $region68: #{tpu_custom_call.1} parent=63 // pred_fallthru
            _
          %627 = vnop
        $region64: #{tpu_custom_call.1} parent=55 // pred_fallthru
          _
        // Predicated region
        $region102: #{tpu_custom_call.1} parent=55 // pred_check
          %p628 = pneg %p91
        $region103: #{tpu_custom_call.1} parent=55 // pred_check_branch
          %630 = sbr.rel (%p628) target = $region105
        $region104: #{tpu_custom_call.1} parent=55 // pred_region
          %s631 = smul.u32 16, %s19
          %p632 = scmp.lt.s32.totalorder %s631, 47
          %s633 = scalar_select %p632, %s631, 47
          %s634 = smul.addr %s633, 8
          %s635 = scalar_lea.vmem %s2, %s634
          %s636 = smul.u32 16, %s19
        $region105: #{tpu_custom_call.1} parent=55 // pred_fallthru
          _
      $region56: #{tpu_custom_call.1} parent=5 // pred_fallthru
        _
      %p637 = scmp.le.s32.totalorder 1, %s19
      %p638 = scmp.lt.s32.totalorder %s19, 4
      %p639 = pnand %p637, %p638
      %p640 = pneg %p639
      // Predicated region
      $region106: #{tpu_custom_call.1} parent=5 // pred_check
        _
      $region107: #{tpu_custom_call.1} parent=5 // pred_check_branch
        %642 = sbr.rel (%p639) target = $region109
      $region108: #{tpu_custom_call.1} parent=5 // pred_region
        %s643 = ssub.s32 %s19, 1
        %s644 = sand.u32 %s58, 1
        %s645 = sand.u32 %s58, 1
        %s646 = smul.addr %s645, 192
        %s647 = scalar_lea.vmem [#allocation2], %s646
        // Predicated region
        $region110: #{tpu_custom_call.1} parent=108 // pred_check
          %p648 = pneg %p71
        $region111: #{tpu_custom_call.1} parent=108 // pred_check_branch
          %650 = sbr.rel (%p648) target = $region113
        $region112: #{tpu_custom_call.1} parent=108 // pred_region
          _
        $region113: #{tpu_custom_call.1} parent=108 // pred_fallthru
          _
        %s651 = smul.u32 16, %s24
        %p652 = scmp.lt.s32.totalorder %s651, 47
        %s653 = scalar_select %p652, %s651, 47
        %s654 = smul.addr %s653, 4
        %s655 = scalar_lea.vmem %s0, %s654
        %p656 = pneg %p45
        %p657 = pneg %p42
        %s658 = sand.u32 %s58, 1
        %s659 = sand.u32 %s58, 1
        %s660 = smul.addr %s659, 192
        %s661 = scalar_lea.vmem [#allocation2], %s660
        %p662 = pneg %p71
        %p663 = pneg %p68
        %s664 = smul.u32 16, %s24
        %p665 = scmp.lt.s32.totalorder %s664, 47
        %s666 = scalar_select %p665, %s664, 47
        %s667 = smul.addr %s666, 8
        %s668 = scalar_lea.vmem %s2, %s667
        %p669 = pneg %p97
        %p670 = pneg %p94
        %p671 = pneg %p118
        %p672 = pneg %p115
        %p673 = pneg %p139
        %p674 = pneg %p136
        %p675 = pneg %p160
        %p676 = pneg %p157
        %p677 = pneg %p181
        %p678 = pneg %p178
        %p679 = pneg %p202
        %p680 = pneg %p199
        %p681 = pneg %p223
        %p682 = pneg %p220
        %p683 = pneg %p244
        %p684 = pneg %p241
        %p685 = pneg %p265
        %p686 = pneg %p262
        %p687 = pneg %p286
        %p688 = pneg %p283
        %p689 = pneg %p307
        %p690 = pneg %p304
        %p691 = pneg %p333
        %p692 = pneg %p330
        %s693 = smul.u32 16, %s24
        %p694 = scmp.lt.s32.totalorder %s693, 47
        %s695 = scalar_select %p694, %s693, 47
        %s696 = smul.addr %s695, 4
        %s697 = scalar_lea.vmem %s13, %s696
        %s698 = smul.u32 16, %s24
        %p699 = scmp.lt.s32.totalorder %s698, 47
        %s700 = scalar_select %p699, %s698, 47
        %s701 = smul.addr %s700, 4
        %s702 = scalar_lea.vmem %s0, %s701
        %s703 = smul.u32 16, %s24
        %s704 = smul.u32 16, %s24
        %s705 = smul.u32 16, %s24
        %p706 = scmp.lt.s32.totalorder %s705, 47
        %s707 = scalar_select %p706, %s705, 47
        %s708 = smul.addr %s707, 8
        %s709 = scalar_lea.vmem %s2, %s708
        %s710 = smul.u32 16, %s24
        %s711 = smul.u32 16, %s24
        %p712 = scmp.lt.s32.totalorder %s711, 47
        %s713 = scalar_select %p712, %s711, 47
        %s714 = smul.addr %s713, 4
        %s715 = scalar_lea.vmem %s13, %s714
        %s716 = smul.u32 16, %s24
        %v718 = vld [vmem:[%s709] sm:$0xff]
        %v719 = vld [vmem:[%s709 + $0x8] sm:$0xff]
        %v720 = vld [vmem:[%s709 + $0x10] sm:$0xff]
        %v721 = vld [vmem:[%s709 + $0x18] sm:$0xff]
        %v722 = vld [vmem:[%s709 + $0x20] sm:$0xff]
        %v723 = vld [vmem:[%s709 + $0x28] sm:$0xff]
        %v724 = vld [vmem:[%s709 + $0x30] sm:$0xff]
        %v725 = vld [vmem:[%s709 + $0x38] sm:$0xff]
        %v726 = vld [vmem:[%s709 + $0x40] sm:$0xff]
        %v727 = vld [vmem:[%s709 + $0x48] sm:$0xff]
        %v728 = vld [vmem:[%s709 + $0x50] sm:$0xff]
        %v729 = vld [vmem:[%s709 + $0x58] sm:$0xff]
        %v730 = vld [vmem:[%s709 + $0x60] sm:$0xff]
        %v731 = vld [vmem:[%s709 + $0x68] sm:$0xff]
        %v732 = vld [vmem:[%s709 + $0x70] sm:$0xff]
        %v733 = vld [vmem:[%s709 + $0x78] sm:$0xff]
        %v734 = vld [vmem:[%s702] sm:$0xf]
        %v735 = vld [vmem:[%s702 + $0x4] sm:$0xf]
        %v736 = vld [vmem:[%s702 + $0x8] sm:$0xf]
        %v737 = vld [vmem:[%s702 + $0xc] sm:$0xf]
        %v738 = vld [vmem:[%s702 + $0x10] sm:$0xf]
        %v739 = vld [vmem:[%s702 + $0x14] sm:$0xf]
        %v740 = vld [vmem:[%s702 + $0x18] sm:$0xf]
        %v741 = vld [vmem:[%s702 + $0x1c] sm:$0xf]
        %v742 = vld [vmem:[%s702 + $0x20] sm:$0xf]
        %v743 = vld [vmem:[%s702 + $0x24] sm:$0xf]
        %v744 = vld [vmem:[%s702 + $0x28] sm:$0xf]
        %v745 = vld [vmem:[%s702 + $0x2c] sm:$0xf]
        %v746 = vld [vmem:[%s702 + $0x30] sm:$0xf]
        %v747 = vld [vmem:[%s702 + $0x34] sm:$0xf]
        %v748 = vld [vmem:[%s702 + $0x38] sm:$0xf]
        %v749 = vld [vmem:[%s702 + $0x3c] sm:$0xf]
        %v750 = vld [vmem:[%s3] sm:$0xf]
        %v751 = vld [vmem:[%s3 + $0x4] sm:$0xf]
        %v752 = vld [vmem:[%s3 + $0x8] sm:$0xf]
        %v753 = vld [vmem:[%s3 + $0xc] sm:$0xf]
        %v754 = vld [vmem:[%s4] sm:$0x1]
        %v756 = vlaneseq
        %v757 = vshrl.u32 %v756, 7
        %v758 = vsub.s32 0, %v757
        %v759 = vrot.slane %v754, %v758
        %v777 = vunpack.c.l.b16 %v734
        %v778 = vunpack.c.l.b16 %v735
        %v779 = vunpack.c.l.b16 %v736
        %v780 = vunpack.c.l.b16 %v737
        %v781 = vunpack.c.l.b16 %v738
        %v782 = vunpack.c.l.b16 %v739
        %v783 = vunpack.c.l.b16 %v740
        %v784 = vunpack.c.l.b16 %v741
        %v785 = vunpack.c.l.b16 %v742
        %v786 = vunpack.c.l.b16 %v743
        %v787 = vunpack.c.l.b16 %v744
        %v788 = vunpack.c.l.b16 %v745
        %v789 = vunpack.c.l.b16 %v746
        %v790 = vunpack.c.l.b16 %v747
        %v791 = vunpack.c.l.b16 %v748
        %v792 = vunpack.c.l.b16 %v749
        %v793 = vpack.c.b16 %v778, %v777
        %v794 = vpack.c.b16 %v780, %v779
        %v795 = vpack.c.b16 %v782, %v781
        %v796 = vpack.c.b16 %v784, %v783
        %v797 = vpack.c.b16 %v786, %v785
        %v798 = vpack.c.b16 %v788, %v787
        %v799 = vpack.c.b16 %v790, %v789
        %v800 = vpack.c.b16 %v792, %v791
        %v805 = vunpack.c.l.b16 %v750
        %v806 = vunpack.c.l.b16 %v751
        %v807 = vunpack.c.l.b16 %v752
        %v808 = vunpack.c.l.b16 %v753
        %v809 = vpack.c.b16 %v806, %v805
        %v810 = vpack.c.b16 %v808, %v807
        %vm813 = vcmask 261120
        %v815 = vsel %vm813, %v793, 0
        %v818 = vsel %vm813, %v794, 0
        %v821 = vsel %vm813, %v795, 0
        %v824 = vsel %vm813, %v796, 0
        %v827 = vsel %vm813, %v797, 0
        %v830 = vsel %vm813, %v798, 0
        %v833 = vsel %vm813, %v799, 0
        %v836 = vsel %vm813, %v800, 0
        %838 = vmatprep.subr.bf16.mxu0 0
        %839 = vmatpush1.bf16.msra.mxu0 %v809
        %840 = vmatprep.subr.bf16.mxu0 0
        %841 = vmatpush1.bf16.msra.mxu0 %v810
        %842 = vmatprep.subr.bf16.mxu0 0
        %843 = vmatpush1.bf16.msra.mxu0 0
        %844 = vmatprep.subr.bf16.mxu0 0
        %845 = vmatpush1.bf16.msra.mxu0 0
        %846 = vmatprep.subr.bf16.mxu0 0
        %847 = vmatpush1.bf16.msra.mxu0 0
        %848 = vmatprep.subr.bf16.mxu0 0
        %849 = vmatpush1.bf16.msra.mxu0 0
        %850 = vmatprep.subr.bf16.mxu0 0
        %851 = vmatpush1.bf16.msra.mxu0 0
        %852 = vmatprep.subr.bf16.mxu0 0
        %853 = vmatpush1.bf16.msra.mxu0 0
        %854 = vmatprep.subr.bf16.mxu0 0
        %855 = vmatpush1.bf16.msra.mxu0 0
        %856 = vmatprep.subr.bf16.mxu0 0
        %857 = vmatpush1.bf16.msra.mxu0 0
        %858 = vmatprep.subr.bf16.mxu0 0
        %859 = vmatpush1.bf16.msra.mxu0 0
        %860 = vmatprep.subr.bf16.mxu0 0
        %861 = vmatpush1.bf16.msra.mxu0 0
        %862 = vmatprep.subr.bf16.mxu0 0
        %863 = vmatpush1.bf16.msra.mxu0 0
        %864 = vmatprep.subr.bf16.mxu0 0
        %865 = vmatpush1.bf16.msra.mxu0 0
        %866 = vmatprep.subr.bf16.mxu0 0
        %867 = vmatpush1.bf16.msra.mxu0 0
        %868 = vmatprep.subr.bf16.mxu0 0
        %869 = vmatpush1.bf16.msra.mxu0 0
        %870 = vmatprep.mubr.bf16.mxu0 0
        %871 = vmatmul.mubr.bf16.gmra.mrb[0].mxu0 %v815
        %v872 = vpop.f32.mrb[0].mxu0
        %v873 = vadd.f32 %v759, %v872
        %v874 = vpop.f32.mrb[0].mxu0
        %v875 = vpop.f32.mrb[0].mxu0
        %v876 = vadd.f32 %v759, %v875
        %v877 = vpop.f32.mrb[0].mxu0
        %878 = vmatprep.mubr.bf16.mxu0 0
        %879 = vmatmul.mubr.bf16.gmra.mrb[0].mxu0 %v818
        %v880 = vpop.f32.mrb[0].mxu0
        %v881 = vadd.f32 %v759, %v880
        %v882 = vpop.f32.mrb[0].mxu0
        %v883 = vpop.f32.mrb[0].mxu0
        %v884 = vadd.f32 %v759, %v883
        %v885 = vpop.f32.mrb[0].mxu0
        %886 = vmatprep.mubr.bf16.mxu0 0
        %887 = vmatmul.mubr.bf16.gmra.mrb[0].mxu0 %v821
        %v888 = vpop.f32.mrb[0].mxu0
        %v889 = vadd.f32 %v759, %v888
        %v890 = vpop.f32.mrb[0].mxu0
        %v891 = vpop.f32.mrb[0].mxu0
        %v892 = vadd.f32 %v759, %v891
        %v893 = vpop.f32.mrb[0].mxu0
        %894 = vmatprep.mubr.bf16.mxu0 0
        %895 = vmatmul.mubr.bf16.gmra.mrb[0].mxu0 %v824
        %v896 = vpop.f32.mrb[0].mxu0
        %v897 = vadd.f32 %v759, %v896
        %v898 = vpop.f32.mrb[0].mxu0
        %v899 = vpop.f32.mrb[0].mxu0
        %v900 = vadd.f32 %v759, %v899
        %v901 = vpop.f32.mrb[0].mxu0
        %902 = vmatprep.mubr.bf16.mxu0 0
        %903 = vmatmul.mubr.bf16.gmra.mrb[0].mxu0 %v827
        %v904 = vpop.f32.mrb[0].mxu0
        %v905 = vadd.f32 %v759, %v904
        %v906 = vpop.f32.mrb[0].mxu0
        %v907 = vpop.f32.mrb[0].mxu0
        %v908 = vadd.f32 %v759, %v907
        %v909 = vpop.f32.mrb[0].mxu0
        %910 = vmatprep.mubr.bf16.mxu0 0
        %911 = vmatmul.mubr.bf16.gmra.mrb[0].mxu0 %v830
        %v912 = vpop.f32.mrb[0].mxu0
        %v913 = vadd.f32 %v759, %v912
        %v914 = vpop.f32.mrb[0].mxu0
        %v915 = vpop.f32.mrb[0].mxu0
        %v916 = vadd.f32 %v759, %v915
        %v917 = vpop.f32.mrb[0].mxu0
        %918 = vmatprep.mubr.bf16.mxu0 0
        %919 = vmatmul.mubr.bf16.gmra.mrb[0].mxu0 %v833
        %v920 = vpop.f32.mrb[0].mxu0
        %v921 = vadd.f32 %v759, %v920
        %v922 = vpop.f32.mrb[0].mxu0
        %v923 = vpop.f32.mrb[0].mxu0
        %v924 = vadd.f32 %v759, %v923
        %v925 = vpop.f32.mrb[0].mxu0
        %926 = vmatprep.mubr.bf16.mxu0 0
        %927 = vmatmul.mubr.bf16.gmra.mrb[0].mxu0 %v836
        %v928 = vpop.f32.mrb[0].mxu0
        %v929 = vadd.f32 %v759, %v928
        %v930 = vpop.f32.mrb[0].mxu0
        %v931 = vpop.f32.mrb[0].mxu0
        %v932 = vadd.f32 %v759, %v931
        %v933 = vpop.f32.mrb[0].mxu0
        %934 = vdwg.mxu0
        %v935 = vxor.u32 %v873, 2147483648
        %v936 = vxor.u32 %v876, 2147483648
        %v937 = vxor.u32 %v881, 2147483648
        %v938 = vxor.u32 %v884, 2147483648
        %v939 = vxor.u32 %v889, 2147483648
        %v940 = vxor.u32 %v892, 2147483648
        %v941 = vxor.u32 %v897, 2147483648
        %v942 = vxor.u32 %v900, 2147483648
        %v943 = vxor.u32 %v905, 2147483648
        %v944 = vxor.u32 %v908, 2147483648
        %v945 = vxor.u32 %v913, 2147483648
        %v946 = vxor.u32 %v916, 2147483648
        %v947 = vxor.u32 %v921, 2147483648
        %v948 = vxor.u32 %v924, 2147483648
        %v949 = vxor.u32 %v929, 2147483648
        %v950 = vxor.u32 %v932, 2147483648
        %v951 = vmul.f32 %v935, 1.442695
        %v952 = vpow.pop %v951
        %v953 = vmul.f32 %v936, 1.442695
        %v954 = vpow.pop %v953
        %v955 = vmul.f32 %v937, 1.442695
        %v956 = vpow.pop %v955
        %v957 = vmul.f32 %v938, 1.442695
        %v958 = vpow.pop %v957
        %v959 = vmul.f32 %v939, 1.442695
        %v960 = vpow.pop %v959
        %v961 = vmul.f32 %v940, 1.442695
        %v962 = vpow.pop %v961
        %v963 = vmul.f32 %v941, 1.442695
        %v964 = vpow.pop %v963
        %v965 = vmul.f32 %v942, 1.442695
        %v966 = vpow.pop %v965
        %v967 = vmul.f32 %v943, 1.442695
        %v968 = vpow.pop %v967
        %v969 = vmul.f32 %v944, 1.442695
        %v970 = vpow.pop %v969
        %v971 = vmul.f32 %v945, 1.442695
        %v972 = vpow.pop %v971
        %v973 = vmul.f32 %v946, 1.442695
        %v974 = vpow.pop %v973
        %v975 = vmul.f32 %v947, 1.442695
        %v976 = vpow.pop %v975
        %v977 = vmul.f32 %v948, 1.442695
        %v978 = vpow.pop %v977
        %v979 = vmul.f32 %v949, 1.442695
        %v980 = vpow.pop %v979
        %v981 = vmul.f32 %v950, 1.442695
        %v982 = vpow.pop %v981
        %v983 = vadd.f32 %v952, 1.0
        %v984 = vadd.f32 %v954, 1.0
        %v985 = vadd.f32 %v956, 1.0
        %v986 = vadd.f32 %v958, 1.0
        %v987 = vadd.f32 %v960, 1.0
        %v988 = vadd.f32 %v962, 1.0
        %v989 = vadd.f32 %v964, 1.0
        %v990 = vadd.f32 %v966, 1.0
        %v991 = vadd.f32 %v968, 1.0
        %v992 = vadd.f32 %v970, 1.0
        %v993 = vadd.f32 %v972, 1.0
        %v994 = vadd.f32 %v974, 1.0
        %v995 = vadd.f32 %v976, 1.0
        %v996 = vadd.f32 %v978, 1.0
        %v997 = vadd.f32 %v980, 1.0
        %v998 = vadd.f32 %v982, 1.0
        %v999 = vrcp.pop %v983
        %v1000 = vmul.f32 1.0, %v999
        %v1001 = vrcp.pop %v984
        %v1002 = vmul.f32 1.0, %v1001
        %v1003 = vrcp.pop %v985
        %v1004 = vmul.f32 1.0, %v1003
        %v1005 = vrcp.pop %v986
        %v1006 = vmul.f32 1.0, %v1005
        %v1007 = vrcp.pop %v987
        %v1008 = vmul.f32 1.0, %v1007
        %v1009 = vrcp.pop %v988
        %v1010 = vmul.f32 1.0, %v1009
        %v1011 = vrcp.pop %v989
        %v1012 = vmul.f32 1.0, %v1011
        %v1013 = vrcp.pop %v990
        %v1014 = vmul.f32 1.0, %v1013
        %v1015 = vrcp.pop %v991
        %v1016 = vmul.f32 1.0, %v1015
        %v1017 = vrcp.pop %v992
        %v1018 = vmul.f32 1.0, %v1017
        %v1019 = vrcp.pop %v993
        %v1020 = vmul.f32 1.0, %v1019
        %v1021 = vrcp.pop %v994
        %v1022 = vmul.f32 1.0, %v1021
        %v1023 = vrcp.pop %v995
        %v1024 = vmul.f32 1.0, %v1023
        %v1025 = vrcp.pop %v996
        %v1026 = vmul.f32 1.0, %v1025
        %v1027 = vrcp.pop %v997
        %v1028 = vmul.f32 1.0, %v1027
        %v1029 = vrcp.pop %v998
        %v1030 = vmul.f32 1.0, %v1029
        %v1031 = vmul.f32 %v873, %v1000
        %v1032 = vmul.f32 %v876, %v1002
        %v1033 = vmul.f32 %v881, %v1004
        %v1034 = vmul.f32 %v884, %v1006
        %v1035 = vmul.f32 %v889, %v1008
        %v1036 = vmul.f32 %v892, %v1010
        %v1037 = vmul.f32 %v897, %v1012
        %v1038 = vmul.f32 %v900, %v1014
        %v1039 = vmul.f32 %v905, %v1016
        %v1040 = vmul.f32 %v908, %v1018
        %v1041 = vmul.f32 %v913, %v1020
        %v1042 = vmul.f32 %v916, %v1022
        %v1043 = vmul.f32 %v921, %v1024
        %v1044 = vmul.f32 %v924, %v1026
        %v1045 = vmul.f32 %v929, %v1028
        %v1046 = vmul.f32 %v932, %v1030
        %v1047 = vld [vmem:[%s647] sm:$0xf]
        %v1048 = vld [vmem:[%s647 + $0x4] sm:$0xf]
        %v1049 = vld [vmem:[%s647 + $0x8] sm:$0xf]
        %v1050 = vld [vmem:[%s647 + $0xc] sm:$0xf]
        %v1051 = vld [vmem:[%s647 + $0x10] sm:$0xf]
        %v1052 = vld [vmem:[%s647 + $0x14] sm:$0xf]
        %v1053 = vld [vmem:[%s647 + $0x18] sm:$0xf]
        %v1054 = vld [vmem:[%s647 + $0x1c] sm:$0xf]
        %v1055 = vld [vmem:[%s647 + $0x20] sm:$0xf]
        %v1056 = vld [vmem:[%s647 + $0x24] sm:$0xf]
        %v1057 = vld [vmem:[%s647 + $0x28] sm:$0xf]
        %v1058 = vld [vmem:[%s647 + $0x2c] sm:$0xf]
        %v1059 = vld [vmem:[%s647 + $0x30] sm:$0xf]
        %v1060 = vld [vmem:[%s647 + $0x34] sm:$0xf]
        %v1061 = vld [vmem:[%s647 + $0x38] sm:$0xf]
        %v1062 = vld [vmem:[%s647 + $0x3c] sm:$0xf]
        %v1063 = vld [vmem:[%s5] sm:$0xf]
        %v1064 = vld [vmem:[%s5 + $0x4] sm:$0xf]
        %v1065 = vld [vmem:[%s5 + $0x8] sm:$0xf]
        %v1066 = vld [vmem:[%s5 + $0xc] sm:$0xf]
        %v1067 = vld [vmem:[%s6] sm:$0x1]
        %v1069 = vlaneseq
        %v1070 = vshrl.u32 %v1069, 7
        %v1071 = vsub.s32 0, %v1070
        %v1072 = vrot.slane %v1067, %v1071
        %v1090 = vunpack.c.l.b16 %v1047
        %v1091 = vunpack.c.l.b16 %v1048
        %v1092 = vunpack.c.l.b16 %v1049
        %v1093 = vunpack.c.l.b16 %v1050
        %v1094 = vunpack.c.l.b16 %v1051
        %v1095 = vunpack.c.l.b16 %v1052
        %v1096 = vunpack.c.l.b16 %v1053
        %v1097 = vunpack.c.l.b16 %v1054
        %v1098 = vunpack.c.l.b16 %v1055
        %v1099 = vunpack.c.l.b16 %v1056
        %v1100 = vunpack.c.l.b16 %v1057
        %v1101 = vunpack.c.l.b16 %v1058
        %v1102 = vunpack.c.l.b16 %v1059
        %v1103 = vunpack.c.l.b16 %v1060
        %v1104 = vunpack.c.l.b16 %v1061
        %v1105 = vunpack.c.l.b16 %v1062
        %v1106 = vpack.c.b16 %v1091, %v1090
        %v1107 = vpack.c.b16 %v1093, %v1092
        %v1108 = vpack.c.b16 %v1095, %v1094
        %v1109 = vpack.c.b16 %v1097, %v1096
        %v1110 = vpack.c.b16 %v1099, %v1098
        %v1111 = vpack.c.b16 %v1101, %v1100
        %v1112 = vpack.c.b16 %v1103, %v1102
        %v1113 = vpack.c.b16 %v1105, %v1104
        %v1118 = vunpack.c.l.b16 %v1063
        %v1119 = vunpack.c.l.b16 %v1064
        %v1120 = vunpack.c.l.b16 %v1065
        %v1121 = vunpack.c.l.b16 %v1066
        %v1122 = vpack.c.b16 %v1119, %v1118
        %v1123 = vpack.c.b16 %v1121, %v1120
        %v1127 = vsel %vm813, %v1106, 0
        %v1130 = vsel %vm813, %v1107, 0
        %v1133 = vsel %vm813, %v1108, 0
        %v1136 = vsel %vm813, %v1109, 0
        %v1139 = vsel %vm813, %v1110, 0
        %v1142 = vsel %vm813, %v1111, 0
        %v1145 = vsel %vm813, %v1112, 0
        %v1148 = vsel %vm813, %v1113, 0
        %1150 = vmatprep.subr.bf16.mxu0 0
        %1151 = vmatpush1.bf16.msra.mxu0 %v1122
        %1152 = vmatprep.subr.bf16.mxu0 0
        %1153 = vmatpush1.bf16.msra.mxu0 %v1123
        %1154 = vmatprep.subr.bf16.mxu0 0
        %1155 = vmatpush1.bf16.msra.mxu0 0
        %1156 = vmatprep.subr.bf16.mxu0 0
        %1157 = vmatpush1.bf16.msra.mxu0 0
        %1158 = vmatprep.subr.bf16.mxu0 0
        %1159 = vmatpush1.bf16.msra.mxu0 0
        %1160 = vmatprep.subr.bf16.mxu0 0
        %1161 = vmatpush1.bf16.msra.mxu0 0
        %1162 = vmatprep.subr.bf16.mxu0 0
        %1163 = vmatpush1.bf16.msra.mxu0 0
        %1164 = vmatprep.subr.bf16.mxu0 0
        %1165 = vmatpush1.bf16.msra.mxu0 0
        %1166 = vmatprep.subr.bf16.mxu0 0
        %1167 = vmatpush1.bf16.msra.mxu0 0
        %1168 = vmatprep.subr.bf16.mxu0 0
        %1169 = vmatpush1.bf16.msra.mxu0 0
        %1170 = vmatprep.subr.bf16.mxu0 0
        %1171 = vmatpush1.bf16.msra.mxu0 0
        %1172 = vmatprep.subr.bf16.mxu0 0
        %1173 = vmatpush1.bf16.msra.mxu0 0
        %1174 = vmatprep.subr.bf16.mxu0 0
        %1175 = vmatpush1.bf16.msra.mxu0 0
        %1176 = vmatprep.subr.bf16.mxu0 0
        %1177 = vmatpush1.bf16.msra.mxu0 0
        %1178 = vmatprep.subr.bf16.mxu0 0
        %1179 = vmatpush1.bf16.msra.mxu0 0
        %1180 = vmatprep.subr.bf16.mxu0 0
        %1181 = vmatpush1.bf16.msra.mxu0 0
        %1182 = vmatprep.mubr.bf16.mxu0 0
        %1183 = vmatmul.mubr.bf16.gmra.mrb[0].mxu0 %v1127
        %v1184 = vpop.f32.mrb[0].mxu0
        %v1185 = vadd.f32 %v1072, %v1184
        %v1186 = vpop.f32.mrb[0].mxu0
        %v1187 = vpop.f32.mrb[0].mxu0
        %v1188 = vadd.f32 %v1072, %v1187
        %v1189 = vpop.f32.mrb[0].mxu0
        %1190 = vmatprep.mubr.bf16.mxu0 0
        %1191 = vmatmul.mubr.bf16.gmra.mrb[0].mxu0 %v1130
        %v1192 = vpop.f32.mrb[0].mxu0
        %v1193 = vadd.f32 %v1072, %v1192
        %v1194 = vpop.f32.mrb[0].mxu0
        %v1195 = vpop.f32.mrb[0].mxu0
        %v1196 = vadd.f32 %v1072, %v1195
        %v1197 = vpop.f32.mrb[0].mxu0
        %1198 = vmatprep.mubr.bf16.mxu0 0
        %1199 = vmatmul.mubr.bf16.gmra.mrb[0].mxu0 %v1133
        %v1200 = vpop.f32.mrb[0].mxu0
        %v1201 = vadd.f32 %v1072, %v1200
        %v1202 = vpop.f32.mrb[0].mxu0
        %v1203 = vpop.f32.mrb[0].mxu0
        %v1204 = vadd.f32 %v1072, %v1203
        %v1205 = vpop.f32.mrb[0].mxu0
        %1206 = vmatprep.mubr.bf16.mxu0 0
        %1207 = vmatmul.mubr.bf16.gmra.mrb[0].mxu0 %v1136
        %v1208 = vpop.f32.mrb[0].mxu0
        %v1209 = vadd.f32 %v1072, %v1208
        %v1210 = vpop.f32.mrb[0].mxu0
        %v1211 = vpop.f32.mrb[0].mxu0
        %v1212 = vadd.f32 %v1072, %v1211
        %v1213 = vpop.f32.mrb[0].mxu0
        %1214 = vmatprep.mubr.bf16.mxu0 0
        %1215 = vmatmul.mubr.bf16.gmra.mrb[0].mxu0 %v1139
        %v1216 = vpop.f32.mrb[0].mxu0
        %v1217 = vadd.f32 %v1072, %v1216
        %v1218 = vpop.f32.mrb[0].mxu0
        %v1219 = vpop.f32.mrb[0].mxu0
        %v1220 = vadd.f32 %v1072, %v1219
        %v1221 = vpop.f32.mrb[0].mxu0
        %1222 = vmatprep.mubr.bf16.mxu0 0
        %1223 = vmatmul.mubr.bf16.gmra.mrb[0].mxu0 %v1142
        %v1224 = vpop.f32.mrb[0].mxu0
        %v1225 = vadd.f32 %v1072, %v1224
        %v1226 = vpop.f32.mrb[0].mxu0
        %v1227 = vpop.f32.mrb[0].mxu0
        %v1228 = vadd.f32 %v1072, %v1227
        %v1229 = vpop.f32.mrb[0].mxu0
        %1230 = vmatprep.mubr.bf16.mxu0 0
        %1231 = vmatmul.mubr.bf16.gmra.mrb[0].mxu0 %v1145
        %v1232 = vpop.f32.mrb[0].mxu0
        %v1233 = vadd.f32 %v1072, %v1232
        %v1234 = vpop.f32.mrb[0].mxu0
        %v1235 = vpop.f32.mrb[0].mxu0
        %v1236 = vadd.f32 %v1072, %v1235
        %v1237 = vpop.f32.mrb[0].mxu0
        %1238 = vmatprep.mubr.bf16.mxu0 0
        %1239 = vmatmul.mubr.bf16.gmra.mrb[0].mxu0 %v1148
        %v1240 = vpop.f32.mrb[0].mxu0
        %v1241 = vadd.f32 %v1072, %v1240
        %v1242 = vpop.f32.mrb[0].mxu0
        %v1243 = vpop.f32.mrb[0].mxu0
        %v1244 = vadd.f32 %v1072, %v1243
        %v1245 = vpop.f32.mrb[0].mxu0
        %1246 = vdwg.mxu0
        %s1247 = scalar_lea.vmem %s647, 64 [#allocation2]
        %v1248 = vld [vmem:[%s1247] sm:$0xf]
        %v1249 = vld [vmem:[%s1247 + $0x4] sm:$0xf]
        %v1250 = vld [vmem:[%s1247 + $0x8] sm:$0xf]
        %v1251 = vld [vmem:[%s1247 + $0xc] sm:$0xf]
        %v1252 = vld [vmem:[%s1247 + $0x10] sm:$0xf]
        %v1253 = vld [vmem:[%s1247 + $0x14] sm:$0xf]
        %v1254 = vld [vmem:[%s1247 + $0x18] sm:$0xf]
        %v1255 = vld [vmem:[%s1247 + $0x1c] sm:$0xf]
        %v1256 = vld [vmem:[%s1247 + $0x20] sm:$0xf]
        %v1257 = vld [vmem:[%s1247 + $0x24] sm:$0xf]
        %v1258 = vld [vmem:[%s1247 + $0x28] sm:$0xf]
        %v1259 = vld [vmem:[%s1247 + $0x2c] sm:$0xf]
        %v1260 = vld [vmem:[%s1247 + $0x30] sm:$0xf]
        %v1261 = vld [vmem:[%s1247 + $0x34] sm:$0xf]
        %v1262 = vld [vmem:[%s1247 + $0x38] sm:$0xf]
        %v1263 = vld [vmem:[%s1247 + $0x3c] sm:$0xf]
        %v1280 = vunpack.c.l.b16 %v1248
        %v1281 = vunpack.c.l.b16 %v1249
        %v1282 = vunpack.c.l.b16 %v1250
        %v1283 = vunpack.c.l.b16 %v1251
        %v1284 = vunpack.c.l.b16 %v1252
        %v1285 = vunpack.c.l.b16 %v1253
        %v1286 = vunpack.c.l.b16 %v1254
        %v1287 = vunpack.c.l.b16 %v1255
        %v1288 = vunpack.c.l.b16 %v1256
        %v1289 = vunpack.c.l.b16 %v1257
        %v1290 = vunpack.c.l.b16 %v1258
        %v1291 = vunpack.c.l.b16 %v1259
        %v1292 = vunpack.c.l.b16 %v1260
        %v1293 = vunpack.c.l.b16 %v1261
        %v1294 = vunpack.c.l.b16 %v1262
        %v1295 = vunpack.c.l.b16 %v1263
        %v1296 = vpack.c.b16 %v1281, %v1280
        %v1297 = vpack.c.b16 %v1283, %v1282
        %v1298 = vpack.c.b16 %v1285, %v1284
        %v1299 = vpack.c.b16 %v1287, %v1286
        %v1300 = vpack.c.b16 %v1289, %v1288
        %v1301 = vpack.c.b16 %v1291, %v1290
        %v1302 = vpack.c.b16 %v1293, %v1292
        %v1303 = vpack.c.b16 %v1295, %v1294
        %v1305 = vsel %vm813, %v1296, 0
        %v1308 = vsel %vm813, %v1297, 0
        %v1311 = vsel %vm813, %v1298, 0
        %v1314 = vsel %vm813, %v1299, 0
        %v1317 = vsel %vm813, %v1300, 0
        %v1320 = vsel %vm813, %v1301, 0
        %v1323 = vsel %vm813, %v1302, 0
        %v1326 = vsel %vm813, %v1303, 0
        %1328 = vmatprep.subr.bf16.mxu0 0
        %1329 = vmatpush1.bf16.msra.mxu0 %v1122
        %1330 = vmatprep.subr.bf16.mxu0 0
        %1331 = vmatpush1.bf16.msra.mxu0 %v1123
        %1332 = vmatprep.subr.bf16.mxu0 0
        %1333 = vmatpush1.bf16.msra.mxu0 0
        %1334 = vmatprep.subr.bf16.mxu0 0
        %1335 = vmatpush1.bf16.msra.mxu0 0
        %1336 = vmatprep.subr.bf16.mxu0 0
        %1337 = vmatpush1.bf16.msra.mxu0 0
        %1338 = vmatprep.subr.bf16.mxu0 0
        %1339 = vmatpush1.bf16.msra.mxu0 0
        %1340 = vmatprep.subr.bf16.mxu0 0
        %1341 = vmatpush1.bf16.msra.mxu0 0
        %1342 = vmatprep.subr.bf16.mxu0 0
        %1343 = vmatpush1.bf16.msra.mxu0 0
        %1344 = vmatprep.subr.bf16.mxu0 0
        %1345 = vmatpush1.bf16.msra.mxu0 0
        %1346 = vmatprep.subr.bf16.mxu0 0
        %1347 = vmatpush1.bf16.msra.mxu0 0
        %1348 = vmatprep.subr.bf16.mxu0 0
        %1349 = vmatpush1.bf16.msra.mxu0 0
        %1350 = vmatprep.subr.bf16.mxu0 0
        %1351 = vmatpush1.bf16.msra.mxu0 0
        %1352 = vmatprep.subr.bf16.mxu0 0
        %1353 = vmatpush1.bf16.msra.mxu0 0
        %1354 = vmatprep.subr.bf16.mxu0 0
        %1355 = vmatpush1.bf16.msra.mxu0 0
        %1356 = vmatprep.subr.bf16.mxu0 0
        %1357 = vmatpush1.bf16.msra.mxu0 0
        %1358 = vmatprep.subr.bf16.mxu0 0
        %1359 = vmatpush1.bf16.msra.mxu0 0
        %1360 = vmatprep.mubr.bf16.mxu0 0
        %1361 = vmatmul.mubr.bf16.gmra.mrb[0].mxu0 %v1305
        %v1362 = vpop.f32.mrb[0].mxu0
        %v1363 = vadd.f32 %v1072, %v1362
        %v1364 = vpop.f32.mrb[0].mxu0
        %v1365 = vpop.f32.mrb[0].mxu0
        %v1366 = vadd.f32 %v1072, %v1365
        %v1367 = vpop.f32.mrb[0].mxu0
        %1368 = vmatprep.mubr.bf16.mxu0 0
        %1369 = vmatmul.mubr.bf16.gmra.mrb[0].mxu0 %v1308
        %v1370 = vpop.f32.mrb[0].mxu0
        %v1371 = vadd.f32 %v1072, %v1370
        %v1372 = vpop.f32.mrb[0].mxu0
        %v1373 = vpop.f32.mrb[0].mxu0
        %v1374 = vadd.f32 %v1072, %v1373
        %v1375 = vpop.f32.mrb[0].mxu0
        %1376 = vmatprep.mubr.bf16.mxu0 0
        %1377 = vmatmul.mubr.bf16.gmra.mrb[0].mxu0 %v1311
        %v1378 = vpop.f32.mrb[0].mxu0
        %v1379 = vadd.f32 %v1072, %v1378
        %v1380 = vpop.f32.mrb[0].mxu0
        %v1381 = vpop.f32.mrb[0].mxu0
        %v1382 = vadd.f32 %v1072, %v1381
        %v1383 = vpop.f32.mrb[0].mxu0
        %1384 = vmatprep.mubr.bf16.mxu0 0
        %1385 = vmatmul.mubr.bf16.gmra.mrb[0].mxu0 %v1314
        %v1386 = vpop.f32.mrb[0].mxu0
        %v1387 = vadd.f32 %v1072, %v1386
        %v1388 = vpop.f32.mrb[0].mxu0
        %v1389 = vpop.f32.mrb[0].mxu0
        %v1390 = vadd.f32 %v1072, %v1389
        %v1391 = vpop.f32.mrb[0].mxu0
        %1392 = vmatprep.mubr.bf16.mxu0 0
        %1393 = vmatmul.mubr.bf16.gmra.mrb[0].mxu0 %v1317
        %v1394 = vpop.f32.mrb[0].mxu0
        %v1395 = vadd.f32 %v1072, %v1394
        %v1396 = vpop.f32.mrb[0].mxu0
        %v1397 = vpop.f32.mrb[0].mxu0
        %v1398 = vadd.f32 %v1072, %v1397
        %v1399 = vpop.f32.mrb[0].mxu0
        %1400 = vmatprep.mubr.bf16.mxu0 0
        %1401 = vmatmul.mubr.bf16.gmra.mrb[0].mxu0 %v1320
        %v1402 = vpop.f32.mrb[0].mxu0
        %v1403 = vadd.f32 %v1072, %v1402
        %v1404 = vpop.f32.mrb[0].mxu0
        %v1405 = vpop.f32.mrb[0].mxu0
        %v1406 = vadd.f32 %v1072, %v1405
        %v1407 = vpop.f32.mrb[0].mxu0
        %1408 = vmatprep.mubr.bf16.mxu0 0
        %1409 = vmatmul.mubr.bf16.gmra.mrb[0].mxu0 %v1323
        %v1410 = vpop.f32.mrb[0].mxu0
        %v1411 = vadd.f32 %v1072, %v1410
        %v1412 = vpop.f32.mrb[0].mxu0
        %v1413 = vpop.f32.mrb[0].mxu0
        %v1414 = vadd.f32 %v1072, %v1413
        %v1415 = vpop.f32.mrb[0].mxu0
        %1416 = vmatprep.mubr.bf16.mxu0 0
        %1417 = vmatmul.mubr.bf16.gmra.mrb[0].mxu0 %v1326
        %v1418 = vpop.f32.mrb[0].mxu0
        %v1419 = vadd.f32 %v1072, %v1418
        %v1420 = vpop.f32.mrb[0].mxu0
        %v1421 = vpop.f32.mrb[0].mxu0
        %v1422 = vadd.f32 %v1072, %v1421
        %v1423 = vpop.f32.mrb[0].mxu0
        %1424 = vdwg.mxu0
        %s1425 = scalar_lea.vmem %s647, 128 [#allocation2]
        %v1426 = vld [vmem:[%s1425] sm:$0xf]
        %v1427 = vld [vmem:[%s1425 + $0x4] sm:$0xf]
        %v1428 = vld [vmem:[%s1425 + $0x8] sm:$0xf]
        %v1429 = vld [vmem:[%s1425 + $0xc] sm:$0xf]
        %v1430 = vld [vmem:[%s1425 + $0x10] sm:$0xf]
        %v1431 = vld [vmem:[%s1425 + $0x14] sm:$0xf]
        %v1432 = vld [vmem:[%s1425 + $0x18] sm:$0xf]
        %v1433 = vld [vmem:[%s1425 + $0x1c] sm:$0xf]
        %v1434 = vld [vmem:[%s1425 + $0x20] sm:$0xf]
        %v1435 = vld [vmem:[%s1425 + $0x24] sm:$0xf]
        %v1436 = vld [vmem:[%s1425 + $0x28] sm:$0xf]
        %v1437 = vld [vmem:[%s1425 + $0x2c] sm:$0xf]
        %v1438 = vld [vmem:[%s1425 + $0x30] sm:$0xf]
        %v1439 = vld [vmem:[%s1425 + $0x34] sm:$0xf]
        %v1440 = vld [vmem:[%s1425 + $0x38] sm:$0xf]
        %v1441 = vld [vmem:[%s1425 + $0x3c] sm:$0xf]
        %v1458 = vunpack.c.l.b16 %v1426
        %v1459 = vunpack.c.l.b16 %v1427
        %v1460 = vunpack.c.l.b16 %v1428
        %v1461 = vunpack.c.l.b16 %v1429
        %v1462 = vunpack.c.l.b16 %v1430
        %v1463 = vunpack.c.l.b16 %v1431
        %v1464 = vunpack.c.l.b16 %v1432
        %v1465 = vunpack.c.l.b16 %v1433
        %v1466 = vunpack.c.l.b16 %v1434
        %v1467 = vunpack.c.l.b16 %v1435
        %v1468 = vunpack.c.l.b16 %v1436
        %v1469 = vunpack.c.l.b16 %v1437
        %v1470 = vunpack.c.l.b16 %v1438
        %v1471 = vunpack.c.l.b16 %v1439
        %v1472 = vunpack.c.l.b16 %v1440
        %v1473 = vunpack.c.l.b16 %v1441
        %v1474 = vpack.c.b16 %v1459, %v1458
        %v1475 = vpack.c.b16 %v1461, %v1460
        %v1476 = vpack.c.b16 %v1463, %v1462
        %v1477 = vpack.c.b16 %v1465, %v1464
        %v1478 = vpack.c.b16 %v1467, %v1466
        %v1479 = vpack.c.b16 %v1469, %v1468
        %v1480 = vpack.c.b16 %v1471, %v1470
        %v1481 = vpack.c.b16 %v1473, %v1472
        %v1483 = vsel %vm813, %v1474, 0
        %v1486 = vsel %vm813, %v1475, 0
        %v1489 = vsel %vm813, %v1476, 0
        %v1492 = vsel %vm813, %v1477, 0
        %v1495 = vsel %vm813, %v1478, 0
        %v1498 = vsel %vm813, %v1479, 0
        %v1501 = vsel %vm813, %v1480, 0
        %v1504 = vsel %vm813, %v1481, 0
        %1506 = vmatprep.subr.bf16.mxu0 0
        %1507 = vmatpush1.bf16.msra.mxu0 %v1122
        %1508 = vmatprep.subr.bf16.mxu0 0
        %1509 = vmatpush1.bf16.msra.mxu0 %v1123
        %1510 = vmatprep.subr.bf16.mxu0 0
        %1511 = vmatpush1.bf16.msra.mxu0 0
        %1512 = vmatprep.subr.bf16.mxu0 0
        %1513 = vmatpush1.bf16.msra.mxu0 0
        %1514 = vmatprep.subr.bf16.mxu0 0
        %1515 = vmatpush1.bf16.msra.mxu0 0
        %1516 = vmatprep.subr.bf16.mxu0 0
        %1517 = vmatpush1.bf16.msra.mxu0 0
        %1518 = vmatprep.subr.bf16.mxu0 0
        %1519 = vmatpush1.bf16.msra.mxu0 0
        %1520 = vmatprep.subr.bf16.mxu0 0
        %1521 = vmatpush1.bf16.msra.mxu0 0
        %1522 = vmatprep.subr.bf16.mxu0 0
        %1523 = vmatpush1.bf16.msra.mxu0 0
        %1524 = vmatprep.subr.bf16.mxu0 0
        %1525 = vmatpush1.bf16.msra.mxu0 0
        %1526 = vmatprep.subr.bf16.mxu0 0
        %1527 = vmatpush1.bf16.msra.mxu0 0
        %1528 = vmatprep.subr.bf16.mxu0 0
        %1529 = vmatpush1.bf16.msra.mxu0 0
        %1530 = vmatprep.subr.bf16.mxu0 0
        %1531 = vmatpush1.bf16.msra.mxu0 0
        %1532 = vmatprep.subr.bf16.mxu0 0
        %1533 = vmatpush1.bf16.msra.mxu0 0
        %1534 = vmatprep.subr.bf16.mxu0 0
        %1535 = vmatpush1.bf16.msra.mxu0 0
        %1536 = vmatprep.subr.bf16.mxu0 0
        %1537 = vmatpush1.bf16.msra.mxu0 0
        %1538 = vmatprep.mubr.bf16.mxu0 0
        %1539 = vmatmul.mubr.bf16.gmra.mrb[0].mxu0 %v1483
        %v1540 = vpop.f32.mrb[0].mxu0
        %v1541 = vadd.f32 %v1072, %v1540
        %v1542 = vpop.f32.mrb[0].mxu0
        %v1543 = vpop.f32.mrb[0].mxu0
        %v1544 = vadd.f32 %v1072, %v1543
        %v1545 = vpop.f32.mrb[0].mxu0
        %1546 = vmatprep.mubr.bf16.mxu0 0
        %1547 = vmatmul.mubr.bf16.gmra.mrb[0].mxu0 %v1486
        %v1548 = vpop.f32.mrb[0].mxu0
        %v1549 = vadd.f32 %v1072, %v1548
        %v1550 = vpop.f32.mrb[0].mxu0
        %v1551 = vpop.f32.mrb[0].mxu0
        %v1552 = vadd.f32 %v1072, %v1551
        %v1553 = vpop.f32.mrb[0].mxu0
        %1554 = vmatprep.mubr.bf16.mxu0 0
        %1555 = vmatmul.mubr.bf16.gmra.mrb[0].mxu0 %v1489
        %v1556 = vpop.f32.mrb[0].mxu0
        %v1557 = vadd.f32 %v1072, %v1556
        %v1558 = vpop.f32.mrb[0].mxu0
        %v1559 = vpop.f32.mrb[0].mxu0
        %v1560 = vadd.f32 %v1072, %v1559
        %v1561 = vpop.f32.mrb[0].mxu0
        %1562 = vmatprep.mubr.bf16.mxu0 0
        %1563 = vmatmul.mubr.bf16.gmra.mrb[0].mxu0 %v1492
        %v1564 = vpop.f32.mrb[0].mxu0
        %v1565 = vadd.f32 %v1072, %v1564
        %v1566 = vpop.f32.mrb[0].mxu0
        %v1567 = vpop.f32.mrb[0].mxu0
        %v1568 = vadd.f32 %v1072, %v1567
        %v1569 = vpop.f32.mrb[0].mxu0
        %1570 = vmatprep.mubr.bf16.mxu0 0
        %1571 = vmatmul.mubr.bf16.gmra.mrb[0].mxu0 %v1495
        %v1572 = vpop.f32.mrb[0].mxu0
        %v1573 = vadd.f32 %v1072, %v1572
        %v1574 = vpop.f32.mrb[0].mxu0
        %v1575 = vpop.f32.mrb[0].mxu0
        %v1576 = vadd.f32 %v1072, %v1575
        %v1577 = vpop.f32.mrb[0].mxu0
        %1578 = vmatprep.mubr.bf16.mxu0 0
        %1579 = vmatmul.mubr.bf16.gmra.mrb[0].mxu0 %v1498
        %v1580 = vpop.f32.mrb[0].mxu0
        %v1581 = vadd.f32 %v1072, %v1580
        %v1582 = vpop.f32.mrb[0].mxu0
        %v1583 = vpop.f32.mrb[0].mxu0
        %v1584 = vadd.f32 %v1072, %v1583
        %v1585 = vpop.f32.mrb[0].mxu0
        %1586 = vmatprep.mubr.bf16.mxu0 0
        %1587 = vmatmul.mubr.bf16.gmra.mrb[0].mxu0 %v1501
        %v1588 = vpop.f32.mrb[0].mxu0
        %v1589 = vadd.f32 %v1072, %v1588
        %v1590 = vpop.f32.mrb[0].mxu0
        %v1591 = vpop.f32.mrb[0].mxu0
        %v1592 = vadd.f32 %v1072, %v1591
        %v1593 = vpop.f32.mrb[0].mxu0
        %1594 = vmatprep.mubr.bf16.mxu0 0
        %1595 = vmatmul.mubr.bf16.gmra.mrb[0].mxu0 %v1504
        %v1596 = vpop.f32.mrb[0].mxu0
        %v1597 = vadd.f32 %v1072, %v1596
        %v1598 = vpop.f32.mrb[0].mxu0
        %v1599 = vpop.f32.mrb[0].mxu0
        %v1600 = vadd.f32 %v1072, %v1599
        %v1601 = vpop.f32.mrb[0].mxu0
        %1602 = vdwg.mxu0
        %1604 = vset.pattern.permute.xlu0 0
        %1605 = vperm.xlu0 %1604, %v718
        %v1606 = vpop.permute.xlu0 %1605
        %1609 = vset.pattern.permute.xlu0 0
        %1610 = vperm.xlu0 %1609, %v719
        %v1611 = vpop.permute.xlu0 %1610
        %1614 = vset.pattern.permute.xlu0 0
        %1615 = vperm.xlu0 %1614, %v720
        %v1616 = vpop.permute.xlu0 %1615
        %1619 = vset.pattern.permute.xlu0 0
        %1620 = vperm.xlu0 %1619, %v721
        %v1621 = vpop.permute.xlu0 %1620
        %1624 = vset.pattern.permute.xlu0 0
        %1625 = vperm.xlu0 %1624, %v722
        %v1626 = vpop.permute.xlu0 %1625
        %1629 = vset.pattern.permute.xlu0 0
        %1630 = vperm.xlu0 %1629, %v723
        %v1631 = vpop.permute.xlu0 %1630
        %1634 = vset.pattern.permute.xlu0 0
        %1635 = vperm.xlu0 %1634, %v724
        %v1636 = vpop.permute.xlu0 %1635
        %1639 = vset.pattern.permute.xlu0 0
        %1640 = vperm.xlu0 %1639, %v725
        %v1641 = vpop.permute.xlu0 %1640
        %1644 = vset.pattern.permute.xlu0 0
        %1645 = vperm.xlu0 %1644, %v726
        %v1646 = vpop.permute.xlu0 %1645
        %1649 = vset.pattern.permute.xlu0 0
        %1650 = vperm.xlu0 %1649, %v727
        %v1651 = vpop.permute.xlu0 %1650
        %1654 = vset.pattern.permute.xlu0 0
        %1655 = vperm.xlu0 %1654, %v728
        %v1656 = vpop.permute.xlu0 %1655
        %1659 = vset.pattern.permute.xlu0 0
        %1660 = vperm.xlu0 %1659, %v729
        %v1661 = vpop.permute.xlu0 %1660
        %1664 = vset.pattern.permute.xlu0 0
        %1665 = vperm.xlu0 %1664, %v730
        %v1666 = vpop.permute.xlu0 %1665
        %1669 = vset.pattern.permute.xlu0 0
        %1670 = vperm.xlu0 %1669, %v731
        %v1671 = vpop.permute.xlu0 %1670
        %1674 = vset.pattern.permute.xlu0 0
        %1675 = vperm.xlu0 %1674, %v732
        %v1676 = vpop.permute.xlu0 %1675
        %1679 = vset.pattern.permute.xlu0 0
        %1680 = vperm.xlu0 %1679, %v733
        %v1681 = vpop.permute.xlu0 %1680
        %v1683 = vmul.f32 %v1185, %v1606
        %v1684 = vmul.f32 %v1188, %v1611
        %v1685 = vmul.f32 %v1193, %v1616
        %v1686 = vmul.f32 %v1196, %v1621
        %v1687 = vmul.f32 %v1201, %v1626
        %v1688 = vmul.f32 %v1204, %v1631
        %v1689 = vmul.f32 %v1209, %v1636
        %v1690 = vmul.f32 %v1212, %v1641
        %v1691 = vmul.f32 %v1217, %v1646
        %v1692 = vmul.f32 %v1220, %v1651
        %v1693 = vmul.f32 %v1225, %v1656
        %v1694 = vmul.f32 %v1228, %v1661
        %v1695 = vmul.f32 %v1233, %v1666
        %v1696 = vmul.f32 %v1236, %v1671
        %v1697 = vmul.f32 %v1241, %v1676
        %v1698 = vmul.f32 %v1244, %v1681
        %1699 = vset.pattern.permute.xlu0 1
        %1700 = vperm.xlu0 %1699, %v718
        %v1701 = vpop.permute.xlu0 %1700
        %1703 = vset.pattern.permute.xlu0 1
        %1704 = vperm.xlu0 %1703, %v719
        %v1705 = vpop.permute.xlu0 %1704
        %1707 = vset.pattern.permute.xlu0 1
        %1708 = vperm.xlu0 %1707, %v720
        %v1709 = vpop.permute.xlu0 %1708
        %1711 = vset.pattern.permute.xlu0 1
        %1712 = vperm.xlu0 %1711, %v721
        %v1713 = vpop.permute.xlu0 %1712
        %1715 = vset.pattern.permute.xlu0 1
        %1716 = vperm.xlu0 %1715, %v722
        %v1717 = vpop.permute.xlu0 %1716
        %1719 = vset.pattern.permute.xlu0 1
        %1720 = vperm.xlu0 %1719, %v723
        %v1721 = vpop.permute.xlu0 %1720
        %1723 = vset.pattern.permute.xlu0 1
        %1724 = vperm.xlu0 %1723, %v724
        %v1725 = vpop.permute.xlu0 %1724
        %1727 = vset.pattern.permute.xlu0 1
        %1728 = vperm.xlu0 %1727, %v725
        %v1729 = vpop.permute.xlu0 %1728
        %1731 = vset.pattern.permute.xlu0 1
        %1732 = vperm.xlu0 %1731, %v726
        %v1733 = vpop.permute.xlu0 %1732
        %1735 = vset.pattern.permute.xlu0 1
        %1736 = vperm.xlu0 %1735, %v727
        %v1737 = vpop.permute.xlu0 %1736
        %1739 = vset.pattern.permute.xlu0 1
        %1740 = vperm.xlu0 %1739, %v728
        %v1741 = vpop.permute.xlu0 %1740
        %1743 = vset.pattern.permute.xlu0 1
        %1744 = vperm.xlu0 %1743, %v729
        %v1745 = vpop.permute.xlu0 %1744
        %1747 = vset.pattern.permute.xlu0 1
        %1748 = vperm.xlu0 %1747, %v730
        %v1749 = vpop.permute.xlu0 %1748
        %1751 = vset.pattern.permute.xlu0 1
        %1752 = vperm.xlu0 %1751, %v731
        %v1753 = vpop.permute.xlu0 %1752
        %1755 = vset.pattern.permute.xlu0 1
        %1756 = vperm.xlu0 %1755, %v732
        %v1757 = vpop.permute.xlu0 %1756
        %1759 = vset.pattern.permute.xlu0 1
        %1760 = vperm.xlu0 %1759, %v733
        %v1761 = vpop.permute.xlu0 %1760
        %v1763 = vmul.f32 %v1363, %v1701
        %v1764 = vmul.f32 %v1366, %v1705
        %v1765 = vmul.f32 %v1371, %v1709
        %v1766 = vmul.f32 %v1374, %v1713
        %v1767 = vmul.f32 %v1379, %v1717
        %v1768 = vmul.f32 %v1382, %v1721
        %v1769 = vmul.f32 %v1387, %v1725
        %v1770 = vmul.f32 %v1390, %v1729
        %v1771 = vmul.f32 %v1395, %v1733
        %v1772 = vmul.f32 %v1398, %v1737
        %v1773 = vmul.f32 %v1403, %v1741
        %v1774 = vmul.f32 %v1406, %v1745
        %v1775 = vmul.f32 %v1411, %v1749
        %v1776 = vmul.f32 %v1414, %v1753
        %v1777 = vmul.f32 %v1419, %v1757
        %v1778 = vmul.f32 %v1422, %v1761
        %v1779 = vadd.f32 %v1683, %v1763
        %v1780 = vadd.f32 %v1684, %v1764
        %v1781 = vadd.f32 %v1685, %v1765
        %v1782 = vadd.f32 %v1686, %v1766
        %v1783 = vadd.f32 %v1687, %v1767
        %v1784 = vadd.f32 %v1688, %v1768
        %v1785 = vadd.f32 %v1689, %v1769
        %v1786 = vadd.f32 %v1690, %v1770
        %v1787 = vadd.f32 %v1691, %v1771
        %v1788 = vadd.f32 %v1692, %v1772
        %v1789 = vadd.f32 %v1693, %v1773
        %v1790 = vadd.f32 %v1694, %v1774
        %v1791 = vadd.f32 %v1695, %v1775
        %v1792 = vadd.f32 %v1696, %v1776
        %v1793 = vadd.f32 %v1697, %v1777
        %v1794 = vadd.f32 %v1698, %v1778
        %1795 = vset.pattern.permute.xlu0 2
        %1796 = vperm.xlu0 %1795, %v718
        %v1797 = vpop.permute.xlu0 %1796
        %1799 = vset.pattern.permute.xlu0 2
        %1800 = vperm.xlu0 %1799, %v719
        %v1801 = vpop.permute.xlu0 %1800
        %1803 = vset.pattern.permute.xlu0 2
        %1804 = vperm.xlu0 %1803, %v720
        %v1805 = vpop.permute.xlu0 %1804
        %1807 = vset.pattern.permute.xlu0 2
        %1808 = vperm.xlu0 %1807, %v721
        %v1809 = vpop.permute.xlu0 %1808
        %1811 = vset.pattern.permute.xlu0 2
        %1812 = vperm.xlu0 %1811, %v722
        %v1813 = vpop.permute.xlu0 %1812
        %1815 = vset.pattern.permute.xlu0 2
        %1816 = vperm.xlu0 %1815, %v723
        %v1817 = vpop.permute.xlu0 %1816
        %1819 = vset.pattern.permute.xlu0 2
        %1820 = vperm.xlu0 %1819, %v724
        %v1821 = vpop.permute.xlu0 %1820
        %1823 = vset.pattern.permute.xlu0 2
        %1824 = vperm.xlu0 %1823, %v725
        %v1825 = vpop.permute.xlu0 %1824
        %1827 = vset.pattern.permute.xlu0 2
        %1828 = vperm.xlu0 %1827, %v726
        %v1829 = vpop.permute.xlu0 %1828
        %1831 = vset.pattern.permute.xlu0 2
        %1832 = vperm.xlu0 %1831, %v727
        %v1833 = vpop.permute.xlu0 %1832
        %1835 = vset.pattern.permute.xlu0 2
        %1836 = vperm.xlu0 %1835, %v728
        %v1837 = vpop.permute.xlu0 %1836
        %1839 = vset.pattern.permute.xlu0 2
        %1840 = vperm.xlu0 %1839, %v729
        %v1841 = vpop.permute.xlu0 %1840
        %1843 = vset.pattern.permute.xlu0 2
        %1844 = vperm.xlu0 %1843, %v730
        %v1845 = vpop.permute.xlu0 %1844
        %1847 = vset.pattern.permute.xlu0 2
        %1848 = vperm.xlu0 %1847, %v731
        %v1849 = vpop.permute.xlu0 %1848
        %1851 = vset.pattern.permute.xlu0 2
        %1852 = vperm.xlu0 %1851, %v732
        %v1853 = vpop.permute.xlu0 %1852
        %1855 = vset.pattern.permute.xlu0 2
        %1856 = vperm.xlu0 %1855, %v733
        %v1857 = vpop.permute.xlu0 %1856
        %v1859 = vmul.f32 %v1541, %v1797
        %v1860 = vmul.f32 %v1544, %v1801
        %v1861 = vmul.f32 %v1549, %v1805
        %v1862 = vmul.f32 %v1552, %v1809
        %v1863 = vmul.f32 %v1557, %v1813
        %v1864 = vmul.f32 %v1560, %v1817
        %v1865 = vmul.f32 %v1565, %v1821
        %v1866 = vmul.f32 %v1568, %v1825
        %v1867 = vmul.f32 %v1573, %v1829
        %v1868 = vmul.f32 %v1576, %v1833
        %v1869 = vmul.f32 %v1581, %v1837
        %v1870 = vmul.f32 %v1584, %v1841
        %v1871 = vmul.f32 %v1589, %v1845
        %v1872 = vmul.f32 %v1592, %v1849
        %v1873 = vmul.f32 %v1597, %v1853
        %v1874 = vmul.f32 %v1600, %v1857
        %v1875 = vadd.f32 %v1779, %v1859
        %v1876 = vadd.f32 %v1780, %v1860
        %v1877 = vadd.f32 %v1781, %v1861
        %v1878 = vadd.f32 %v1782, %v1862
        %v1879 = vadd.f32 %v1783, %v1863
        %v1880 = vadd.f32 %v1784, %v1864
        %v1881 = vadd.f32 %v1785, %v1865
        %v1882 = vadd.f32 %v1786, %v1866
        %v1883 = vadd.f32 %v1787, %v1867
        %v1884 = vadd.f32 %v1788, %v1868
        %v1885 = vadd.f32 %v1789, %v1869
        %v1886 = vadd.f32 %v1790, %v1870
        %v1887 = vadd.f32 %v1791, %v1871
        %v1888 = vadd.f32 %v1792, %v1872
        %v1889 = vadd.f32 %v1793, %v1873
        %v1890 = vadd.f32 %v1794, %v1874
        %v1891 = vxor.u32 %v1875, 2147483648
        %v1892 = vxor.u32 %v1876, 2147483648
        %v1893 = vxor.u32 %v1877, 2147483648
        %v1894 = vxor.u32 %v1878, 2147483648
        %v1895 = vxor.u32 %v1879, 2147483648
        %v1896 = vxor.u32 %v1880, 2147483648
        %v1897 = vxor.u32 %v1881, 2147483648
        %v1898 = vxor.u32 %v1882, 2147483648
        %v1899 = vxor.u32 %v1883, 2147483648
        %v1900 = vxor.u32 %v1884, 2147483648
        %v1901 = vxor.u32 %v1885, 2147483648
        %v1902 = vxor.u32 %v1886, 2147483648
        %v1903 = vxor.u32 %v1887, 2147483648
        %v1904 = vxor.u32 %v1888, 2147483648
        %v1905 = vxor.u32 %v1889, 2147483648
        %v1906 = vxor.u32 %v1890, 2147483648
        %v1907 = vmul.f32 %v1891, 1.442695
        %v1908 = vpow.pop %v1907
        %v1909 = vmul.f32 %v1892, 1.442695
        %v1910 = vpow.pop %v1909
        %v1911 = vmul.f32 %v1893, 1.442695
        %v1912 = vpow.pop %v1911
        %v1913 = vmul.f32 %v1894, 1.442695
        %v1914 = vpow.pop %v1913
        %v1915 = vmul.f32 %v1895, 1.442695
        %v1916 = vpow.pop %v1915
        %v1917 = vmul.f32 %v1896, 1.442695
        %v1918 = vpow.pop %v1917
        %v1919 = vmul.f32 %v1897, 1.442695
        %v1920 = vpow.pop %v1919
        %v1921 = vmul.f32 %v1898, 1.442695
        %v1922 = vpow.pop %v1921
        %v1923 = vmul.f32 %v1899, 1.442695
        %v1924 = vpow.pop %v1923
        %v1925 = vmul.f32 %v1900, 1.442695
        %v1926 = vpow.pop %v1925
        %v1927 = vmul.f32 %v1901, 1.442695
        %v1928 = vpow.pop %v1927
        %v1929 = vmul.f32 %v1902, 1.442695
        %v1930 = vpow.pop %v1929
        %v1931 = vmul.f32 %v1903, 1.442695
        %v1932 = vpow.pop %v1931
        %v1933 = vmul.f32 %v1904, 1.442695
        %v1934 = vpow.pop %v1933
        %v1935 = vmul.f32 %v1905, 1.442695
        %v1936 = vpow.pop %v1935
        %v1937 = vmul.f32 %v1906, 1.442695
        %v1938 = vpow.pop %v1937
        %v1939 = vadd.f32 %v1908, 1.0
        %v1940 = vadd.f32 %v1910, 1.0
        %v1941 = vadd.f32 %v1912, 1.0
        %v1942 = vadd.f32 %v1914, 1.0
        %v1943 = vadd.f32 %v1916, 1.0
        %v1944 = vadd.f32 %v1918, 1.0
        %v1945 = vadd.f32 %v1920, 1.0
        %v1946 = vadd.f32 %v1922, 1.0
        %v1947 = vadd.f32 %v1924, 1.0
        %v1948 = vadd.f32 %v1926, 1.0
        %v1949 = vadd.f32 %v1928, 1.0
        %v1950 = vadd.f32 %v1930, 1.0
        %v1951 = vadd.f32 %v1932, 1.0
        %v1952 = vadd.f32 %v1934, 1.0
        %v1953 = vadd.f32 %v1936, 1.0
        %v1954 = vadd.f32 %v1938, 1.0
        %v1955 = vrcp.pop %v1939
        %v1956 = vmul.f32 1.0, %v1955
        %v1957 = vrcp.pop %v1940
        %v1958 = vmul.f32 1.0, %v1957
        %v1959 = vrcp.pop %v1941
        %v1960 = vmul.f32 1.0, %v1959
        %v1961 = vrcp.pop %v1942
        %v1962 = vmul.f32 1.0, %v1961
        %v1963 = vrcp.pop %v1943
        %v1964 = vmul.f32 1.0, %v1963
        %v1965 = vrcp.pop %v1944
        %v1966 = vmul.f32 1.0, %v1965
        %v1967 = vrcp.pop %v1945
        %v1968 = vmul.f32 1.0, %v1967
        %v1969 = vrcp.pop %v1946
        %v1970 = vmul.f32 1.0, %v1969
        %v1971 = vrcp.pop %v1947
        %v1972 = vmul.f32 1.0, %v1971
        %v1973 = vrcp.pop %v1948
        %v1974 = vmul.f32 1.0, %v1973
        %v1975 = vrcp.pop %v1949
        %v1976 = vmul.f32 1.0, %v1975
        %v1977 = vrcp.pop %v1950
        %v1978 = vmul.f32 1.0, %v1977
        %v1979 = vrcp.pop %v1951
        %v1980 = vmul.f32 1.0, %v1979
        %v1981 = vrcp.pop %v1952
        %v1982 = vmul.f32 1.0, %v1981
        %v1983 = vrcp.pop %v1953
        %v1984 = vmul.f32 1.0, %v1983
        %v1985 = vrcp.pop %v1954
        %v1986 = vmul.f32 1.0, %v1985
        %v1987 = vmul.f32 %v1875, %v1956
        %v1988 = vmul.f32 %v1876, %v1958
        %v1989 = vmul.f32 %v1877, %v1960
        %v1990 = vmul.f32 %v1878, %v1962
        %v1991 = vmul.f32 %v1879, %v1964
        %v1992 = vmul.f32 %v1880, %v1966
        %v1993 = vmul.f32 %v1881, %v1968
        %v1994 = vmul.f32 %v1882, %v1970
        %v1995 = vmul.f32 %v1883, %v1972
        %v1996 = vmul.f32 %v1884, %v1974
        %v1997 = vmul.f32 %v1885, %v1976
        %v1998 = vmul.f32 %v1886, %v1978
        %v1999 = vmul.f32 %v1887, %v1980
        %v2000 = vmul.f32 %v1888, %v1982
        %v2001 = vmul.f32 %v1889, %v1984
        %v2002 = vmul.f32 %v1890, %v1986
        %v2003 = vpack.c.bf16 %v1032, %v1031
        %v2004 = vpack.c.bf16 %v1034, %v1033
        %v2005 = vpack.c.bf16 %v1036, %v1035
        %v2006 = vpack.c.bf16 %v1038, %v1037
        %v2007 = vpack.c.bf16 %v1040, %v1039
        %v2008 = vpack.c.bf16 %v1042, %v1041
        %v2009 = vpack.c.bf16 %v1044, %v1043
        %v2010 = vpack.c.bf16 %v1046, %v1045
        %v2011 = vld [vmem:[%s7] sm:$0xf]
        %v2012 = vld [vmem:[%s7 + $0x4] sm:$0xf]
        %v2013 = vpack.c.bf16 %v1988, %v1987
        %v2014 = vpack.c.bf16 %v1990, %v1989
        %v2015 = vpack.c.bf16 %v1992, %v1991
        %v2016 = vpack.c.bf16 %v1994, %v1993
        %v2017 = vpack.c.bf16 %v1996, %v1995
        %v2018 = vpack.c.bf16 %v1998, %v1997
        %v2019 = vpack.c.bf16 %v2000, %v1999
        %v2020 = vpack.c.bf16 %v2002, %v2001
        %v2021 = vld [vmem:[%s8] sm:$0xf]
        %v2022 = vld [vmem:[%s8 + $0x4] sm:$0xf]
        %v2025 = vunpack.c.l.b16 %v2021
        %v2026 = vunpack.c.l.b16 %v2022
        %v2027 = vpack.c.b16 %v2026, %v2025
        %vm2029 = vcmask 130048
        %v2031 = vsel %vm2029, %v2013, 0
        %v2034 = vsel %vm2029, %v2014, 0
        %v2037 = vsel %vm2029, %v2015, 0
        %v2040 = vsel %vm2029, %v2016, 0
        %v2043 = vsel %vm2029, %v2017, 0
        %v2046 = vsel %vm2029, %v2018, 0
        %v2049 = vsel %vm2029, %v2019, 0
        %v2052 = vsel %vm2029, %v2020, 0
        %2054 = vmatprep.subr.bf16.mxu0 0
        %2055 = vmatpush1.bf16.msra.mxu0 %v2027
        %2056 = vmatprep.subr.bf16.mxu0 0
        %2057 = vmatpush1.bf16.msra.mxu0 0
        %2058 = vmatprep.subr.bf16.mxu0 0
        %2059 = vmatpush1.bf16.msra.mxu0 0
        %2060 = vmatprep.subr.bf16.mxu0 0
        %2061 = vmatpush1.bf16.msra.mxu0 0
        %2062 = vmatprep.subr.bf16.mxu0 0
        %2063 = vmatpush1.bf16.msra.mxu0 0
        %2064 = vmatprep.subr.bf16.mxu0 0
        %2065 = vmatpush1.bf16.msra.mxu0 0
        %2066 = vmatprep.subr.bf16.mxu0 0
        %2067 = vmatpush1.bf16.msra.mxu0 0
        %2068 = vmatprep.subr.bf16.mxu0 0
        %2069 = vmatpush1.bf16.msra.mxu0 0
        %2070 = vmatprep.subr.bf16.mxu0 0
        %2071 = vmatpush1.bf16.msra.mxu0 0
        %2072 = vmatprep.subr.bf16.mxu0 0
        %2073 = vmatpush1.bf16.msra.mxu0 0
        %2074 = vmatprep.subr.bf16.mxu0 0
        %2075 = vmatpush1.bf16.msra.mxu0 0
        %2076 = vmatprep.subr.bf16.mxu0 0
        %2077 = vmatpush1.bf16.msra.mxu0 0
        %2078 = vmatprep.subr.bf16.mxu0 0
        %2079 = vmatpush1.bf16.msra.mxu0 0
        %2080 = vmatprep.subr.bf16.mxu0 0
        %2081 = vmatpush1.bf16.msra.mxu0 0
        %2082 = vmatprep.subr.bf16.mxu0 0
        %2083 = vmatpush1.bf16.msra.mxu0 0
        %2084 = vmatprep.subr.bf16.mxu0 0
        %2085 = vmatpush1.bf16.msra.mxu0 0
        %2086 = vmatprep.mubr.bf16.mxu0 0
        %2087 = vmatmul.mubr.bf16.gmra.mrb[0].mxu0 %v2031
        %v2088 = vpop.f32.mrb[0].mxu0
        %v2089 = vadd.f32 0.0, %v2088
        %v2090 = vpop.f32.mrb[0].mxu0
        %v2091 = vpop.f32.mrb[0].mxu0
        %v2092 = vadd.f32 0.0, %v2091
        %v2093 = vpop.f32.mrb[0].mxu0
        %2094 = vmatprep.mubr.bf16.mxu0 0
        %2095 = vmatmul.mubr.bf16.gmra.mrb[0].mxu0 %v2034
        %v2096 = vpop.f32.mrb[0].mxu0
        %v2097 = vadd.f32 0.0, %v2096
        %v2098 = vpop.f32.mrb[0].mxu0
        %v2099 = vpop.f32.mrb[0].mxu0
        %v2100 = vadd.f32 0.0, %v2099
        %v2101 = vpop.f32.mrb[0].mxu0
        %2102 = vmatprep.mubr.bf16.mxu0 0
        %2103 = vmatmul.mubr.bf16.gmra.mrb[0].mxu0 %v2037
        %v2104 = vpop.f32.mrb[0].mxu0
        %v2105 = vadd.f32 0.0, %v2104
        %v2106 = vpop.f32.mrb[0].mxu0
        %v2107 = vpop.f32.mrb[0].mxu0
        %v2108 = vadd.f32 0.0, %v2107
        %v2109 = vpop.f32.mrb[0].mxu0
        %2110 = vmatprep.mubr.bf16.mxu0 0
        %2111 = vmatmul.mubr.bf16.gmra.mrb[0].mxu0 %v2040
        %v2112 = vpop.f32.mrb[0].mxu0
        %v2113 = vadd.f32 0.0, %v2112
        %v2114 = vpop.f32.mrb[0].mxu0
        %v2115 = vpop.f32.mrb[0].mxu0
        %v2116 = vadd.f32 0.0, %v2115
        %v2117 = vpop.f32.mrb[0].mxu0
        %2118 = vmatprep.mubr.bf16.mxu0 0
        %2119 = vmatmul.mubr.bf16.gmra.mrb[0].mxu0 %v2043
        %v2120 = vpop.f32.mrb[0].mxu0
        %v2121 = vadd.f32 0.0, %v2120
        %v2122 = vpop.f32.mrb[0].mxu0
        %v2123 = vpop.f32.mrb[0].mxu0
        %v2124 = vadd.f32 0.0, %v2123
        %v2125 = vpop.f32.mrb[0].mxu0
        %2126 = vmatprep.mubr.bf16.mxu0 0
        %2127 = vmatmul.mubr.bf16.gmra.mrb[0].mxu0 %v2046
        %v2128 = vpop.f32.mrb[0].mxu0
        %v2129 = vadd.f32 0.0, %v2128
        %v2130 = vpop.f32.mrb[0].mxu0
        %v2131 = vpop.f32.mrb[0].mxu0
        %v2132 = vadd.f32 0.0, %v2131
        %v2133 = vpop.f32.mrb[0].mxu0
        %2134 = vmatprep.mubr.bf16.mxu0 0
        %2135 = vmatmul.mubr.bf16.gmra.mrb[0].mxu0 %v2049
        %v2136 = vpop.f32.mrb[0].mxu0
        %v2137 = vadd.f32 0.0, %v2136
        %v2138 = vpop.f32.mrb[0].mxu0
        %v2139 = vpop.f32.mrb[0].mxu0
        %v2140 = vadd.f32 0.0, %v2139
        %v2141 = vpop.f32.mrb[0].mxu0
        %2142 = vmatprep.mubr.bf16.mxu0 0
        %2143 = vmatmul.mubr.bf16.gmra.mrb[0].mxu0 %v2052
        %v2144 = vpop.f32.mrb[0].mxu0
        %v2145 = vadd.f32 0.0, %v2144
        %v2146 = vpop.f32.mrb[0].mxu0
        %v2147 = vpop.f32.mrb[0].mxu0
        %v2148 = vadd.f32 0.0, %v2147
        %v2149 = vpop.f32.mrb[0].mxu0
        %2150 = vdwg.mxu0
        %v2153 = vunpack.c.l.b16 %v2011
        %v2154 = vunpack.c.l.b16 %v2012
        %v2155 = vpack.c.b16 %v2154, %v2153
        %v2158 = vsel %vm2029, %v2003, 0
        %v2161 = vsel %vm2029, %v2004, 0
        %v2164 = vsel %vm2029, %v2005, 0
        %v2167 = vsel %vm2029, %v2006, 0
        %v2170 = vsel %vm2029, %v2007, 0
        %v2173 = vsel %vm2029, %v2008, 0
        %v2176 = vsel %vm2029, %v2009, 0
        %v2179 = vsel %vm2029, %v2010, 0
        %2181 = vmatprep.subr.bf16.mxu0 0
        %2182 = vmatpush1.bf16.msra.mxu0 %v2155
        %2183 = vmatprep.subr.bf16.mxu0 0
        %2184 = vmatpush1.bf16.msra.mxu0 0
        %2185 = vmatprep.subr.bf16.mxu0 0
        %2186 = vmatpush1.bf16.msra.mxu0 0
        %2187 = vmatprep.subr.bf16.mxu0 0
        %2188 = vmatpush1.bf16.msra.mxu0 0
        %2189 = vmatprep.subr.bf16.mxu0 0
        %2190 = vmatpush1.bf16.msra.mxu0 0
        %2191 = vmatprep.subr.bf16.mxu0 0
        %2192 = vmatpush1.bf16.msra.mxu0 0
        %2193 = vmatprep.subr.bf16.mxu0 0
        %2194 = vmatpush1.bf16.msra.mxu0 0
        %2195 = vmatprep.subr.bf16.mxu0 0
        %2196 = vmatpush1.bf16.msra.mxu0 0
        %2197 = vmatprep.subr.bf16.mxu0 0
        %2198 = vmatpush1.bf16.msra.mxu0 0
        %2199 = vmatprep.subr.bf16.mxu0 0
        %2200 = vmatpush1.bf16.msra.mxu0 0
        %2201 = vmatprep.subr.bf16.mxu0 0
        %2202 = vmatpush1.bf16.msra.mxu0 0
        %2203 = vmatprep.subr.bf16.mxu0 0
        %2204 = vmatpush1.bf16.msra.mxu0 0
        %2205 = vmatprep.subr.bf16.mxu0 0
        %2206 = vmatpush1.bf16.msra.mxu0 0
        %2207 = vmatprep.subr.bf16.mxu0 0
        %2208 = vmatpush1.bf16.msra.mxu0 0
        %2209 = vmatprep.subr.bf16.mxu0 0
        %2210 = vmatpush1.bf16.msra.mxu0 0
        %2211 = vmatprep.subr.bf16.mxu0 0
        %2212 = vmatpush1.bf16.msra.mxu0 0
        %2213 = vmatprep.mubr.bf16.mxu0 0
        %2214 = vmatmul.mubr.bf16.gmra.mrb[0].mxu0 %v2158
        %v2215 = vpop.f32.mrb[0].mxu0
        %v2216 = vadd.f32 %v2089, %v2215
        %v2217 = vpop.f32.mrb[0].mxu0
        %v2218 = vpop.f32.mrb[0].mxu0
        %v2219 = vadd.f32 %v2092, %v2218
        %v2220 = vpop.f32.mrb[0].mxu0
        %2221 = vmatprep.mubr.bf16.mxu0 0
        %2222 = vmatmul.mubr.bf16.gmra.mrb[0].mxu0 %v2161
        %v2223 = vpop.f32.mrb[0].mxu0
        %v2224 = vadd.f32 %v2097, %v2223
        %v2225 = vpop.f32.mrb[0].mxu0
        %v2226 = vpop.f32.mrb[0].mxu0
        %v2227 = vadd.f32 %v2100, %v2226
        %v2228 = vpop.f32.mrb[0].mxu0
        %2229 = vmatprep.mubr.bf16.mxu0 0
        %2230 = vmatmul.mubr.bf16.gmra.mrb[0].mxu0 %v2164
        %v2231 = vpop.f32.mrb[0].mxu0
        %v2232 = vadd.f32 %v2105, %v2231
        %v2233 = vpop.f32.mrb[0].mxu0
        %v2234 = vpop.f32.mrb[0].mxu0
        %v2235 = vadd.f32 %v2108, %v2234
        %v2236 = vpop.f32.mrb[0].mxu0
        %2237 = vmatprep.mubr.bf16.mxu0 0
        %2238 = vmatmul.mubr.bf16.gmra.mrb[0].mxu0 %v2167
        %v2239 = vpop.f32.mrb[0].mxu0
        %v2240 = vadd.f32 %v2113, %v2239
        %v2241 = vpop.f32.mrb[0].mxu0
        %v2242 = vpop.f32.mrb[0].mxu0
        %v2243 = vadd.f32 %v2116, %v2242
        %v2244 = vpop.f32.mrb[0].mxu0
        %2245 = vmatprep.mubr.bf16.mxu0 0
        %2246 = vmatmul.mubr.bf16.gmra.mrb[0].mxu0 %v2170
        %v2247 = vpop.f32.mrb[0].mxu0
        %v2248 = vadd.f32 %v2121, %v2247
        %v2249 = vpop.f32.mrb[0].mxu0
        %v2250 = vpop.f32.mrb[0].mxu0
        %v2251 = vadd.f32 %v2124, %v2250
        %v2252 = vpop.f32.mrb[0].mxu0
        %2253 = vmatprep.mubr.bf16.mxu0 0
        %2254 = vmatmul.mubr.bf16.gmra.mrb[0].mxu0 %v2173
        %v2255 = vpop.f32.mrb[0].mxu0
        %v2256 = vadd.f32 %v2129, %v2255
        %v2257 = vpop.f32.mrb[0].mxu0
        %v2258 = vpop.f32.mrb[0].mxu0
        %v2259 = vadd.f32 %v2132, %v2258
        %v2260 = vpop.f32.mrb[0].mxu0
        %2261 = vmatprep.mubr.bf16.mxu0 0
        %2262 = vmatmul.mubr.bf16.gmra.mrb[0].mxu0 %v2176
        %v2263 = vpop.f32.mrb[0].mxu0
        %v2264 = vadd.f32 %v2137, %v2263
        %v2265 = vpop.f32.mrb[0].mxu0
        %v2266 = vpop.f32.mrb[0].mxu0
        %v2267 = vadd.f32 %v2140, %v2266
        %v2268 = vpop.f32.mrb[0].mxu0
        %2269 = vmatprep.mubr.bf16.mxu0 0
        %2270 = vmatmul.mubr.bf16.gmra.mrb[0].mxu0 %v2179
        %v2271 = vpop.f32.mrb[0].mxu0
        %v2272 = vadd.f32 %v2145, %v2271
        %v2273 = vpop.f32.mrb[0].mxu0
        %v2274 = vpop.f32.mrb[0].mxu0
        %v2275 = vadd.f32 %v2148, %v2274
        %v2276 = vpop.f32.mrb[0].mxu0
        %2277 = vdwg.mxu0
        %v2278 = vld [vmem:[%s9] sm:$0x1]
        %v2280 = vlaneseq
        %v2281 = vshrl.u32 %v2280, 7
        %v2282 = vsub.s32 0, %v2281
        %v2283 = vrot.slane %v2278, %v2282
        %v2285 = vadd.f32 %v2216, %v2283
        %v2286 = vadd.f32 %v2219, %v2283
        %v2287 = vadd.f32 %v2224, %v2283
        %v2288 = vadd.f32 %v2227, %v2283
        %v2289 = vadd.f32 %v2232, %v2283
        %v2290 = vadd.f32 %v2235, %v2283
        %v2291 = vadd.f32 %v2240, %v2283
        %v2292 = vadd.f32 %v2243, %v2283
        %v2293 = vadd.f32 %v2248, %v2283
        %v2294 = vadd.f32 %v2251, %v2283
        %v2295 = vadd.f32 %v2256, %v2283
        %v2296 = vadd.f32 %v2259, %v2283
        %v2297 = vadd.f32 %v2264, %v2283
        %v2298 = vadd.f32 %v2267, %v2283
        %v2299 = vadd.f32 %v2272, %v2283
        %v2300 = vadd.f32 %v2275, %v2283
        %v2301 = vmul.f32 %v873, %v1606
        %v2302 = vmul.f32 %v876, %v1611
        %v2303 = vmul.f32 %v881, %v1616
        %v2304 = vmul.f32 %v884, %v1621
        %v2305 = vmul.f32 %v889, %v1626
        %v2306 = vmul.f32 %v892, %v1631
        %v2307 = vmul.f32 %v897, %v1636
        %v2308 = vmul.f32 %v900, %v1641
        %v2309 = vmul.f32 %v905, %v1646
        %v2310 = vmul.f32 %v908, %v1651
        %v2311 = vmul.f32 %v913, %v1656
        %v2312 = vmul.f32 %v916, %v1661
        %v2313 = vmul.f32 %v921, %v1666
        %v2314 = vmul.f32 %v924, %v1671
        %v2315 = vmul.f32 %v929, %v1676
        %v2316 = vmul.f32 %v932, %v1681
        %v2317 = vtanh.pop %v2301
        %v2318 = vtanh.pop %v2302
        %v2319 = vtanh.pop %v2303
        %v2320 = vtanh.pop %v2304
        %v2321 = vtanh.pop %v2305
        %v2322 = vtanh.pop %v2306
        %v2323 = vtanh.pop %v2307
        %v2324 = vtanh.pop %v2308
        %v2325 = vtanh.pop %v2309
        %v2326 = vtanh.pop %v2310
        %v2327 = vtanh.pop %v2311
        %v2328 = vtanh.pop %v2312
        %v2329 = vtanh.pop %v2313
        %v2330 = vtanh.pop %v2314
        %v2331 = vtanh.pop %v2315
        %v2332 = vtanh.pop %v2316
        %v2333 = vpack.c.bf16 %v1188, %v1185
        %v2334 = vpack.c.bf16 %v1196, %v1193
        %v2335 = vpack.c.bf16 %v1204, %v1201
        %v2336 = vpack.c.bf16 %v1212, %v1209
        %v2337 = vpack.c.bf16 %v1220, %v1217
        %v2338 = vpack.c.bf16 %v1228, %v1225
        %v2339 = vpack.c.bf16 %v1236, %v1233
        %v2340 = vpack.c.bf16 %v1244, %v1241
        %v2341 = vld [vmem:[%s10] sm:$0xf]
        %v2342 = vld [vmem:[%s10 + $0x4] sm:$0xf]
        %v2343 = vpack.c.bf16 %v2318, %v2317
        %v2344 = vpack.c.bf16 %v2320, %v2319
        %v2345 = vpack.c.bf16 %v2322, %v2321
        %v2346 = vpack.c.bf16 %v2324, %v2323
        %v2347 = vpack.c.bf16 %v2326, %v2325
        %v2348 = vpack.c.bf16 %v2328, %v2327
        %v2349 = vpack.c.bf16 %v2330, %v2329
        %v2350 = vpack.c.bf16 %v2332, %v2331
        %v2351 = vld [vmem:[%s11] sm:$0xf]
        %v2352 = vld [vmem:[%s11 + $0x4] sm:$0xf]
        %2361 = vrot.lane.b32.xlu0 %v2343, 112
        %v2362 = vpop.permute.xlu0 %2361
        %2363 = vrot.lane.b32.xlu0 %v2344, 112
        %v2364 = vpop.permute.xlu0 %2363
        %2365 = vrot.lane.b32.xlu0 %v2345, 112
        %v2366 = vpop.permute.xlu0 %2365
        %2367 = vrot.lane.b32.xlu0 %v2346, 112
        %v2368 = vpop.permute.xlu0 %2367
        %2369 = vrot.lane.b32.xlu0 %v2347, 112
        %v2370 = vpop.permute.xlu0 %2369
        %2371 = vrot.lane.b32.xlu0 %v2348, 112
        %v2372 = vpop.permute.xlu0 %2371
        %2373 = vrot.lane.b32.xlu0 %v2349, 112
        %v2374 = vpop.permute.xlu0 %2373
        %2375 = vrot.lane.b32.xlu0 %v2350, 112
        %v2376 = vpop.permute.xlu0 %2375
        %v2379 = vunpack.c.l.b16 %v2351
        %v2380 = vunpack.c.l.b16 %v2352
        %v2381 = vpack.c.b16 %v2380, %v2379
        %v2384 = vsel %vm2029, %v2362, 0
        %v2387 = vsel %vm2029, %v2364, 0
        %v2390 = vsel %vm2029, %v2366, 0
        %v2393 = vsel %vm2029, %v2368, 0
        %v2396 = vsel %vm2029, %v2370, 0
        %v2399 = vsel %vm2029, %v2372, 0
        %v2402 = vsel %vm2029, %v2374, 0
        %v2405 = vsel %vm2029, %v2376, 0
        %2407 = vmatprep.subr.bf16.mxu0 0
        %2408 = vmatpush1.bf16.msra.mxu0 %v2381
        %2409 = vmatprep.subr.bf16.mxu0 0
        %2410 = vmatpush1.bf16.msra.mxu0 0
        %2411 = vmatprep.subr.bf16.mxu0 0
        %2412 = vmatpush1.bf16.msra.mxu0 0
        %2413 = vmatprep.subr.bf16.mxu0 0
        %2414 = vmatpush1.bf16.msra.mxu0 0
        %2415 = vmatprep.subr.bf16.mxu0 0
        %2416 = vmatpush1.bf16.msra.mxu0 0
        %2417 = vmatprep.subr.bf16.mxu0 0
        %2418 = vmatpush1.bf16.msra.mxu0 0
        %2419 = vmatprep.subr.bf16.mxu0 0
        %2420 = vmatpush1.bf16.msra.mxu0 0
        %2421 = vmatprep.subr.bf16.mxu0 0
        %2422 = vmatpush1.bf16.msra.mxu0 0
        %2423 = vmatprep.subr.bf16.mxu0 0
        %2424 = vmatpush1.bf16.msra.mxu0 0
        %2425 = vmatprep.subr.bf16.mxu0 0
        %2426 = vmatpush1.bf16.msra.mxu0 0
        %2427 = vmatprep.subr.bf16.mxu0 0
        %2428 = vmatpush1.bf16.msra.mxu0 0
        %2429 = vmatprep.subr.bf16.mxu0 0
        %2430 = vmatpush1.bf16.msra.mxu0 0
        %2431 = vmatprep.subr.bf16.mxu0 0
        %2432 = vmatpush1.bf16.msra.mxu0 0
        %2433 = vmatprep.subr.bf16.mxu0 0
        %2434 = vmatpush1.bf16.msra.mxu0 0
        %2435 = vmatprep.subr.bf16.mxu0 0
        %2436 = vmatpush1.bf16.msra.mxu0 0
        %2437 = vmatprep.subr.bf16.mxu0 0
        %2438 = vmatpush1.bf16.msra.mxu0 0
        %2439 = vmatprep.mubr.bf16.mxu0 0
        %2440 = vmatmul.mubr.bf16.gmra.mrb[0].mxu0 %v2384
        %v2441 = vpop.f32.mrb[0].mxu0
        %v2442 = vadd.f32 0.0, %v2441
        %v2443 = vpop.f32.mrb[0].mxu0
        %v2444 = vpop.f32.mrb[0].mxu0
        %v2445 = vadd.f32 0.0, %v2444
        %v2446 = vpop.f32.mrb[0].mxu0
        %2447 = vmatprep.mubr.bf16.mxu0 0
        %2448 = vmatmul.mubr.bf16.gmra.mrb[0].mxu0 %v2387
        %v2449 = vpop.f32.mrb[0].mxu0
        %v2450 = vadd.f32 0.0, %v2449
        %v2451 = vpop.f32.mrb[0].mxu0
        %v2452 = vpop.f32.mrb[0].mxu0
        %v2453 = vadd.f32 0.0, %v2452
        %v2454 = vpop.f32.mrb[0].mxu0
        %2455 = vmatprep.mubr.bf16.mxu0 0
        %2456 = vmatmul.mubr.bf16.gmra.mrb[0].mxu0 %v2390
        %v2457 = vpop.f32.mrb[0].mxu0
        %v2458 = vadd.f32 0.0, %v2457
        %v2459 = vpop.f32.mrb[0].mxu0
        %v2460 = vpop.f32.mrb[0].mxu0
        %v2461 = vadd.f32 0.0, %v2460
        %v2462 = vpop.f32.mrb[0].mxu0
        %2463 = vmatprep.mubr.bf16.mxu0 0
        %2464 = vmatmul.mubr.bf16.gmra.mrb[0].mxu0 %v2393
        %v2465 = vpop.f32.mrb[0].mxu0
        %v2466 = vadd.f32 0.0, %v2465
        %v2467 = vpop.f32.mrb[0].mxu0
        %v2468 = vpop.f32.mrb[0].mxu0
        %v2469 = vadd.f32 0.0, %v2468
        %v2470 = vpop.f32.mrb[0].mxu0
        %2471 = vmatprep.mubr.bf16.mxu0 0
        %2472 = vmatmul.mubr.bf16.gmra.mrb[0].mxu0 %v2396
        %v2473 = vpop.f32.mrb[0].mxu0
        %v2474 = vadd.f32 0.0, %v2473
        %v2475 = vpop.f32.mrb[0].mxu0
        %v2476 = vpop.f32.mrb[0].mxu0
        %v2477 = vadd.f32 0.0, %v2476
        %v2478 = vpop.f32.mrb[0].mxu0
        %2479 = vmatprep.mubr.bf16.mxu0 0
        %2480 = vmatmul.mubr.bf16.gmra.mrb[0].mxu0 %v2399
        %v2481 = vpop.f32.mrb[0].mxu0
        %v2482 = vadd.f32 0.0, %v2481
        %v2483 = vpop.f32.mrb[0].mxu0
        %v2484 = vpop.f32.mrb[0].mxu0
        %v2485 = vadd.f32 0.0, %v2484
        %v2486 = vpop.f32.mrb[0].mxu0
        %2487 = vmatprep.mubr.bf16.mxu0 0
        %2488 = vmatmul.mubr.bf16.gmra.mrb[0].mxu0 %v2402
        %v2489 = vpop.f32.mrb[0].mxu0
        %v2490 = vadd.f32 0.0, %v2489
        %v2491 = vpop.f32.mrb[0].mxu0
        %v2492 = vpop.f32.mrb[0].mxu0
        %v2493 = vadd.f32 0.0, %v2492
        %v2494 = vpop.f32.mrb[0].mxu0
        %2495 = vmatprep.mubr.bf16.mxu0 0
        %2496 = vmatmul.mubr.bf16.gmra.mrb[0].mxu0 %v2405
        %v2497 = vpop.f32.mrb[0].mxu0
        %v2498 = vadd.f32 0.0, %v2497
        %v2499 = vpop.f32.mrb[0].mxu0
        %v2500 = vpop.f32.mrb[0].mxu0
        %v2501 = vadd.f32 0.0, %v2500
        %v2502 = vpop.f32.mrb[0].mxu0
        %2503 = vdwg.mxu0
        %2512 = vrot.lane.b32.xlu0 %v2333, 112
        %v2513 = vpop.permute.xlu0 %2512
        %2514 = vrot.lane.b32.xlu0 %v2334, 112
        %v2515 = vpop.permute.xlu0 %2514
        %2516 = vrot.lane.b32.xlu0 %v2335, 112
        %v2517 = vpop.permute.xlu0 %2516
        %2518 = vrot.lane.b32.xlu0 %v2336, 112
        %v2519 = vpop.permute.xlu0 %2518
        %2520 = vrot.lane.b32.xlu0 %v2337, 112
        %v2521 = vpop.permute.xlu0 %2520
        %2522 = vrot.lane.b32.xlu0 %v2338, 112
        %v2523 = vpop.permute.xlu0 %2522
        %2524 = vrot.lane.b32.xlu0 %v2339, 112
        %v2525 = vpop.permute.xlu0 %2524
        %2526 = vrot.lane.b32.xlu0 %v2340, 112
        %v2527 = vpop.permute.xlu0 %2526
        %v2530 = vunpack.c.l.b16 %v2341
        %v2531 = vunpack.c.l.b16 %v2342
        %v2532 = vpack.c.b16 %v2531, %v2530
        %v2535 = vsel %vm2029, %v2513, 0
        %v2538 = vsel %vm2029, %v2515, 0
        %v2541 = vsel %vm2029, %v2517, 0
        %v2544 = vsel %vm2029, %v2519, 0
        %v2547 = vsel %vm2029, %v2521, 0
        %v2550 = vsel %vm2029, %v2523, 0
        %v2553 = vsel %vm2029, %v2525, 0
        %v2556 = vsel %vm2029, %v2527, 0
        %2558 = vmatprep.subr.bf16.mxu0 0
        %2559 = vmatpush1.bf16.msra.mxu0 %v2532
        %2560 = vmatprep.subr.bf16.mxu0 0
        %2561 = vmatpush1.bf16.msra.mxu0 0
        %2562 = vmatprep.subr.bf16.mxu0 0
        %2563 = vmatpush1.bf16.msra.mxu0 0
        %2564 = vmatprep.subr.bf16.mxu0 0
        %2565 = vmatpush1.bf16.msra.mxu0 0
        %2566 = vmatprep.subr.bf16.mxu0 0
        %2567 = vmatpush1.bf16.msra.mxu0 0
        %2568 = vmatprep.subr.bf16.mxu0 0
        %2569 = vmatpush1.bf16.msra.mxu0 0
        %2570 = vmatprep.subr.bf16.mxu0 0
        %2571 = vmatpush1.bf16.msra.mxu0 0
        %2572 = vmatprep.subr.bf16.mxu0 0
        %2573 = vmatpush1.bf16.msra.mxu0 0
        %2574 = vmatprep.subr.bf16.mxu0 0
        %2575 = vmatpush1.bf16.msra.mxu0 0
        %2576 = vmatprep.subr.bf16.mxu0 0
        %2577 = vmatpush1.bf16.msra.mxu0 0
        %2578 = vmatprep.subr.bf16.mxu0 0
        %2579 = vmatpush1.bf16.msra.mxu0 0
        %2580 = vmatprep.subr.bf16.mxu0 0
        %2581 = vmatpush1.bf16.msra.mxu0 0
        %2582 = vmatprep.subr.bf16.mxu0 0
        %2583 = vmatpush1.bf16.msra.mxu0 0
        %2584 = vmatprep.subr.bf16.mxu0 0
        %2585 = vmatpush1.bf16.msra.mxu0 0
        %2586 = vmatprep.subr.bf16.mxu0 0
        %2587 = vmatpush1.bf16.msra.mxu0 0
        %2588 = vmatprep.subr.bf16.mxu0 0
        %2589 = vmatpush1.bf16.msra.mxu0 0
        %2590 = vmatprep.mubr.bf16.mxu0 0
        %2591 = vmatmul.mubr.bf16.gmra.mrb[0].mxu0 %v2535
        %v2592 = vpop.f32.mrb[0].mxu0
        %v2593 = vadd.f32 %v2442, %v2592
        %v2594 = vpop.f32.mrb[0].mxu0
        %v2595 = vpop.f32.mrb[0].mxu0
        %v2596 = vadd.f32 %v2445, %v2595
        %v2597 = vpop.f32.mrb[0].mxu0
        %2598 = vmatprep.mubr.bf16.mxu0 0
        %2599 = vmatmul.mubr.bf16.gmra.mrb[0].mxu0 %v2538
        %v2600 = vpop.f32.mrb[0].mxu0
        %v2601 = vadd.f32 %v2450, %v2600
        %v2602 = vpop.f32.mrb[0].mxu0
        %v2603 = vpop.f32.mrb[0].mxu0
        %v2604 = vadd.f32 %v2453, %v2603
        %v2605 = vpop.f32.mrb[0].mxu0
        %2606 = vmatprep.mubr.bf16.mxu0 0
        %2607 = vmatmul.mubr.bf16.gmra.mrb[0].mxu0 %v2541
        %v2608 = vpop.f32.mrb[0].mxu0
        %v2609 = vadd.f32 %v2458, %v2608
        %v2610 = vpop.f32.mrb[0].mxu0
        %v2611 = vpop.f32.mrb[0].mxu0
        %v2612 = vadd.f32 %v2461, %v2611
        %v2613 = vpop.f32.mrb[0].mxu0
        %2614 = vmatprep.mubr.bf16.mxu0 0
        %2615 = vmatmul.mubr.bf16.gmra.mrb[0].mxu0 %v2544
        %v2616 = vpop.f32.mrb[0].mxu0
        %v2617 = vadd.f32 %v2466, %v2616
        %v2618 = vpop.f32.mrb[0].mxu0
        %v2619 = vpop.f32.mrb[0].mxu0
        %v2620 = vadd.f32 %v2469, %v2619
        %v2621 = vpop.f32.mrb[0].mxu0
        %2622 = vmatprep.mubr.bf16.mxu0 0
        %2623 = vmatmul.mubr.bf16.gmra.mrb[0].mxu0 %v2547
        %v2624 = vpop.f32.mrb[0].mxu0
        %v2625 = vadd.f32 %v2474, %v2624
        %v2626 = vpop.f32.mrb[0].mxu0
        %v2627 = vpop.f32.mrb[0].mxu0
        %v2628 = vadd.f32 %v2477, %v2627
        %v2629 = vpop.f32.mrb[0].mxu0
        %2630 = vmatprep.mubr.bf16.mxu0 0
        %2631 = vmatmul.mubr.bf16.gmra.mrb[0].mxu0 %v2550
        %v2632 = vpop.f32.mrb[0].mxu0
        %v2633 = vadd.f32 %v2482, %v2632
        %v2634 = vpop.f32.mrb[0].mxu0
        %v2635 = vpop.f32.mrb[0].mxu0
        %v2636 = vadd.f32 %v2485, %v2635
        %v2637 = vpop.f32.mrb[0].mxu0
        %2638 = vmatprep.mubr.bf16.mxu0 0
        %2639 = vmatmul.mubr.bf16.gmra.mrb[0].mxu0 %v2553
        %v2640 = vpop.f32.mrb[0].mxu0
        %v2641 = vadd.f32 %v2490, %v2640
        %v2642 = vpop.f32.mrb[0].mxu0
        %v2643 = vpop.f32.mrb[0].mxu0
        %v2644 = vadd.f32 %v2493, %v2643
        %v2645 = vpop.f32.mrb[0].mxu0
        %2646 = vmatprep.mubr.bf16.mxu0 0
        %2647 = vmatmul.mubr.bf16.gmra.mrb[0].mxu0 %v2556
        %v2648 = vpop.f32.mrb[0].mxu0
        %v2649 = vadd.f32 %v2498, %v2648
        %v2650 = vpop.f32.mrb[0].mxu0
        %v2651 = vpop.f32.mrb[0].mxu0
        %v2652 = vadd.f32 %v2501, %v2651
        %v2653 = vpop.f32.mrb[0].mxu0
        %2654 = vdwg.mxu0
        %v2655 = vld [vmem:[%s12] sm:$0x1]
        %v2657 = vlaneseq
        %v2658 = vshrl.u32 %v2657, 7
        %v2659 = vsub.s32 0, %v2658
        %v2660 = vrot.slane %v2655, %v2659
        %v2662 = vadd.f32 %v2593, %v2660
        %v2663 = vadd.f32 %v2596, %v2660
        %v2664 = vadd.f32 %v2601, %v2660
        %v2665 = vadd.f32 %v2604, %v2660
        %v2666 = vadd.f32 %v2609, %v2660
        %v2667 = vadd.f32 %v2612, %v2660
        %v2668 = vadd.f32 %v2617, %v2660
        %v2669 = vadd.f32 %v2620, %v2660
        %v2670 = vadd.f32 %v2625, %v2660
        %v2671 = vadd.f32 %v2628, %v2660
        %v2672 = vadd.f32 %v2633, %v2660
        %v2673 = vadd.f32 %v2636, %v2660
        %v2674 = vadd.f32 %v2641, %v2660
        %v2675 = vadd.f32 %v2644, %v2660
        %v2676 = vadd.f32 %v2649, %v2660
        %v2677 = vadd.f32 %v2652, %v2660
        %v2678 = vmul.f32 %v873, %v1701
        %v2679 = vmul.f32 %v876, %v1705
        %v2680 = vmul.f32 %v881, %v1709
        %v2681 = vmul.f32 %v884, %v1713
        %v2682 = vmul.f32 %v889, %v1717
        %v2683 = vmul.f32 %v892, %v1721
        %v2684 = vmul.f32 %v897, %v1725
        %v2685 = vmul.f32 %v900, %v1729
        %v2686 = vmul.f32 %v905, %v1733
        %v2687 = vmul.f32 %v908, %v1737
        %v2688 = vmul.f32 %v913, %v1741
        %v2689 = vmul.f32 %v916, %v1745
        %v2690 = vmul.f32 %v921, %v1749
        %v2691 = vmul.f32 %v924, %v1753
        %v2692 = vmul.f32 %v929, %v1757
        %v2693 = vmul.f32 %v932, %v1761
        %v2694 = vtanh.pop %v2678
        %v2695 = vtanh.pop %v2679
        %v2696 = vtanh.pop %v2680
        %v2697 = vtanh.pop %v2681
        %v2698 = vtanh.pop %v2682
        %v2699 = vtanh.pop %v2683
        %v2700 = vtanh.pop %v2684
        %v2701 = vtanh.pop %v2685
        %v2702 = vtanh.pop %v2686
        %v2703 = vtanh.pop %v2687
        %v2704 = vtanh.pop %v2688
        %v2705 = vtanh.pop %v2689
        %v2706 = vtanh.pop %v2690
        %v2707 = vtanh.pop %v2691
        %v2708 = vtanh.pop %v2692
        %v2709 = vtanh.pop %v2693
        %v2710 = vpack.c.bf16 %v1366, %v1363
        %v2711 = vpack.c.bf16 %v1374, %v1371
        %v2712 = vpack.c.bf16 %v1382, %v1379
        %v2713 = vpack.c.bf16 %v1390, %v1387
        %v2714 = vpack.c.bf16 %v1398, %v1395
        %v2715 = vpack.c.bf16 %v1406, %v1403
        %v2716 = vpack.c.bf16 %v1414, %v1411
        %v2717 = vpack.c.bf16 %v1422, %v1419
        %v2718 = vpack.c.bf16 %v2695, %v2694
        %v2719 = vpack.c.bf16 %v2697, %v2696
        %v2720 = vpack.c.bf16 %v2699, %v2698
        %v2721 = vpack.c.bf16 %v2701, %v2700
        %v2722 = vpack.c.bf16 %v2703, %v2702
        %v2723 = vpack.c.bf16 %v2705, %v2704
        %v2724 = vpack.c.bf16 %v2707, %v2706
        %v2725 = vpack.c.bf16 %v2709, %v2708
        %2734 = vrot.lane.b32.xlu0 %v2718, 112
        %v2735 = vpop.permute.xlu0 %2734
        %2736 = vrot.lane.b32.xlu0 %v2719, 112
        %v2737 = vpop.permute.xlu0 %2736
        %2738 = vrot.lane.b32.xlu0 %v2720, 112
        %v2739 = vpop.permute.xlu0 %2738
        %2740 = vrot.lane.b32.xlu0 %v2721, 112
        %v2741 = vpop.permute.xlu0 %2740
        %2742 = vrot.lane.b32.xlu0 %v2722, 112
        %v2743 = vpop.permute.xlu0 %2742
        %2744 = vrot.lane.b32.xlu0 %v2723, 112
        %v2745 = vpop.permute.xlu0 %2744
        %2746 = vrot.lane.b32.xlu0 %v2724, 112
        %v2747 = vpop.permute.xlu0 %2746
        %2748 = vrot.lane.b32.xlu0 %v2725, 112
        %v2749 = vpop.permute.xlu0 %2748
        %v2751 = vsel %vm2029, %v2735, 0
        %v2754 = vsel %vm2029, %v2737, 0
        %v2757 = vsel %vm2029, %v2739, 0
        %v2760 = vsel %vm2029, %v2741, 0
        %v2763 = vsel %vm2029, %v2743, 0
        %v2766 = vsel %vm2029, %v2745, 0
        %v2769 = vsel %vm2029, %v2747, 0
        %v2772 = vsel %vm2029, %v2749, 0
        %2774 = vmatprep.subr.bf16.mxu0 0
        %2775 = vmatpush1.bf16.msra.mxu0 %v2381
        %2776 = vmatprep.subr.bf16.mxu0 0
        %2777 = vmatpush1.bf16.msra.mxu0 0
        %2778 = vmatprep.subr.bf16.mxu0 0
        %2779 = vmatpush1.bf16.msra.mxu0 0
        %2780 = vmatprep.subr.bf16.mxu0 0
        %2781 = vmatpush1.bf16.msra.mxu0 0
        %2782 = vmatprep.subr.bf16.mxu0 0
        %2783 = vmatpush1.bf16.msra.mxu0 0
        %2784 = vmatprep.subr.bf16.mxu0 0
        %2785 = vmatpush1.bf16.msra.mxu0 0
        %2786 = vmatprep.subr.bf16.mxu0 0
        %2787 = vmatpush1.bf16.msra.mxu0 0
        %2788 = vmatprep.subr.bf16.mxu0 0
        %2789 = vmatpush1.bf16.msra.mxu0 0
        %2790 = vmatprep.subr.bf16.mxu0 0
        %2791 = vmatpush1.bf16.msra.mxu0 0
        %2792 = vmatprep.subr.bf16.mxu0 0
        %2793 = vmatpush1.bf16.msra.mxu0 0
        %2794 = vmatprep.subr.bf16.mxu0 0
        %2795 = vmatpush1.bf16.msra.mxu0 0
        %2796 = vmatprep.subr.bf16.mxu0 0
        %2797 = vmatpush1.bf16.msra.mxu0 0
        %2798 = vmatprep.subr.bf16.mxu0 0
        %2799 = vmatpush1.bf16.msra.mxu0 0
        %2800 = vmatprep.subr.bf16.mxu0 0
        %2801 = vmatpush1.bf16.msra.mxu0 0
        %2802 = vmatprep.subr.bf16.mxu0 0
        %2803 = vmatpush1.bf16.msra.mxu0 0
        %2804 = vmatprep.subr.bf16.mxu0 0
        %2805 = vmatpush1.bf16.msra.mxu0 0
        %2806 = vmatprep.mubr.bf16.mxu0 0
        %2807 = vmatmul.mubr.bf16.gmra.mrb[0].mxu0 %v2751
        %v2808 = vpop.f32.mrb[0].mxu0
        %v2809 = vadd.f32 0.0, %v2808
        %v2810 = vpop.f32.mrb[0].mxu0
        %v2811 = vpop.f32.mrb[0].mxu0
        %v2812 = vadd.f32 0.0, %v2811
        %v2813 = vpop.f32.mrb[0].mxu0
        %2814 = vmatprep.mubr.bf16.mxu0 0
        %2815 = vmatmul.mubr.bf16.gmra.mrb[0].mxu0 %v2754
        %v2816 = vpop.f32.mrb[0].mxu0
        %v2817 = vadd.f32 0.0, %v2816
        %v2818 = vpop.f32.mrb[0].mxu0
        %v2819 = vpop.f32.mrb[0].mxu0
        %v2820 = vadd.f32 0.0, %v2819
        %v2821 = vpop.f32.mrb[0].mxu0
        %2822 = vmatprep.mubr.bf16.mxu0 0
        %2823 = vmatmul.mubr.bf16.gmra.mrb[0].mxu0 %v2757
        %v2824 = vpop.f32.mrb[0].mxu0
        %v2825 = vadd.f32 0.0, %v2824
        %v2826 = vpop.f32.mrb[0].mxu0
        %v2827 = vpop.f32.mrb[0].mxu0
        %v2828 = vadd.f32 0.0, %v2827
        %v2829 = vpop.f32.mrb[0].mxu0
        %2830 = vmatprep.mubr.bf16.mxu0 0
        %2831 = vmatmul.mubr.bf16.gmra.mrb[0].mxu0 %v2760
        %v2832 = vpop.f32.mrb[0].mxu0
        %v2833 = vadd.f32 0.0, %v2832
        %v2834 = vpop.f32.mrb[0].mxu0
        %v2835 = vpop.f32.mrb[0].mxu0
        %v2836 = vadd.f32 0.0, %v2835
        %v2837 = vpop.f32.mrb[0].mxu0
        %2838 = vmatprep.mubr.bf16.mxu0 0
        %2839 = vmatmul.mubr.bf16.gmra.mrb[0].mxu0 %v2763
        %v2840 = vpop.f32.mrb[0].mxu0
        %v2841 = vadd.f32 0.0, %v2840
        %v2842 = vpop.f32.mrb[0].mxu0
        %v2843 = vpop.f32.mrb[0].mxu0
        %v2844 = vadd.f32 0.0, %v2843
        %v2845 = vpop.f32.mrb[0].mxu0
        %2846 = vmatprep.mubr.bf16.mxu0 0
        %2847 = vmatmul.mubr.bf16.gmra.mrb[0].mxu0 %v2766
        %v2848 = vpop.f32.mrb[0].mxu0
        %v2849 = vadd.f32 0.0, %v2848
        %v2850 = vpop.f32.mrb[0].mxu0
        %v2851 = vpop.f32.mrb[0].mxu0
        %v2852 = vadd.f32 0.0, %v2851
        %v2853 = vpop.f32.mrb[0].mxu0
        %2854 = vmatprep.mubr.bf16.mxu0 0
        %2855 = vmatmul.mubr.bf16.gmra.mrb[0].mxu0 %v2769
        %v2856 = vpop.f32.mrb[0].mxu0
        %v2857 = vadd.f32 0.0, %v2856
        %v2858 = vpop.f32.mrb[0].mxu0
        %v2859 = vpop.f32.mrb[0].mxu0
        %v2860 = vadd.f32 0.0, %v2859
        %v2861 = vpop.f32.mrb[0].mxu0
        %2862 = vmatprep.mubr.bf16.mxu0 0
        %2863 = vmatmul.mubr.bf16.gmra.mrb[0].mxu0 %v2772
        %v2864 = vpop.f32.mrb[0].mxu0
        %v2865 = vadd.f32 0.0, %v2864
        %v2866 = vpop.f32.mrb[0].mxu0
        %v2867 = vpop.f32.mrb[0].mxu0
        %v2868 = vadd.f32 0.0, %v2867
        %v2869 = vpop.f32.mrb[0].mxu0
        %2870 = vdwg.mxu0
        %2879 = vrot.lane.b32.xlu0 %v2710, 112
        %v2880 = vpop.permute.xlu0 %2879
        %2881 = vrot.lane.b32.xlu0 %v2711, 112
        %v2882 = vpop.permute.xlu0 %2881
        %2883 = vrot.lane.b32.xlu0 %v2712, 112
        %v2884 = vpop.permute.xlu0 %2883
        %2885 = vrot.lane.b32.xlu0 %v2713, 112
        %v2886 = vpop.permute.xlu0 %2885
        %2887 = vrot.lane.b32.xlu0 %v2714, 112
        %v2888 = vpop.permute.xlu0 %2887
        %2889 = vrot.lane.b32.xlu0 %v2715, 112
        %v2890 = vpop.permute.xlu0 %2889
        %2891 = vrot.lane.b32.xlu0 %v2716, 112
        %v2892 = vpop.permute.xlu0 %2891
        %2893 = vrot.lane.b32.xlu0 %v2717, 112
        %v2894 = vpop.permute.xlu0 %2893
        %v2896 = vsel %vm2029, %v2880, 0
        %v2899 = vsel %vm2029, %v2882, 0
        %v2902 = vsel %vm2029, %v2884, 0
        %v2905 = vsel %vm2029, %v2886, 0
        %v2908 = vsel %vm2029, %v2888, 0
        %v2911 = vsel %vm2029, %v2890, 0
        %v2914 = vsel %vm2029, %v2892, 0
        %v2917 = vsel %vm2029, %v2894, 0
        %2919 = vmatprep.subr.bf16.mxu0 0
        %2920 = vmatpush1.bf16.msra.mxu0 %v2532
        %2921 = vmatprep.subr.bf16.mxu0 0
        %2922 = vmatpush1.bf16.msra.mxu0 0
        %2923 = vmatprep.subr.bf16.mxu0 0
        %2924 = vmatpush1.bf16.msra.mxu0 0
        %2925 = vmatprep.subr.bf16.mxu0 0
        %2926 = vmatpush1.bf16.msra.mxu0 0
        %2927 = vmatprep.subr.bf16.mxu0 0
        %2928 = vmatpush1.bf16.msra.mxu0 0
        %2929 = vmatprep.subr.bf16.mxu0 0
        %2930 = vmatpush1.bf16.msra.mxu0 0
        %2931 = vmatprep.subr.bf16.mxu0 0
        %2932 = vmatpush1.bf16.msra.mxu0 0
        %2933 = vmatprep.subr.bf16.mxu0 0
        %2934 = vmatpush1.bf16.msra.mxu0 0
        %2935 = vmatprep.subr.bf16.mxu0 0
        %2936 = vmatpush1.bf16.msra.mxu0 0
        %2937 = vmatprep.subr.bf16.mxu0 0
        %2938 = vmatpush1.bf16.msra.mxu0 0
        %2939 = vmatprep.subr.bf16.mxu0 0
        %2940 = vmatpush1.bf16.msra.mxu0 0
        %2941 = vmatprep.subr.bf16.mxu0 0
        %2942 = vmatpush1.bf16.msra.mxu0 0
        %2943 = vmatprep.subr.bf16.mxu0 0
        %2944 = vmatpush1.bf16.msra.mxu0 0
        %2945 = vmatprep.subr.bf16.mxu0 0
        %2946 = vmatpush1.bf16.msra.mxu0 0
        %2947 = vmatprep.subr.bf16.mxu0 0
        %2948 = vmatpush1.bf16.msra.mxu0 0
        %2949 = vmatprep.subr.bf16.mxu0 0
        %2950 = vmatpush1.bf16.msra.mxu0 0
        %2951 = vmatprep.mubr.bf16.mxu0 0
        %2952 = vmatmul.mubr.bf16.gmra.mrb[0].mxu0 %v2896
        %v2953 = vpop.f32.mrb[0].mxu0
        %v2954 = vadd.f32 %v2809, %v2953
        %v2955 = vpop.f32.mrb[0].mxu0
        %v2956 = vpop.f32.mrb[0].mxu0
        %v2957 = vadd.f32 %v2812, %v2956
        %v2958 = vpop.f32.mrb[0].mxu0
        %2959 = vmatprep.mubr.bf16.mxu0 0
        %2960 = vmatmul.mubr.bf16.gmra.mrb[0].mxu0 %v2899
        %v2961 = vpop.f32.mrb[0].mxu0
        %v2962 = vadd.f32 %v2817, %v2961
        %v2963 = vpop.f32.mrb[0].mxu0
        %v2964 = vpop.f32.mrb[0].mxu0
        %v2965 = vadd.f32 %v2820, %v2964
        %v2966 = vpop.f32.mrb[0].mxu0
        %2967 = vmatprep.mubr.bf16.mxu0 0
        %2968 = vmatmul.mubr.bf16.gmra.mrb[0].mxu0 %v2902
        %v2969 = vpop.f32.mrb[0].mxu0
        %v2970 = vadd.f32 %v2825, %v2969
        %v2971 = vpop.f32.mrb[0].mxu0
        %v2972 = vpop.f32.mrb[0].mxu0
        %v2973 = vadd.f32 %v2828, %v2972
        %v2974 = vpop.f32.mrb[0].mxu0
        %2975 = vmatprep.mubr.bf16.mxu0 0
        %2976 = vmatmul.mubr.bf16.gmra.mrb[0].mxu0 %v2905
        %v2977 = vpop.f32.mrb[0].mxu0
        %v2978 = vadd.f32 %v2833, %v2977
        %v2979 = vpop.f32.mrb[0].mxu0
        %v2980 = vpop.f32.mrb[0].mxu0
        %v2981 = vadd.f32 %v2836, %v2980
        %v2982 = vpop.f32.mrb[0].mxu0
        %2983 = vmatprep.mubr.bf16.mxu0 0
        %2984 = vmatmul.mubr.bf16.gmra.mrb[0].mxu0 %v2908
        %v2985 = vpop.f32.mrb[0].mxu0
        %v2986 = vadd.f32 %v2841, %v2985
        %v2987 = vpop.f32.mrb[0].mxu0
        %v2988 = vpop.f32.mrb[0].mxu0
        %v2989 = vadd.f32 %v2844, %v2988
        %v2990 = vpop.f32.mrb[0].mxu0
        %2991 = vmatprep.mubr.bf16.mxu0 0
        %2992 = vmatmul.mubr.bf16.gmra.mrb[0].mxu0 %v2911
        %v2993 = vpop.f32.mrb[0].mxu0
        %v2994 = vadd.f32 %v2849, %v2993
        %v2995 = vpop.f32.mrb[0].mxu0
        %v2996 = vpop.f32.mrb[0].mxu0
        %v2997 = vadd.f32 %v2852, %v2996
        %v2998 = vpop.f32.mrb[0].mxu0
        %2999 = vmatprep.mubr.bf16.mxu0 0
        %3000 = vmatmul.mubr.bf16.gmra.mrb[0].mxu0 %v2914
        %v3001 = vpop.f32.mrb[0].mxu0
        %v3002 = vadd.f32 %v2857, %v3001
        %v3003 = vpop.f32.mrb[0].mxu0
        %v3004 = vpop.f32.mrb[0].mxu0
        %v3005 = vadd.f32 %v2860, %v3004
        %v3006 = vpop.f32.mrb[0].mxu0
        %3007 = vmatprep.mubr.bf16.mxu0 0
        %3008 = vmatmul.mubr.bf16.gmra.mrb[0].mxu0 %v2917
        %v3009 = vpop.f32.mrb[0].mxu0
        %v3010 = vadd.f32 %v2865, %v3009
        %v3011 = vpop.f32.mrb[0].mxu0
        %v3012 = vpop.f32.mrb[0].mxu0
        %v3013 = vadd.f32 %v2868, %v3012
        %v3014 = vpop.f32.mrb[0].mxu0
        %3015 = vdwg.mxu0
        %v3016 = vadd.f32 %v2954, %v2660
        %v3017 = vadd.f32 %v2957, %v2660
        %v3018 = vadd.f32 %v2962, %v2660
        %v3019 = vadd.f32 %v2965, %v2660
        %v3020 = vadd.f32 %v2970, %v2660
        %v3021 = vadd.f32 %v2973, %v2660
        %v3022 = vadd.f32 %v2978, %v2660
        %v3023 = vadd.f32 %v2981, %v2660
        %v3024 = vadd.f32 %v2986, %v2660
        %v3025 = vadd.f32 %v2989, %v2660
        %v3026 = vadd.f32 %v2994, %v2660
        %v3027 = vadd.f32 %v2997, %v2660
        %v3028 = vadd.f32 %v3002, %v2660
        %v3029 = vadd.f32 %v3005, %v2660
        %v3030 = vadd.f32 %v3010, %v2660
        %v3031 = vadd.f32 %v3013, %v2660
        %v3032 = vmul.f32 %v873, %v1797
        %v3033 = vmul.f32 %v876, %v1801
        %v3034 = vmul.f32 %v881, %v1805
        %v3035 = vmul.f32 %v884, %v1809
        %v3036 = vmul.f32 %v889, %v1813
        %v3037 = vmul.f32 %v892, %v1817
        %v3038 = vmul.f32 %v897, %v1821
        %v3039 = vmul.f32 %v900, %v1825
        %v3040 = vmul.f32 %v905, %v1829
        %v3041 = vmul.f32 %v908, %v1833
        %v3042 = vmul.f32 %v913, %v1837
        %v3043 = vmul.f32 %v916, %v1841
        %v3044 = vmul.f32 %v921, %v1845
        %v3045 = vmul.f32 %v924, %v1849
        %v3046 = vmul.f32 %v929, %v1853
        %v3047 = vmul.f32 %v932, %v1857
        %v3048 = vtanh.pop %v3032
        %v3049 = vtanh.pop %v3033
        %v3050 = vtanh.pop %v3034
        %v3051 = vtanh.pop %v3035
        %v3052 = vtanh.pop %v3036
        %v3053 = vtanh.pop %v3037
        %v3054 = vtanh.pop %v3038
        %v3055 = vtanh.pop %v3039
        %v3056 = vtanh.pop %v3040
        %v3057 = vtanh.pop %v3041
        %v3058 = vtanh.pop %v3042
        %v3059 = vtanh.pop %v3043
        %v3060 = vtanh.pop %v3044
        %v3061 = vtanh.pop %v3045
        %v3062 = vtanh.pop %v3046
        %v3063 = vtanh.pop %v3047
        %v3064 = vpack.c.bf16 %v1544, %v1541
        %v3065 = vpack.c.bf16 %v1552, %v1549
        %v3066 = vpack.c.bf16 %v1560, %v1557
        %v3067 = vpack.c.bf16 %v1568, %v1565
        %v3068 = vpack.c.bf16 %v1576, %v1573
        %v3069 = vpack.c.bf16 %v1584, %v1581
        %v3070 = vpack.c.bf16 %v1592, %v1589
        %v3071 = vpack.c.bf16 %v1600, %v1597
        %v3072 = vpack.c.bf16 %v3049, %v3048
        %v3073 = vpack.c.bf16 %v3051, %v3050
        %v3074 = vpack.c.bf16 %v3053, %v3052
        %v3075 = vpack.c.bf16 %v3055, %v3054
        %v3076 = vpack.c.bf16 %v3057, %v3056
        %v3077 = vpack.c.bf16 %v3059, %v3058
        %v3078 = vpack.c.bf16 %v3061, %v3060
        %v3079 = vpack.c.bf16 %v3063, %v3062
        %3088 = vrot.lane.b32.xlu0 %v3072, 112
        %v3089 = vpop.permute.xlu0 %3088
        %3090 = vrot.lane.b32.xlu0 %v3073, 112
        %v3091 = vpop.permute.xlu0 %3090
        %3092 = vrot.lane.b32.xlu0 %v3074, 112
        %v3093 = vpop.permute.xlu0 %3092
        %3094 = vrot.lane.b32.xlu0 %v3075, 112
        %v3095 = vpop.permute.xlu0 %3094
        %3096 = vrot.lane.b32.xlu0 %v3076, 112
        %v3097 = vpop.permute.xlu0 %3096
        %3098 = vrot.lane.b32.xlu0 %v3077, 112
        %v3099 = vpop.permute.xlu0 %3098
        %3100 = vrot.lane.b32.xlu0 %v3078, 112
        %v3101 = vpop.permute.xlu0 %3100
        %3102 = vrot.lane.b32.xlu0 %v3079, 112
        %v3103 = vpop.permute.xlu0 %3102
        %v3105 = vsel %vm2029, %v3089, 0
        %v3108 = vsel %vm2029, %v3091, 0
        %v3111 = vsel %vm2029, %v3093, 0
        %v3114 = vsel %vm2029, %v3095, 0
        %v3117 = vsel %vm2029, %v3097, 0
        %v3120 = vsel %vm2029, %v3099, 0
        %v3123 = vsel %vm2029, %v3101, 0
        %v3126 = vsel %vm2029, %v3103, 0
        %3128 = vmatprep.subr.bf16.mxu0 0
        %3129 = vmatpush1.bf16.msra.mxu0 %v2381
        %3130 = vmatprep.subr.bf16.mxu0 0
        %3131 = vmatpush1.bf16.msra.mxu0 0
        %3132 = vmatprep.subr.bf16.mxu0 0
        %3133 = vmatpush1.bf16.msra.mxu0 0
        %3134 = vmatprep.subr.bf16.mxu0 0
        %3135 = vmatpush1.bf16.msra.mxu0 0
        %3136 = vmatprep.subr.bf16.mxu0 0
        %3137 = vmatpush1.bf16.msra.mxu0 0
        %3138 = vmatprep.subr.bf16.mxu0 0
        %3139 = vmatpush1.bf16.msra.mxu0 0
        %3140 = vmatprep.subr.bf16.mxu0 0
        %3141 = vmatpush1.bf16.msra.mxu0 0
        %3142 = vmatprep.subr.bf16.mxu0 0
        %3143 = vmatpush1.bf16.msra.mxu0 0
        %3144 = vmatprep.subr.bf16.mxu0 0
        %3145 = vmatpush1.bf16.msra.mxu0 0
        %3146 = vmatprep.subr.bf16.mxu0 0
        %3147 = vmatpush1.bf16.msra.mxu0 0
        %3148 = vmatprep.subr.bf16.mxu0 0
        %3149 = vmatpush1.bf16.msra.mxu0 0
        %3150 = vmatprep.subr.bf16.mxu0 0
        %3151 = vmatpush1.bf16.msra.mxu0 0
        %3152 = vmatprep.subr.bf16.mxu0 0
        %3153 = vmatpush1.bf16.msra.mxu0 0
        %3154 = vmatprep.subr.bf16.mxu0 0
        %3155 = vmatpush1.bf16.msra.mxu0 0
        %3156 = vmatprep.subr.bf16.mxu0 0
        %3157 = vmatpush1.bf16.msra.mxu0 0
        %3158 = vmatprep.subr.bf16.mxu0 0
        %3159 = vmatpush1.bf16.msra.mxu0 0
        %3160 = vmatprep.mubr.bf16.mxu0 0
        %3161 = vmatmul.mubr.bf16.gmra.mrb[0].mxu0 %v3105
        %v3162 = vpop.f32.mrb[0].mxu0
        %v3163 = vadd.f32 0.0, %v3162
        %v3164 = vpop.f32.mrb[0].mxu0
        %v3165 = vpop.f32.mrb[0].mxu0
        %v3166 = vadd.f32 0.0, %v3165
        %v3167 = vpop.f32.mrb[0].mxu0
        %3168 = vmatprep.mubr.bf16.mxu0 0
        %3169 = vmatmul.mubr.bf16.gmra.mrb[0].mxu0 %v3108
        %v3170 = vpop.f32.mrb[0].mxu0
        %v3171 = vadd.f32 0.0, %v3170
        %v3172 = vpop.f32.mrb[0].mxu0
        %v3173 = vpop.f32.mrb[0].mxu0
        %v3174 = vadd.f32 0.0, %v3173
        %v3175 = vpop.f32.mrb[0].mxu0
        %3176 = vmatprep.mubr.bf16.mxu0 0
        %3177 = vmatmul.mubr.bf16.gmra.mrb[0].mxu0 %v3111
        %v3178 = vpop.f32.mrb[0].mxu0
        %v3179 = vadd.f32 0.0, %v3178
        %v3180 = vpop.f32.mrb[0].mxu0
        %v3181 = vpop.f32.mrb[0].mxu0
        %v3182 = vadd.f32 0.0, %v3181
        %v3183 = vpop.f32.mrb[0].mxu0
        %3184 = vmatprep.mubr.bf16.mxu0 0
        %3185 = vmatmul.mubr.bf16.gmra.mrb[0].mxu0 %v3114
        %v3186 = vpop.f32.mrb[0].mxu0
        %v3187 = vadd.f32 0.0, %v3186
        %v3188 = vpop.f32.mrb[0].mxu0
        %v3189 = vpop.f32.mrb[0].mxu0
        %v3190 = vadd.f32 0.0, %v3189
        %v3191 = vpop.f32.mrb[0].mxu0
        %3192 = vmatprep.mubr.bf16.mxu0 0
        %3193 = vmatmul.mubr.bf16.gmra.mrb[0].mxu0 %v3117
        %v3194 = vpop.f32.mrb[0].mxu0
        %v3195 = vadd.f32 0.0, %v3194
        %v3196 = vpop.f32.mrb[0].mxu0
        %v3197 = vpop.f32.mrb[0].mxu0
        %v3198 = vadd.f32 0.0, %v3197
        %v3199 = vpop.f32.mrb[0].mxu0
        %3200 = vmatprep.mubr.bf16.mxu0 0
        %3201 = vmatmul.mubr.bf16.gmra.mrb[0].mxu0 %v3120
        %v3202 = vpop.f32.mrb[0].mxu0
        %v3203 = vadd.f32 0.0, %v3202
        %v3204 = vpop.f32.mrb[0].mxu0
        %v3205 = vpop.f32.mrb[0].mxu0
        %v3206 = vadd.f32 0.0, %v3205
        %v3207 = vpop.f32.mrb[0].mxu0
        %3208 = vmatprep.mubr.bf16.mxu0 0
        %3209 = vmatmul.mubr.bf16.gmra.mrb[0].mxu0 %v3123
        %v3210 = vpop.f32.mrb[0].mxu0
        %v3211 = vadd.f32 0.0, %v3210
        %v3212 = vpop.f32.mrb[0].mxu0
        %v3213 = vpop.f32.mrb[0].mxu0
        %v3214 = vadd.f32 0.0, %v3213
        %v3215 = vpop.f32.mrb[0].mxu0
        %3216 = vmatprep.mubr.bf16.mxu0 0
        %3217 = vmatmul.mubr.bf16.gmra.mrb[0].mxu0 %v3126
        %v3218 = vpop.f32.mrb[0].mxu0
        %v3219 = vadd.f32 0.0, %v3218
        %v3220 = vpop.f32.mrb[0].mxu0
        %v3221 = vpop.f32.mrb[0].mxu0
        %v3222 = vadd.f32 0.0, %v3221
        %v3223 = vpop.f32.mrb[0].mxu0
        %3224 = vdwg.mxu0
        %3233 = vrot.lane.b32.xlu0 %v3064, 112
        %v3234 = vpop.permute.xlu0 %3233
        %3235 = vrot.lane.b32.xlu0 %v3065, 112
        %v3236 = vpop.permute.xlu0 %3235
        %3237 = vrot.lane.b32.xlu0 %v3066, 112
        %v3238 = vpop.permute.xlu0 %3237
        %3239 = vrot.lane.b32.xlu0 %v3067, 112
        %v3240 = vpop.permute.xlu0 %3239
        %3241 = vrot.lane.b32.xlu0 %v3068, 112
        %v3242 = vpop.permute.xlu0 %3241
        %3243 = vrot.lane.b32.xlu0 %v3069, 112
        %v3244 = vpop.permute.xlu0 %3243
        %3245 = vrot.lane.b32.xlu0 %v3070, 112
        %v3246 = vpop.permute.xlu0 %3245
        %3247 = vrot.lane.b32.xlu0 %v3071, 112
        %v3248 = vpop.permute.xlu0 %3247
        %v3250 = vsel %vm2029, %v3234, 0
        %v3253 = vsel %vm2029, %v3236, 0
        %v3256 = vsel %vm2029, %v3238, 0
        %v3259 = vsel %vm2029, %v3240, 0
        %v3262 = vsel %vm2029, %v3242, 0
        %v3265 = vsel %vm2029, %v3244, 0
        %v3268 = vsel %vm2029, %v3246, 0
        %v3271 = vsel %vm2029, %v3248, 0
        %3273 = vmatprep.subr.bf16.mxu0 0
        %3274 = vmatpush1.bf16.msra.mxu0 %v2532
        %3275 = vmatprep.subr.bf16.mxu0 0
        %3276 = vmatpush1.bf16.msra.mxu0 0
        %3277 = vmatprep.subr.bf16.mxu0 0
        %3278 = vmatpush1.bf16.msra.mxu0 0
        %3279 = vmatprep.subr.bf16.mxu0 0
        %3280 = vmatpush1.bf16.msra.mxu0 0
        %3281 = vmatprep.subr.bf16.mxu0 0
        %3282 = vmatpush1.bf16.msra.mxu0 0
        %3283 = vmatprep.subr.bf16.mxu0 0
        %3284 = vmatpush1.bf16.msra.mxu0 0
        %3285 = vmatprep.subr.bf16.mxu0 0
        %3286 = vmatpush1.bf16.msra.mxu0 0
        %3287 = vmatprep.subr.bf16.mxu0 0
        %3288 = vmatpush1.bf16.msra.mxu0 0
        %3289 = vmatprep.subr.bf16.mxu0 0
        %3290 = vmatpush1.bf16.msra.mxu0 0
        %3291 = vmatprep.subr.bf16.mxu0 0
        %3292 = vmatpush1.bf16.msra.mxu0 0
        %3293 = vmatprep.subr.bf16.mxu0 0
        %3294 = vmatpush1.bf16.msra.mxu0 0
        %3295 = vmatprep.subr.bf16.mxu0 0
        %3296 = vmatpush1.bf16.msra.mxu0 0
        %3297 = vmatprep.subr.bf16.mxu0 0
        %3298 = vmatpush1.bf16.msra.mxu0 0
        %3299 = vmatprep.subr.bf16.mxu0 0
        %3300 = vmatpush1.bf16.msra.mxu0 0
        %3301 = vmatprep.subr.bf16.mxu0 0
        %3302 = vmatpush1.bf16.msra.mxu0 0
        %3303 = vmatprep.subr.bf16.mxu0 0
        %3304 = vmatpush1.bf16.msra.mxu0 0
        %3305 = vmatprep.mubr.bf16.mxu0 0
        %3306 = vmatmul.mubr.bf16.gmra.mrb[0].mxu0 %v3250
        %v3307 = vpop.f32.mrb[0].mxu0
        %v3308 = vadd.f32 %v3163, %v3307
        %v3309 = vpop.f32.mrb[0].mxu0
        %v3310 = vpop.f32.mrb[0].mxu0
        %v3311 = vadd.f32 %v3166, %v3310
        %v3312 = vpop.f32.mrb[0].mxu0
        %3313 = vmatprep.mubr.bf16.mxu0 0
        %3314 = vmatmul.mubr.bf16.gmra.mrb[0].mxu0 %v3253
        %v3315 = vpop.f32.mrb[0].mxu0
        %v3316 = vadd.f32 %v3171, %v3315
        %v3317 = vpop.f32.mrb[0].mxu0
        %v3318 = vpop.f32.mrb[0].mxu0
        %v3319 = vadd.f32 %v3174, %v3318
        %v3320 = vpop.f32.mrb[0].mxu0
        %3321 = vmatprep.mubr.bf16.mxu0 0
        %3322 = vmatmul.mubr.bf16.gmra.mrb[0].mxu0 %v3256
        %v3323 = vpop.f32.mrb[0].mxu0
        %v3324 = vadd.f32 %v3179, %v3323
        %v3325 = vpop.f32.mrb[0].mxu0
        %v3326 = vpop.f32.mrb[0].mxu0
        %v3327 = vadd.f32 %v3182, %v3326
        %v3328 = vpop.f32.mrb[0].mxu0
        %3329 = vmatprep.mubr.bf16.mxu0 0
        %3330 = vmatmul.mubr.bf16.gmra.mrb[0].mxu0 %v3259
        %v3331 = vpop.f32.mrb[0].mxu0
        %v3332 = vadd.f32 %v3187, %v3331
        %v3333 = vpop.f32.mrb[0].mxu0
        %v3334 = vpop.f32.mrb[0].mxu0
        %v3335 = vadd.f32 %v3190, %v3334
        %v3336 = vpop.f32.mrb[0].mxu0
        %3337 = vmatprep.mubr.bf16.mxu0 0
        %3338 = vmatmul.mubr.bf16.gmra.mrb[0].mxu0 %v3262
        %v3339 = vpop.f32.mrb[0].mxu0
        %v3340 = vadd.f32 %v3195, %v3339
        %v3341 = vpop.f32.mrb[0].mxu0
        %v3342 = vpop.f32.mrb[0].mxu0
        %v3343 = vadd.f32 %v3198, %v3342
        %v3344 = vpop.f32.mrb[0].mxu0
        %3345 = vmatprep.mubr.bf16.mxu0 0
        %3346 = vmatmul.mubr.bf16.gmra.mrb[0].mxu0 %v3265
        %v3347 = vpop.f32.mrb[0].mxu0
        %v3348 = vadd.f32 %v3203, %v3347
        %v3349 = vpop.f32.mrb[0].mxu0
        %v3350 = vpop.f32.mrb[0].mxu0
        %v3351 = vadd.f32 %v3206, %v3350
        %v3352 = vpop.f32.mrb[0].mxu0
        %3353 = vmatprep.mubr.bf16.mxu0 0
        %3354 = vmatmul.mubr.bf16.gmra.mrb[0].mxu0 %v3268
        %v3355 = vpop.f32.mrb[0].mxu0
        %v3356 = vadd.f32 %v3211, %v3355
        %v3357 = vpop.f32.mrb[0].mxu0
        %v3358 = vpop.f32.mrb[0].mxu0
        %v3359 = vadd.f32 %v3214, %v3358
        %v3360 = vpop.f32.mrb[0].mxu0
        %3361 = vmatprep.mubr.bf16.mxu0 0
        %3362 = vmatmul.mubr.bf16.gmra.mrb[0].mxu0 %v3271
        %v3363 = vpop.f32.mrb[0].mxu0
        %v3364 = vadd.f32 %v3219, %v3363
        %v3365 = vpop.f32.mrb[0].mxu0
        %v3366 = vpop.f32.mrb[0].mxu0
        %v3367 = vadd.f32 %v3222, %v3366
        %v3368 = vpop.f32.mrb[0].mxu0
        %3369 = vdwg.mxu0
        %v3370 = vadd.f32 %v3308, %v2660
        %v3371 = vadd.f32 %v3311, %v2660
        %v3372 = vadd.f32 %v3316, %v2660
        %v3373 = vadd.f32 %v3319, %v2660
        %v3374 = vadd.f32 %v3324, %v2660
        %v3375 = vadd.f32 %v3327, %v2660
        %v3376 = vadd.f32 %v3332, %v2660
        %v3377 = vadd.f32 %v3335, %v2660
        %v3378 = vadd.f32 %v3340, %v2660
        %v3379 = vadd.f32 %v3343, %v2660
        %v3380 = vadd.f32 %v3348, %v2660
        %v3381 = vadd.f32 %v3351, %v2660
        %v3382 = vadd.f32 %v3356, %v2660
        %v3383 = vadd.f32 %v3359, %v2660
        %v3384 = vadd.f32 %v3364, %v2660
        %v3385 = vadd.f32 %v3367, %v2660
        %3402 = vrot.lane.b32.xlu0 %v2662, 16
        %v3403 = vpop.permute.xlu0 %3402
        %3404 = vrot.lane.b32.xlu0 %v2663, 16
        %v3405 = vpop.permute.xlu0 %3404
        %3406 = vrot.lane.b32.xlu0 %v2664, 16
        %v3407 = vpop.permute.xlu0 %3406
        %3408 = vrot.lane.b32.xlu0 %v2665, 16
        %v3409 = vpop.permute.xlu0 %3408
        %3410 = vrot.lane.b32.xlu0 %v2666, 16
        %v3411 = vpop.permute.xlu0 %3410
        %3412 = vrot.lane.b32.xlu0 %v2667, 16
        %v3413 = vpop.permute.xlu0 %3412
        %3414 = vrot.lane.b32.xlu0 %v2668, 16
        %v3415 = vpop.permute.xlu0 %3414
        %3416 = vrot.lane.b32.xlu0 %v2669, 16
        %v3417 = vpop.permute.xlu0 %3416
        %3418 = vrot.lane.b32.xlu0 %v2670, 16
        %v3419 = vpop.permute.xlu0 %3418
        %3420 = vrot.lane.b32.xlu0 %v2671, 16
        %v3421 = vpop.permute.xlu0 %3420
        %3422 = vrot.lane.b32.xlu0 %v2672, 16
        %v3423 = vpop.permute.xlu0 %3422
        %3424 = vrot.lane.b32.xlu0 %v2673, 16
        %v3425 = vpop.permute.xlu0 %3424
        %3426 = vrot.lane.b32.xlu0 %v2674, 16
        %v3427 = vpop.permute.xlu0 %3426
        %3428 = vrot.lane.b32.xlu0 %v2675, 16
        %v3429 = vpop.permute.xlu0 %3428
        %3430 = vrot.lane.b32.xlu0 %v2676, 16
        %v3431 = vpop.permute.xlu0 %3430
        %3432 = vrot.lane.b32.xlu0 %v2677, 16
        %v3433 = vpop.permute.xlu0 %3432
        %3466 = vrot.lane.b32.xlu0 %v3016, 32
        %v3467 = vpop.permute.xlu0 %3466
        %3468 = vrot.lane.b32.xlu0 %v3017, 32
        %v3469 = vpop.permute.xlu0 %3468
        %3470 = vrot.lane.b32.xlu0 %v3018, 32
        %v3471 = vpop.permute.xlu0 %3470
        %3472 = vrot.lane.b32.xlu0 %v3019, 32
        %v3473 = vpop.permute.xlu0 %3472
        %3474 = vrot.lane.b32.xlu0 %v3020, 32
        %v3475 = vpop.permute.xlu0 %3474
        %3476 = vrot.lane.b32.xlu0 %v3021, 32
        %v3477 = vpop.permute.xlu0 %3476
        %3478 = vrot.lane.b32.xlu0 %v3022, 32
        %v3479 = vpop.permute.xlu0 %3478
        %3480 = vrot.lane.b32.xlu0 %v3023, 32
        %v3481 = vpop.permute.xlu0 %3480
        %3482 = vrot.lane.b32.xlu0 %v3024, 32
        %v3483 = vpop.permute.xlu0 %3482
        %3484 = vrot.lane.b32.xlu0 %v3025, 32
        %v3485 = vpop.permute.xlu0 %3484
        %3486 = vrot.lane.b32.xlu0 %v3026, 32
        %v3487 = vpop.permute.xlu0 %3486
        %3488 = vrot.lane.b32.xlu0 %v3027, 32
        %v3489 = vpop.permute.xlu0 %3488
        %3490 = vrot.lane.b32.xlu0 %v3028, 32
        %v3491 = vpop.permute.xlu0 %3490
        %3492 = vrot.lane.b32.xlu0 %v3029, 32
        %v3493 = vpop.permute.xlu0 %3492
        %3494 = vrot.lane.b32.xlu0 %v3030, 32
        %v3495 = vpop.permute.xlu0 %3494
        %3496 = vrot.lane.b32.xlu0 %v3031, 32
        %v3497 = vpop.permute.xlu0 %3496
        %3530 = vrot.lane.b32.xlu0 %v3370, 48
        %v3531 = vpop.permute.xlu0 %3530
        %3532 = vrot.lane.b32.xlu0 %v3371, 48
        %v3533 = vpop.permute.xlu0 %3532
        %3534 = vrot.lane.b32.xlu0 %v3372, 48
        %v3535 = vpop.permute.xlu0 %3534
        %3536 = vrot.lane.b32.xlu0 %v3373, 48
        %v3537 = vpop.permute.xlu0 %3536
        %3538 = vrot.lane.b32.xlu0 %v3374, 48
        %v3539 = vpop.permute.xlu0 %3538
        %3540 = vrot.lane.b32.xlu0 %v3375, 48
        %v3541 = vpop.permute.xlu0 %3540
        %3542 = vrot.lane.b32.xlu0 %v3376, 48
        %v3543 = vpop.permute.xlu0 %3542
        %3544 = vrot.lane.b32.xlu0 %v3377, 48
        %v3545 = vpop.permute.xlu0 %3544
        %3546 = vrot.lane.b32.xlu0 %v3378, 48
        %v3547 = vpop.permute.xlu0 %3546
        %3548 = vrot.lane.b32.xlu0 %v3379, 48
        %v3549 = vpop.permute.xlu0 %3548
        %3550 = vrot.lane.b32.xlu0 %v3380, 48
        %v3551 = vpop.permute.xlu0 %3550
        %3552 = vrot.lane.b32.xlu0 %v3381, 48
        %v3553 = vpop.permute.xlu0 %3552
        %3554 = vrot.lane.b32.xlu0 %v3382, 48
        %v3555 = vpop.permute.xlu0 %3554
        %3556 = vrot.lane.b32.xlu0 %v3383, 48
        %v3557 = vpop.permute.xlu0 %3556
        %3558 = vrot.lane.b32.xlu0 %v3384, 48
        %v3559 = vpop.permute.xlu0 %3558
        %3560 = vrot.lane.b32.xlu0 %v3385, 48
        %v3561 = vpop.permute.xlu0 %3560
        %v3578 = vsel %vm2029, %v2285, %v3403
        %v3579 = vsel %vm2029, %v2286, %v3405
        %v3580 = vsel %vm2029, %v2287, %v3407
        %v3581 = vsel %vm2029, %v2288, %v3409
        %v3582 = vsel %vm2029, %v2289, %v3411
        %v3583 = vsel %vm2029, %v2290, %v3413
        %v3584 = vsel %vm2029, %v2291, %v3415
        %v3585 = vsel %vm2029, %v2292, %v3417
        %v3586 = vsel %vm2029, %v2293, %v3419
        %v3587 = vsel %vm2029, %v2294, %v3421
        %v3588 = vsel %vm2029, %v2295, %v3423
        %v3589 = vsel %vm2029, %v2296, %v3425
        %v3590 = vsel %vm2029, %v2297, %v3427
        %v3591 = vsel %vm2029, %v2298, %v3429
        %v3592 = vsel %vm2029, %v2299, %v3431
        %v3593 = vsel %vm2029, %v2300, %v3433
        %v3594 = vsel %vm813, %v3578, %v3467
        %v3595 = vsel %vm813, %v3579, %v3469
        %v3596 = vsel %vm813, %v3580, %v3471
        %v3597 = vsel %vm813, %v3581, %v3473
        %v3598 = vsel %vm813, %v3582, %v3475
        %v3599 = vsel %vm813, %v3583, %v3477
        %v3600 = vsel %vm813, %v3584, %v3479
        %v3601 = vsel %vm813, %v3585, %v3481
        %v3602 = vsel %vm813, %v3586, %v3483
        %v3603 = vsel %vm813, %v3587, %v3485
        %v3604 = vsel %vm813, %v3588, %v3487
        %v3605 = vsel %vm813, %v3589, %v3489
        %v3606 = vsel %vm813, %v3590, %v3491
        %v3607 = vsel %vm813, %v3591, %v3493
        %v3608 = vsel %vm813, %v3592, %v3495
        %v3609 = vsel %vm813, %v3593, %v3497
        %vm3610 = vcmask 392192
        %v3611 = vsel %vm3610, %v3594, %v3531
        %v3612 = vsel %vm3610, %v3595, %v3533
        %v3613 = vsel %vm3610, %v3596, %v3535
        %v3614 = vsel %vm3610, %v3597, %v3537
        %v3615 = vsel %vm3610, %v3598, %v3539
        %v3616 = vsel %vm3610, %v3599, %v3541
        %v3617 = vsel %vm3610, %v3600, %v3543
        %v3618 = vsel %vm3610, %v3601, %v3545
        %v3619 = vsel %vm3610, %v3602, %v3547
        %v3620 = vsel %vm3610, %v3603, %v3549
        %v3621 = vsel %vm3610, %v3604, %v3551
        %v3622 = vsel %vm3610, %v3605, %v3553
        %v3623 = vsel %vm3610, %v3606, %v3555
        %v3624 = vsel %vm3610, %v3607, %v3557
        %v3625 = vsel %vm3610, %v3608, %v3559
        %v3626 = vsel %vm3610, %v3609, %v3561
        %3627 = vset.pattern.permute.xlu0 3
        %3628 = vperm.xlu0 %3627, %v718
        %v3629 = vpop.permute.xlu0 %3628
        %3631 = vset.pattern.permute.xlu0 3
        %3632 = vperm.xlu0 %3631, %v719
        %v3633 = vpop.permute.xlu0 %3632
        %3635 = vset.pattern.permute.xlu0 3
        %3636 = vperm.xlu0 %3635, %v720
        %v3637 = vpop.permute.xlu0 %3636
        %3639 = vset.pattern.permute.xlu0 3
        %3640 = vperm.xlu0 %3639, %v721
        %v3641 = vpop.permute.xlu0 %3640
        %3643 = vset.pattern.permute.xlu0 3
        %3644 = vperm.xlu0 %3643, %v722
        %v3645 = vpop.permute.xlu0 %3644
        %3647 = vset.pattern.permute.xlu0 3
        %3648 = vperm.xlu0 %3647, %v723
        %v3649 = vpop.permute.xlu0 %3648
        %3651 = vset.pattern.permute.xlu0 3
        %3652 = vperm.xlu0 %3651, %v724
        %v3653 = vpop.permute.xlu0 %3652
        %3655 = vset.pattern.permute.xlu0 3
        %3656 = vperm.xlu0 %3655, %v725
        %v3657 = vpop.permute.xlu0 %3656
        %3659 = vset.pattern.permute.xlu0 3
        %3660 = vperm.xlu0 %3659, %v726
        %v3661 = vpop.permute.xlu0 %3660
        %3663 = vset.pattern.permute.xlu0 3
        %3664 = vperm.xlu0 %3663, %v727
        %v3665 = vpop.permute.xlu0 %3664
        %3667 = vset.pattern.permute.xlu0 3
        %3668 = vperm.xlu0 %3667, %v728
        %v3669 = vpop.permute.xlu0 %3668
        %3671 = vset.pattern.permute.xlu0 3
        %3672 = vperm.xlu0 %3671, %v729
        %v3673 = vpop.permute.xlu0 %3672
        %3675 = vset.pattern.permute.xlu0 3
        %3676 = vperm.xlu0 %3675, %v730
        %v3677 = vpop.permute.xlu0 %3676
        %3679 = vset.pattern.permute.xlu0 3
        %3680 = vperm.xlu0 %3679, %v731
        %v3681 = vpop.permute.xlu0 %3680
        %3683 = vset.pattern.permute.xlu0 3
        %3684 = vperm.xlu0 %3683, %v732
        %v3685 = vpop.permute.xlu0 %3684
        %3687 = vset.pattern.permute.xlu0 3
        %3688 = vperm.xlu0 %3687, %v733
        %v3689 = vpop.permute.xlu0 %3688
        %v3691 = vmul.f32 %v3611, %v3629
        %v3692 = vmul.f32 %v3612, %v3633
        %v3693 = vmul.f32 %v3613, %v3637
        %v3694 = vmul.f32 %v3614, %v3641
        %v3695 = vmul.f32 %v3615, %v3645
        %v3696 = vmul.f32 %v3616, %v3649
        %v3697 = vmul.f32 %v3617, %v3653
        %v3698 = vmul.f32 %v3618, %v3657
        %v3699 = vmul.f32 %v3619, %v3661
        %v3700 = vmul.f32 %v3620, %v3665
        %v3701 = vmul.f32 %v3621, %v3669
        %v3702 = vmul.f32 %v3622, %v3673
        %v3703 = vmul.f32 %v3623, %v3677
        %v3704 = vmul.f32 %v3624, %v3681
        %v3705 = vmul.f32 %v3625, %v3685
        %v3706 = vmul.f32 %v3626, %v3689
        %v3707 = vpack.c.bf16 %v3692, %v3691
        %v3708 = vpack.c.bf16 %v3694, %v3693
        %v3709 = vpack.c.bf16 %v3696, %v3695
        %v3710 = vpack.c.bf16 %v3698, %v3697
        %v3711 = vpack.c.bf16 %v3700, %v3699
        %v3712 = vpack.c.bf16 %v3702, %v3701
        %v3713 = vpack.c.bf16 %v3704, %v3703
        %v3714 = vpack.c.bf16 %v3706, %v3705
        %v3723 = vunpack.c.l.b16 %v3707
        %v3724 = vunpack.c.h.b16 %v3707
        %v3725 = vunpack.c.l.b16 %v3708
        %v3726 = vunpack.c.h.b16 %v3708
        %v3727 = vunpack.c.l.b16 %v3709
        %v3728 = vunpack.c.h.b16 %v3709
        %v3729 = vunpack.c.l.b16 %v3710
        %v3730 = vunpack.c.h.b16 %v3710
        %v3731 = vunpack.c.l.b16 %v3711
        %v3732 = vunpack.c.h.b16 %v3711
        %v3733 = vunpack.c.l.b16 %v3712
        %v3734 = vunpack.c.h.b16 %v3712
        %v3735 = vunpack.c.l.b16 %v3713
        %v3736 = vunpack.c.h.b16 %v3713
        %v3737 = vunpack.c.l.b16 %v3714
        %v3738 = vunpack.c.h.b16 %v3714
        %v3739 = vpack.c.b16 %v3723, %v3723
        %v3740 = vpack.c.b16 %v3724, %v3724
        %v3741 = vpack.c.b16 %v3725, %v3725
        %v3742 = vpack.c.b16 %v3726, %v3726
        %v3743 = vpack.c.b16 %v3727, %v3727
        %v3744 = vpack.c.b16 %v3728, %v3728
        %v3745 = vpack.c.b16 %v3729, %v3729
        %v3746 = vpack.c.b16 %v3730, %v3730
        %v3747 = vpack.c.b16 %v3731, %v3731
        %v3748 = vpack.c.b16 %v3732, %v3732
        %v3749 = vpack.c.b16 %v3733, %v3733
        %v3750 = vpack.c.b16 %v3734, %v3734
        %v3751 = vpack.c.b16 %v3735, %v3735
        %v3752 = vpack.c.b16 %v3736, %v3736
        %v3753 = vpack.c.b16 %v3737, %v3737
        %v3754 = vpack.c.b16 %v3738, %v3738
        %vm3771 = vcmask 519168
        %3772 = vst.msk [vmem:[%s715] sm:$0xf] %vm3771, %v3739
        %3773 = vst.msk [vmem:[%s715 + $0x4] sm:$0xf] %vm3771, %v3740
        %3774 = vst.msk [vmem:[%s715 + $0x8] sm:$0xf] %vm3771, %v3741
        %3775 = vst.msk [vmem:[%s715 + $0xc] sm:$0xf] %vm3771, %v3742
        %3776 = vst.msk [vmem:[%s715 + $0x10] sm:$0xf] %vm3771, %v3743
        %3777 = vst.msk [vmem:[%s715 + $0x14] sm:$0xf] %vm3771, %v3744
        %3778 = vst.msk [vmem:[%s715 + $0x18] sm:$0xf] %vm3771, %v3745
        %3779 = vst.msk [vmem:[%s715 + $0x1c] sm:$0xf] %vm3771, %v3746
        %3780 = vst.msk [vmem:[%s715 + $0x20] sm:$0xf] %vm3771, %v3747
        %3781 = vst.msk [vmem:[%s715 + $0x24] sm:$0xf] %vm3771, %v3748
        %3782 = vst.msk [vmem:[%s715 + $0x28] sm:$0xf] %vm3771, %v3749
        %3783 = vst.msk [vmem:[%s715 + $0x2c] sm:$0xf] %vm3771, %v3750
        %3784 = vst.msk [vmem:[%s715 + $0x30] sm:$0xf] %vm3771, %v3751
        %3785 = vst.msk [vmem:[%s715 + $0x34] sm:$0xf] %vm3771, %v3752
        %3786 = vst.msk [vmem:[%s715 + $0x38] sm:$0xf] %vm3771, %v3753
        %3787 = vst.msk [vmem:[%s715 + $0x3c] sm:$0xf] %vm3771, %v3754
        %s3788 = smul.u32 16, %s24
        %p3789 = scmp.lt.s32.totalorder %s3788, 47
        %s3790 = scalar_select %p3789, %s3788, 47
        %s3791 = smul.addr %s3790, 4
        %s3792 = scalar_lea.vmem %s13, %s3791
        // Predicated region
        $region114: #{tpu_custom_call.1} parent=108 // pred_check
          %p3793 = pneg %p330
        $region115: #{tpu_custom_call.1} parent=108 // pred_check_branch
          %3795 = sbr.rel (%p3793) target = $region117
        $region116: #{tpu_custom_call.1} parent=108 // pred_region
          %s3796 = smul.u32 16, %s24
        $region117: #{tpu_custom_call.1} parent=108 // pred_fallthru
          _
      $region109: #{tpu_custom_call.1} parent=5 // pred_fallthru
        _
      %p3797 = scmp.le.s32.totalorder 2, %s19
      // Predicated region
      $region118: #{tpu_custom_call.1} parent=5 // pred_check
        %p3798 = pneg %p3797
      $region119: #{tpu_custom_call.1} parent=5 // pred_check_branch
        %3800 = sbr.rel (%p3798) target = $region121
      $region120: #{tpu_custom_call.1} parent=5 // pred_region
        %s3801 = ssub.s32 %s19, 2
        // Predicated region
        $region122: #{tpu_custom_call.1} parent=120 // pred_check
          %p3802 = pneg %p336
        $region123: #{tpu_custom_call.1} parent=120 // pred_check_branch
          %3804 = sbr.rel (%p3802) target = $region125
        $region124: #{tpu_custom_call.1} parent=120 // pred_region
          %s3805 = smul.u32 16, %s25
          %p3806 = scmp.lt.s32.totalorder %s3805, 47
          %s3807 = scalar_select %p3806, %s3805, 47
          %s3808 = smul.addr %s3807, 4
          %s3809 = scalar_lea.vmem %s13, %s3808
        $region125: #{tpu_custom_call.1} parent=120 // pred_fallthru
          _
      $region121: #{tpu_custom_call.1} parent=5 // pred_fallthru
        _
    $region6: #{tpu_custom_call.1} parent=1 // loop_footer
      %s23 = sadd.s32 1, %s19
    $region7: #{tpu_custom_call.1} parent=1 // loop_footer_branch
      %18 = sbr.rel target = $region3
    $region8: #{tpu_custom_call.1} parent=1 // loop_exit
      _

</llo_original>
